<compile_context>
chip_gen: v5e
topology: v5e:2x2
jax: 0.10.0
libtpu: 0.0.40
codegen_flags: <defaults>
</compile_context>

<pallas_src>
import math

import jax
import jax.numpy as jnp
from jax import lax
from jax.experimental import pallas as pl
from jax.experimental.pallas import tpu as pltpu  # noqa: F401  (TPU backend assumed)

# ----- model hyper-parameters (small, TPU-lane-friendly, consistent with module) -----
D_MODEL = 128
NUM_HEADS = 4
D_K = D_MODEL // NUM_HEADS
D_FF = 256
LN_EPS = 1e-5
NEG_INF = -1e9


def _layernorm(v, gamma, beta):
    mean = jnp.mean(v, axis=-1, keepdims=True)
    var = jnp.mean((v - mean) ** 2, axis=-1, keepdims=True)
    return (v - mean) * lax.rsqrt(var + LN_EPS) * gamma + beta


def _make_decoder_kernel(B, S, S_enc):
    """Build the kernel body for static (B, S, S_enc)."""

    def kernel(
        x_ref, enc_ref, cross_bias_ref,
        sa_wq_ref, sa_bq_ref, sa_wkv_ref, sa_bkv_ref, sa_wo_ref, sa_bo_ref,
        ca_wq_ref, ca_bq_ref, ca_wkv_ref, ca_bkv_ref, ca_wo_ref, ca_bo_ref,
        w1_ref, b1_ref, w2_ref, b2_ref,
        gamma_ref, beta_ref,
        out_ref,
    ):
        x = x_ref[...]                      # (B*S, D)      f32
        enc = enc_ref[...]                  # (B*S_enc, D)  f32
        cross_bias = cross_bias_ref[...]    # (B, 1, S_enc) f32 additive {0, -1e9}
        gamma = gamma_ref[...]              # (3, D)        f32
        beta = beta_ref[...]                # (3, D)        f32

        # Causal additive bias, generated once per kernel invocation.
        row = lax.broadcasted_iota(jnp.int32, (S, S), 0)
        col = lax.broadcasted_iota(jnp.int32, (S, S), 1)
        causal_bias = jnp.where(row >= col, 0.0, NEG_INF)   # (S, S)

        def mha(q_rows, kv_rows, skv, wq_ref, bq_ref, wkv_ref, bkv_ref,
                wo_ref, bo_ref, bias_for_b):
            # Fused lane-dense projections (bf16 operands, f32 MXU accumulation):
            #   q:  (B*S,   128) = q_rows  @ Wq(128,128)     [scale folded in]
            #   kv: (B*skv, 256) = kv_rows @ [Wk | Wv](128,256)
            q = jnp.dot(q_rows.astype(jnp.bfloat16), wq_ref[...],
                        preferred_element_type=jnp.float32) + bq_ref[...]
            kv = jnp.dot(kv_rows.astype(jnp.bfloat16), wkv_ref[...],
                         preferred_element_type=jnp.float32) + bkv_ref[...]
            qb = q.astype(jnp.bfloat16)
            kvb = kv.astype(jnp.bfloat16)

            # Per-(batch, head) attention on 2-D tiles (static slices only; the
            # K=d_k contraction is inherent to MHA).  NOTE: fully-masked rows
            # degenerate to an unmasked softmax with an additive bias; the
            # padding mask here never masks every key of a row.
            batch_rows = []
            for b in range(B):
                bias_b = bias_for_b(b)
                head_cols = []
                for h in range(NUM_HEADS):
                    qbh = qb[b * S:(b + 1) * S, h * D_K:(h + 1) * D_K]          # (S, dk)
                    kbh = kvb[b * skv:(b + 1) * skv, h * D_K:(h + 1) * D_K]     # (skv, dk)
                    vbh = kvb[b * skv:(b + 1) * skv,
                              D_MODEL + h * D_K:D_MODEL + (h + 1) * D_K]        # (skv, dk)
                    s = jnp.einsum('qd,kd->qk', qbh, kbh,
                                   preferred_element_type=jnp.float32)          # (S, skv)
                    s = s + bias_b
                    m = jnp.max(s, axis=-1, keepdims=True)
                    e = jnp.exp(s - m)
                    denom = jnp.sum(e, axis=-1, keepdims=True)
                    p = (e * pl.reciprocal(denom, approx=True)).astype(jnp.bfloat16)
                    c = jnp.dot(p, vbh, preferred_element_type=jnp.float32)     # (S, dk)
                    head_cols.append(c)
                batch_rows.append(jnp.concatenate(head_cols, axis=-1))          # (S, D)
            ctx = jnp.concatenate(batch_rows, axis=0)                            # (B*S, D)

            # Fused output projection: one (B*S,128)x(128,128) matmul.
            return jnp.dot(ctx.astype(jnp.bfloat16), wo_ref[...],
                           preferred_element_type=jnp.float32) + bo_ref[...]

        def ffn(v):
            h1 = jnp.dot(v.astype(jnp.bfloat16), w1_ref[...],
                         preferred_element_type=jnp.float32) + b1_ref[...]
            h1 = jnp.maximum(h1, 0.0)
            return jnp.dot(h1.astype(jnp.bfloat16), w2_ref[...],
                           preferred_element_type=jnp.float32) + b2_ref[...]

        # --- self-attention + residual + LayerNorm (dropout == identity, eval) ---
        attn1 = mha(x, x, S, sa_wq_ref, sa_bq_ref, sa_wkv_ref, sa_bkv_ref,
                    sa_wo_ref, sa_bo_ref, lambda b: causal_bias)
        x1 = _layernorm(x + attn1, gamma[0:1], beta[0:1])
        # --- cross-attention + residual + LayerNorm ---
        attn2 = mha(x1, enc, S_enc, ca_wq_ref, ca_bq_ref, ca_wkv_ref, ca_bkv_ref,
                    ca_wo_ref, ca_bo_ref, lambda b: cross_bias[b])
        x2 = _layernorm(x1 + attn2, gamma[1:2], beta[1:2])
        # --- position-wise feed-forward + residual + LayerNorm ---
        ff = ffn(x2)
        x3 = _layernorm(x2 + ff, gamma[2:3], beta[2:3])

        out_ref[...] = x3.astype(out_ref.dtype)

    return kernel


def decoder_layer(x, enc, src_mask, params):
    """x: (B,S,D) f32, enc: (B,S_enc,D) f32, src_mask: (B,1,S_enc) f32 {0,1}."""
    B, S, D = x.shape
    S_enc = enc.shape[1]

    # Batch folded into M (done outside the kernel: reshapes here are free).
    x2d = x.reshape(B * S, D)
    enc2d = enc.reshape(B * S_enc, D)
    # Bake the padding mask into an additive bias on the host.
    cross_bias = (src_mask.astype(jnp.float32) - 1.0) * 1e9   # 1 -> 0, 0 -> -1e9

    kernel = _make_decoder_kernel(B, S, S_enc)
    # Single invocation (no grid): whole arrays live in VMEM for the duration,
    # no pipeline double-buffering of the grid-invariant weights.
    out2d = pl.pallas_call(
        kernel,
        out_shape=jax.ShapeDtypeStruct((B * S, D), x.dtype),
    )(x2d, enc2d, cross_bias, *params)
    return out2d.reshape(B, S, D)


def prepare_attention_params(wq, bq, wk, bk, wv, bv, wo, bo):
    """Raw (in,out)-convention f32 weights -> fused, lane-dense kernel layout.

    Folds the 1/sqrt(d_k) attention scale into Wq/bq and concatenates Wk|Wv
    (and bk|bv) along the output/lane dimension for a single K/V matmul.
    """
    scale = 1.0 / math.sqrt(D_K)
    wq_s = (wq * scale).astype(jnp.bfloat16)                        # (D, D)
    bq_s = (bq * scale).reshape(1, D_MODEL).astype(jnp.float32)     # (1, D)
    wkv = jnp.concatenate([wk, wv], axis=1).astype(jnp.bfloat16)    # (D, 2D)
    bkv = jnp.concatenate([bk, bv]).reshape(1, 2 * D_MODEL).astype(jnp.float32)
    wo_b = wo.astype(jnp.bfloat16)                                  # (D, D)
    bo_b = bo.reshape(1, D_MODEL).astype(jnp.float32)               # (1, D)
    return wq_s, bq_s, wkv, bkv, wo_b, bo_b


# ---------------------- pure-JAX f32 reference (for verification) ----------------------
def _mha_ref(q, kv, wq, bq, wk, bk, wv, bv, wo, bo, mask):
    B, Sq, D = q.shape
    Skv = kv.shape[1]
    Q = q @ wq + bq
    K = kv @ wk + bk
    V = kv @ wv + bv
    Qh = Q.reshape(B, Sq, NUM_HEADS, D_K).transpose(0, 2, 1, 3)
    Kh = K.reshape(B, Skv, NUM_HEADS, D_K).transpose(0, 2, 1, 3)
    Vh = V.reshape(B, Skv, NUM_HEADS, D_K).transpose(0, 2, 1, 3)
    scores = jnp.einsum("bhqd,bhkd->bhqk", Qh, Kh) / math.sqrt(D_K)
    scores = jnp.where(mask[:, None] == 0.0, NEG_INF, scores)
    probs = jax.nn.softmax(scores, axis=-1)
    ctx = jnp.einsum("bhqk,bhkd->bhqd", probs, Vh)
    ctx = ctx.transpose(0, 2, 1, 3).reshape(B, Sq, D)
    return ctx @ wo + bo


def decoder_layer_ref(x, enc, src_mask, tgt_mask, sa_p, ca_p, ffn_p, gamma, beta):
    a1 = _mha_ref(x, x, *sa_p, tgt_mask)
    x1 = _layernorm(x + a1, gamma[0], beta[0])
    a2 = _mha_ref(x1, enc, *ca_p, src_mask)
    x2 = _layernorm(x1 + a2, gamma[1], beta[1])
    w1, b1, w2, b2 = ffn_p
    ff = jnp.maximum(x2 @ w1 + b1, 0.0) @ w2 + b2
    return _layernorm(x2 + ff, gamma[2], beta[2])


# ---------------------------------- main ----------------------------------
if __name__ == "__main__":
    B, S, S_ENC = 2, 16, 16
    key = jax.random.PRNGKey(0)
    ks = jax.random.split(key, 24)
    std = 0.05

    def lin(kw, kb, din, dout):
        return (std * jax.random.normal(kw, (din, dout), jnp.float32),
                std * jax.random.normal(kb, (dout,), jnp.float32))

    sa_wq, sa_bq = lin(ks[0], ks[1], D_MODEL, D_MODEL)
    sa_wk, sa_bk = lin(ks[2], ks[3], D_MODEL, D_MODEL)
    sa_wv, sa_bv = lin(ks[4], ks[5], D_MODEL, D_MODEL)
    sa_wo, sa_bo = lin(ks[6], ks[7], D_MODEL, D_MODEL)
    ca_wq, ca_bq = lin(ks[8], ks[9], D_MODEL, D_MODEL)
    ca_wk, ca_bk = lin(ks[10], ks[11], D_MODEL, D_MODEL)
    ca_wv, ca_bv = lin(ks[12], ks[13], D_MODEL, D_MODEL)
    ca_wo, ca_bo = lin(ks[14], ks[15], D_MODEL, D_MODEL)
    w1, b1 = lin(ks[16], ks[17], D_MODEL, D_FF)
    w2, b2 = lin(ks[18], ks[19], D_FF, D_MODEL)
    gamma = jnp.ones((3, D_MODEL), jnp.float32)
    beta = jnp.zeros((3, D_MODEL), jnp.float32)

    x = jax.random.normal(ks[20], (B, S, D_MODEL), jnp.float32)
    enc_output = jax.random.normal(ks[21], (B, S_ENC, D_MODEL), jnp.float32)
    # src (padding) mask; the causal tgt mask is generated inside the kernel.
    src_mask = jnp.ones((B, 1, S_ENC), jnp.float32).at[1, 0, -3:].set(0.0)

    sa = prepare_attention_params(sa_wq, sa_bq, sa_wk, sa_bk, sa_wv, sa_bv, sa_wo, sa_bo)
    ca = prepare_attention_params(ca_wq, ca_bq, ca_wk, ca_bk, ca_wv, ca_bv, ca_wo, ca_bo)
    kparams = (*sa, *ca,
               w1.astype(jnp.bfloat16), b1.reshape(1, D_FF).astype(jnp.float32),
               w2.astype(jnp.bfloat16), b2.reshape(1, D_MODEL).astype(jnp.float32),
               gamma, beta)

    out = decoder_layer(x, enc_output, src_mask, kparams)
    out = jax.block_until_ready(out)

    tgt_mask = jnp.broadcast_to(jnp.tril(jnp.ones((S, S), jnp.float32)), (B, S, S))
    ref = decoder_layer_ref(
        x, enc_output, src_mask, tgt_mask,
        (sa_wq, sa_bq, sa_wk, sa_bk, sa_wv, sa_bv, sa_wo, sa_bo),
        (ca_wq, ca_bq, ca_wk, ca_bk, ca_wv, ca_bv, ca_wo, ca_bo),
        (w1, b1, w2, b2), gamma, beta)

    assert out.shape == (B, S, D_MODEL)
    max_err = jnp.max(jnp.abs(out - ref))
    # tolerance accounts for bf16 MXU operands + approx reciprocal in the kernel
    assert jnp.allclose(out, ref, rtol=2e-2, atol=2e-2), f"max abs diff {max_err}"
    print("KERNEL_OK")
</pallas_src>

<mosaic_0001>
module attributes {stable_mosaic.version = 11 : i64} {
  func.func @kernel(%arg0: memref<32x128xf32, #tpu.memory_space<vmem>>, %arg1: memref<32x128xf32, #tpu.memory_space<vmem>>, %arg2: memref<2x1x16xf32, #tpu.memory_space<vmem>>, %arg3: memref<128x128xbf16, #tpu.memory_space<vmem>>, %arg4: memref<1x128xf32, #tpu.memory_space<vmem>>, %arg5: memref<128x256xbf16, #tpu.memory_space<vmem>>, %arg6: memref<1x256xf32, #tpu.memory_space<vmem>>, %arg7: memref<128x128xbf16, #tpu.memory_space<vmem>>, %arg8: memref<1x128xf32, #tpu.memory_space<vmem>>, %arg9: memref<128x128xbf16, #tpu.memory_space<vmem>>, %arg10: memref<1x128xf32, #tpu.memory_space<vmem>>, %arg11: memref<128x256xbf16, #tpu.memory_space<vmem>>, %arg12: memref<1x256xf32, #tpu.memory_space<vmem>>, %arg13: memref<128x128xbf16, #tpu.memory_space<vmem>>, %arg14: memref<1x128xf32, #tpu.memory_space<vmem>>, %arg15: memref<128x256xbf16, #tpu.memory_space<vmem>>, %arg16: memref<1x256xf32, #tpu.memory_space<vmem>>, %arg17: memref<256x128xbf16, #tpu.memory_space<vmem>>, %arg18: memref<1x128xf32, #tpu.memory_space<vmem>>, %arg19: memref<3x128xf32, #tpu.memory_space<vmem>>, %arg20: memref<3x128xf32, #tpu.memory_space<vmem>>, %arg21: memref<32x128xf32, #tpu.memory_space<vmem>>) attributes {dimension_semantics = [], scalar_prefetch = 0 : i64, scratch_operands = 0 : i64, tpu.core_type = #tpu.core_type<tc>} {
    %c0 = arith.constant 0 : index
    %c0_0 = arith.constant 0 : index
    %0 = vector.load %arg0[%c0, %c0_0] : memref<32x128xf32, #tpu.memory_space<vmem>>, vector<32x128xf32>
    %c0_1 = arith.constant 0 : index
    %c0_2 = arith.constant 0 : index
    %1 = vector.load %arg1[%c0_1, %c0_2] : memref<32x128xf32, #tpu.memory_space<vmem>>, vector<32x128xf32>
    %c0_3 = arith.constant 0 : index
    %c0_4 = arith.constant 0 : index
    %c0_5 = arith.constant 0 : index
    %2 = vector.load %arg2[%c0_3, %c0_4, %c0_5] : memref<2x1x16xf32, #tpu.memory_space<vmem>>, vector<2x1x16xf32>
    %c0_6 = arith.constant 0 : index
    %c0_7 = arith.constant 0 : index
    %3 = vector.load %arg19[%c0_6, %c0_7] : memref<3x128xf32, #tpu.memory_space<vmem>>, vector<3x128xf32>
    %c0_8 = arith.constant 0 : index
    %c0_9 = arith.constant 0 : index
    %4 = vector.load %arg20[%c0_8, %c0_9] : memref<3x128xf32, #tpu.memory_space<vmem>>, vector<3x128xf32>
    %5 = tpu.iota {dimensions = array<i32: 0>} : vector<16x16xi32>
    %6 = tpu.iota {dimensions = array<i32: 1>} : vector<16x16xi32>
    %7 = arith.cmpi sge, %5, %6 : vector<16x16xi32>
    %cst = arith.constant 0.000000e+00 : f32
    %cst_10 = arith.constant -1.000000e+09 : f32
    %8 = vector.broadcast %cst : f32 to vector<16x16xf32>
    %9 = vector.broadcast %cst_10 : f32 to vector<16x16xf32>
    %10 = arith.select %7, %8, %9 : vector<16x16xi1>, vector<16x16xf32>
    %11 = arith.truncf %0 : vector<32x128xf32> to vector<32x128xbf16>
    %c0_11 = arith.constant 0 : index
    %c0_12 = arith.constant 0 : index
    %12 = vector.load %arg3[%c0_11, %c0_12] : memref<128x128xbf16, #tpu.memory_space<vmem>>, vector<128x128xbf16>
    %cst_13 = arith.constant dense<0.000000e+00> : vector<32x128xf32>
    %13 = tpu.matmul %11, %12, %cst_13 {dimension_numbers = #tpu.dot_dimension_numbers<[1], [0], [0], [1], [0, 0, 1, 1], [], []>} : vector<32x128xbf16>, vector<128x128xbf16>, vector<32x128xf32> -> vector<32x128xf32>
    %c0_14 = arith.constant 0 : index
    %c0_15 = arith.constant 0 : index
    %14 = vector.load %arg4[%c0_14, %c0_15] : memref<1x128xf32, #tpu.memory_space<vmem>>, vector<1x128xf32>
    %15 = vector.broadcast %14 : vector<1x128xf32> to vector<32x128xf32>
    %16 = arith.addf %13, %15 : vector<32x128xf32>
    %17 = arith.truncf %0 : vector<32x128xf32> to vector<32x128xbf16>
    %c0_16 = arith.constant 0 : index
    %c0_17 = arith.constant 0 : index
    %18 = vector.load %arg5[%c0_16, %c0_17] : memref<128x256xbf16, #tpu.memory_space<vmem>>, vector<128x256xbf16>
    %cst_18 = arith.constant dense<0.000000e+00> : vector<32x256xf32>
    %19 = tpu.matmul %17, %18, %cst_18 {dimension_numbers = #tpu.dot_dimension_numbers<[1], [0], [0], [1], [0, 0, 1, 1], [], []>} : vector<32x128xbf16>, vector<128x256xbf16>, vector<32x256xf32> -> vector<32x256xf32>
    %c0_19 = arith.constant 0 : index
    %c0_20 = arith.constant 0 : index
    %20 = vector.load %arg6[%c0_19, %c0_20] : memref<1x256xf32, #tpu.memory_space<vmem>>, vector<1x256xf32>
    %21 = vector.broadcast %20 : vector<1x256xf32> to vector<32x256xf32>
    %22 = arith.addf %19, %21 : vector<32x256xf32>
    %23 = arith.truncf %16 : vector<32x128xf32> to vector<32x128xbf16>
    %24 = arith.truncf %22 : vector<32x256xf32> to vector<32x256xbf16>
    %25 = vector.extract_strided_slice %23 {offsets = [0, 0], sizes = [16, 32], strides = [1, 1]} : vector<32x128xbf16> to vector<16x32xbf16>
    %26 = vector.extract_strided_slice %24 {offsets = [0, 0], sizes = [16, 32], strides = [1, 1]} : vector<32x256xbf16> to vector<16x32xbf16>
    %27 = vector.extract_strided_slice %24 {offsets = [0, 128], sizes = [16, 32], strides = [1, 1]} : vector<32x256xbf16> to vector<16x32xbf16>
    "tpu.trace_start"() <{level = 10 : i32, message = "qd,kd->qk"}> : () -> ()
    %cst_21 = arith.constant dense<0.000000e+00> : vector<16x16xf32>
    %28 = tpu.matmul %25, %26, %cst_21 {dimension_numbers = #tpu.dot_dimension_numbers<[1], [1], [0], [0], [0, 0, 1, 0], [], []>} : vector<16x32xbf16>, vector<16x32xbf16>, vector<16x16xf32> -> vector<16x16xf32>
    "tpu.trace_stop"() : () -> ()
    %29 = arith.addf %28, %10 : vector<16x16xf32>
    %cst_22 = arith.constant dense<0xFF800000> : vector<16xf32>
    %30 = vector.multi_reduction <maximumf>, %29, %cst_22 [1] : vector<16x16xf32> to vector<16xf32>
    %31 = vector.shape_cast %30 : vector<16xf32> to vector<16x1xf32>
    %32 = vector.broadcast %31 : vector<16x1xf32> to vector<16x16xf32>
    %33 = arith.subf %29, %32 : vector<16x16xf32>
    %34 = math.exp %33 : vector<16x16xf32>
    %cst_23 = arith.constant dense<0.000000e+00> : vector<16xf32>
    %35 = vector.multi_reduction <add>, %34, %cst_23 [1] : vector<16x16xf32> to vector<16xf32>
    %36 = vector.shape_cast %35 : vector<16xf32> to vector<16x1xf32>
    %37 = tpu.reciprocal %36 {approx = true} : vector<16x1xf32> -> vector<16x1xf32>
    %38 = vector.broadcast %37 : vector<16x1xf32> to vector<16x16xf32>
    %39 = arith.mulf %34, %38 : vector<16x16xf32>
    %40 = arith.truncf %39 : vector<16x16xf32> to vector<16x16xbf16>
    %cst_24 = arith.constant dense<0.000000e+00> : vector<16x32xf32>
    %41 = tpu.matmul %40, %27, %cst_24 {dimension_numbers = #tpu.dot_dimension_numbers<[1], [0], [0], [1], [0, 0, 1, 1], [], []>} : vector<16x16xbf16>, vector<16x32xbf16>, vector<16x32xf32> -> vector<16x32xf32>
    %42 = vector.extract_strided_slice %23 {offsets = [0, 32], sizes = [16, 32], strides = [1, 1]} : vector<32x128xbf16> to vector<16x32xbf16>
    %43 = vector.extract_strided_slice %24 {offsets = [0, 32], sizes = [16, 32], strides = [1, 1]} : vector<32x256xbf16> to vector<16x32xbf16>
    %44 = vector.extract_strided_slice %24 {offsets = [0, 160], sizes = [16, 32], strides = [1, 1]} : vector<32x256xbf16> to vector<16x32xbf16>
    "tpu.trace_start"() <{level = 10 : i32, message = "qd,kd->qk"}> : () -> ()
    %cst_25 = arith.constant dense<0.000000e+00> : vector<16x16xf32>
    %45 = tpu.matmul %42, %43, %cst_25 {dimension_numbers = #tpu.dot_dimension_numbers<[1], [1], [0], [0], [0, 0, 1, 0], [], []>} : vector<16x32xbf16>, vector<16x32xbf16>, vector<16x16xf32> -> vector<16x16xf32>
    "tpu.trace_stop"() : () -> ()
    %46 = arith.addf %45, %10 : vector<16x16xf32>
    %cst_26 = arith.constant dense<0xFF800000> : vector<16xf32>
    %47 = vector.multi_reduction <maximumf>, %46, %cst_26 [1] : vector<16x16xf32> to vector<16xf32>
    %48 = vector.shape_cast %47 : vector<16xf32> to vector<16x1xf32>
    %49 = vector.broadcast %48 : vector<16x1xf32> to vector<16x16xf32>
    %50 = arith.subf %46, %49 : vector<16x16xf32>
    %51 = math.exp %50 : vector<16x16xf32>
    %cst_27 = arith.constant dense<0.000000e+00> : vector<16xf32>
    %52 = vector.multi_reduction <add>, %51, %cst_27 [1] : vector<16x16xf32> to vector<16xf32>
    %53 = vector.shape_cast %52 : vector<16xf32> to vector<16x1xf32>
    %54 = tpu.reciprocal %53 {approx = true} : vector<16x1xf32> -> vector<16x1xf32>
    %55 = vector.broadcast %54 : vector<16x1xf32> to vector<16x16xf32>
    %56 = arith.mulf %51, %55 : vector<16x16xf32>
    %57 = arith.truncf %56 : vector<16x16xf32> to vector<16x16xbf16>
    %cst_28 = arith.constant dense<0.000000e+00> : vector<16x32xf32>
    %58 = tpu.matmul %57, %44, %cst_28 {dimension_numbers = #tpu.dot_dimension_numbers<[1], [0], [0], [1], [0, 0, 1, 1], [], []>} : vector<16x16xbf16>, vector<16x32xbf16>, vector<16x32xf32> -> vector<16x32xf32>
    %59 = vector.extract_strided_slice %23 {offsets = [0, 64], sizes = [16, 32], strides = [1, 1]} : vector<32x128xbf16> to vector<16x32xbf16>
    %60 = vector.extract_strided_slice %24 {offsets = [0, 64], sizes = [16, 32], strides = [1, 1]} : vector<32x256xbf16> to vector<16x32xbf16>
    %61 = vector.extract_strided_slice %24 {offsets = [0, 192], sizes = [16, 32], strides = [1, 1]} : vector<32x256xbf16> to vector<16x32xbf16>
    "tpu.trace_start"() <{level = 10 : i32, message = "qd,kd->qk"}> : () -> ()
    %cst_29 = arith.constant dense<0.000000e+00> : vector<16x16xf32>
    %62 = tpu.matmul %59, %60, %cst_29 {dimension_numbers = #tpu.dot_dimension_numbers<[1], [1], [0], [0], [0, 0, 1, 0], [], []>} : vector<16x32xbf16>, vector<16x32xbf16>, vector<16x16xf32> -> vector<16x16xf32>
    "tpu.trace_stop"() : () -> ()
    %63 = arith.addf %62, %10 : vector<16x16xf32>
    %cst_30 = arith.constant dense<0xFF800000> : vector<16xf32>
    %64 = vector.multi_reduction <maximumf>, %63, %cst_30 [1] : vector<16x16xf32> to vector<16xf32>
    %65 = vector.shape_cast %64 : vector<16xf32> to vector<16x1xf32>
    %66 = vector.broadcast %65 : vector<16x1xf32> to vector<16x16xf32>
    %67 = arith.subf %63, %66 : vector<16x16xf32>
    %68 = math.exp %67 : vector<16x16xf32>
    %cst_31 = arith.constant dense<0.000000e+00> : vector<16xf32>
    %69 = vector.multi_reduction <add>, %68, %cst_31 [1] : vector<16x16xf32> to vector<16xf32>
    %70 = vector.shape_cast %69 : vector<16xf32> to vector<16x1xf32>
    %71 = tpu.reciprocal %70 {approx = true} : vector<16x1xf32> -> vector<16x1xf32>
    %72 = vector.broadcast %71 : vector<16x1xf32> to vector<16x16xf32>
    %73 = arith.mulf %68, %72 : vector<16x16xf32>
    %74 = arith.truncf %73 : vector<16x16xf32> to vector<16x16xbf16>
    %cst_32 = arith.constant dense<0.000000e+00> : vector<16x32xf32>
    %75 = tpu.matmul %74, %61, %cst_32 {dimension_numbers = #tpu.dot_dimension_numbers<[1], [0], [0], [1], [0, 0, 1, 1], [], []>} : vector<16x16xbf16>, vector<16x32xbf16>, vector<16x32xf32> -> vector<16x32xf32>
    %76 = vector.extract_strided_slice %23 {offsets = [0, 96], sizes = [16, 32], strides = [1, 1]} : vector<32x128xbf16> to vector<16x32xbf16>
    %77 = vector.extract_strided_slice %24 {offsets = [0, 96], sizes = [16, 32], strides = [1, 1]} : vector<32x256xbf16> to vector<16x32xbf16>
    %78 = vector.extract_strided_slice %24 {offsets = [0, 224], sizes = [16, 32], strides = [1, 1]} : vector<32x256xbf16> to vector<16x32xbf16>
    "tpu.trace_start"() <{level = 10 : i32, message = "qd,kd->qk"}> : () -> ()
    %cst_33 = arith.constant dense<0.000000e+00> : vector<16x16xf32>
    %79 = tpu.matmul %76, %77, %cst_33 {dimension_numbers = #tpu.dot_dimension_numbers<[1], [1], [0], [0], [0, 0, 1, 0], [], []>} : vector<16x32xbf16>, vector<16x32xbf16>, vector<16x16xf32> -> vector<16x16xf32>
    "tpu.trace_stop"() : () -> ()
    %80 = arith.addf %79, %10 : vector<16x16xf32>
    %cst_34 = arith.constant dense<0xFF800000> : vector<16xf32>
    %81 = vector.multi_reduction <maximumf>, %80, %cst_34 [1] : vector<16x16xf32> to vector<16xf32>
    %82 = vector.shape_cast %81 : vector<16xf32> to vector<16x1xf32>
    %83 = vector.broadcast %82 : vector<16x1xf32> to vector<16x16xf32>
    %84 = arith.subf %80, %83 : vector<16x16xf32>
    %85 = math.exp %84 : vector<16x16xf32>
    %cst_35 = arith.constant dense<0.000000e+00> : vector<16xf32>
    %86 = vector.multi_reduction <add>, %85, %cst_35 [1] : vector<16x16xf32> to vector<16xf32>
    %87 = vector.shape_cast %86 : vector<16xf32> to vector<16x1xf32>
    %88 = tpu.reciprocal %87 {approx = true} : vector<16x1xf32> -> vector<16x1xf32>
    %89 = vector.broadcast %88 : vector<16x1xf32> to vector<16x16xf32>
    %90 = arith.mulf %85, %89 : vector<16x16xf32>
    %91 = arith.truncf %90 : vector<16x16xf32> to vector<16x16xbf16>
    %cst_36 = arith.constant dense<0.000000e+00> : vector<16x32xf32>
    %92 = tpu.matmul %91, %78, %cst_36 {dimension_numbers = #tpu.dot_dimension_numbers<[1], [0], [0], [1], [0, 0, 1, 1], [], []>} : vector<16x16xbf16>, vector<16x32xbf16>, vector<16x32xf32> -> vector<16x32xf32>
    %93 = tpu.concatenate %41, %58, %75, %92 in 1 : vector<16x32xf32>, vector<16x32xf32>, vector<16x32xf32>, vector<16x32xf32> -> vector<16x128xf32>
    %94 = vector.extract_strided_slice %23 {offsets = [16, 0], sizes = [16, 32], strides = [1, 1]} : vector<32x128xbf16> to vector<16x32xbf16>
    %95 = vector.extract_strided_slice %24 {offsets = [16, 0], sizes = [16, 32], strides = [1, 1]} : vector<32x256xbf16> to vector<16x32xbf16>
    %96 = vector.extract_strided_slice %24 {offsets = [16, 128], sizes = [16, 32], strides = [1, 1]} : vector<32x256xbf16> to vector<16x32xbf16>
    "tpu.trace_start"() <{level = 10 : i32, message = "qd,kd->qk"}> : () -> ()
    %cst_37 = arith.constant dense<0.000000e+00> : vector<16x16xf32>
    %97 = tpu.matmul %94, %95, %cst_37 {dimension_numbers = #tpu.dot_dimension_numbers<[1], [1], [0], [0], [0, 0, 1, 0], [], []>} : vector<16x32xbf16>, vector<16x32xbf16>, vector<16x16xf32> -> vector<16x16xf32>
    "tpu.trace_stop"() : () -> ()
    %98 = arith.addf %97, %10 : vector<16x16xf32>
    %cst_38 = arith.constant dense<0xFF800000> : vector<16xf32>
    %99 = vector.multi_reduction <maximumf>, %98, %cst_38 [1] : vector<16x16xf32> to vector<16xf32>
    %100 = vector.shape_cast %99 : vector<16xf32> to vector<16x1xf32>
    %101 = vector.broadcast %100 : vector<16x1xf32> to vector<16x16xf32>
    %102 = arith.subf %98, %101 : vector<16x16xf32>
    %103 = math.exp %102 : vector<16x16xf32>
    %cst_39 = arith.constant dense<0.000000e+00> : vector<16xf32>
    %104 = vector.multi_reduction <add>, %103, %cst_39 [1] : vector<16x16xf32> to vector<16xf32>
    %105 = vector.shape_cast %104 : vector<16xf32> to vector<16x1xf32>
    %106 = tpu.reciprocal %105 {approx = true} : vector<16x1xf32> -> vector<16x1xf32>
    %107 = vector.broadcast %106 : vector<16x1xf32> to vector<16x16xf32>
    %108 = arith.mulf %103, %107 : vector<16x16xf32>
    %109 = arith.truncf %108 : vector<16x16xf32> to vector<16x16xbf16>
    %cst_40 = arith.constant dense<0.000000e+00> : vector<16x32xf32>
    %110 = tpu.matmul %109, %96, %cst_40 {dimension_numbers = #tpu.dot_dimension_numbers<[1], [0], [0], [1], [0, 0, 1, 1], [], []>} : vector<16x16xbf16>, vector<16x32xbf16>, vector<16x32xf32> -> vector<16x32xf32>
    %111 = vector.extract_strided_slice %23 {offsets = [16, 32], sizes = [16, 32], strides = [1, 1]} : vector<32x128xbf16> to vector<16x32xbf16>
    %112 = vector.extract_strided_slice %24 {offsets = [16, 32], sizes = [16, 32], strides = [1, 1]} : vector<32x256xbf16> to vector<16x32xbf16>
    %113 = vector.extract_strided_slice %24 {offsets = [16, 160], sizes = [16, 32], strides = [1, 1]} : vector<32x256xbf16> to vector<16x32xbf16>
    "tpu.trace_start"() <{level = 10 : i32, message = "qd,kd->qk"}> : () -> ()
    %cst_41 = arith.constant dense<0.000000e+00> : vector<16x16xf32>
    %114 = tpu.matmul %111, %112, %cst_41 {dimension_numbers = #tpu.dot_dimension_numbers<[1], [1], [0], [0], [0, 0, 1, 0], [], []>} : vector<16x32xbf16>, vector<16x32xbf16>, vector<16x16xf32> -> vector<16x16xf32>
    "tpu.trace_stop"() : () -> ()
    %115 = arith.addf %114, %10 : vector<16x16xf32>
    %cst_42 = arith.constant dense<0xFF800000> : vector<16xf32>
    %116 = vector.multi_reduction <maximumf>, %115, %cst_42 [1] : vector<16x16xf32> to vector<16xf32>
    %117 = vector.shape_cast %116 : vector<16xf32> to vector<16x1xf32>
    %118 = vector.broadcast %117 : vector<16x1xf32> to vector<16x16xf32>
    %119 = arith.subf %115, %118 : vector<16x16xf32>
    %120 = math.exp %119 : vector<16x16xf32>
    %cst_43 = arith.constant dense<0.000000e+00> : vector<16xf32>
    %121 = vector.multi_reduction <add>, %120, %cst_43 [1] : vector<16x16xf32> to vector<16xf32>
    %122 = vector.shape_cast %121 : vector<16xf32> to vector<16x1xf32>
    %123 = tpu.reciprocal %122 {approx = true} : vector<16x1xf32> -> vector<16x1xf32>
    %124 = vector.broadcast %123 : vector<16x1xf32> to vector<16x16xf32>
    %125 = arith.mulf %120, %124 : vector<16x16xf32>
    %126 = arith.truncf %125 : vector<16x16xf32> to vector<16x16xbf16>
    %cst_44 = arith.constant dense<0.000000e+00> : vector<16x32xf32>
    %127 = tpu.matmul %126, %113, %cst_44 {dimension_numbers = #tpu.dot_dimension_numbers<[1], [0], [0], [1], [0, 0, 1, 1], [], []>} : vector<16x16xbf16>, vector<16x32xbf16>, vector<16x32xf32> -> vector<16x32xf32>
    %128 = vector.extract_strided_slice %23 {offsets = [16, 64], sizes = [16, 32], strides = [1, 1]} : vector<32x128xbf16> to vector<16x32xbf16>
    %129 = vector.extract_strided_slice %24 {offsets = [16, 64], sizes = [16, 32], strides = [1, 1]} : vector<32x256xbf16> to vector<16x32xbf16>
    %130 = vector.extract_strided_slice %24 {offsets = [16, 192], sizes = [16, 32], strides = [1, 1]} : vector<32x256xbf16> to vector<16x32xbf16>
    "tpu.trace_start"() <{level = 10 : i32, message = "qd,kd->qk"}> : () -> ()
    %cst_45 = arith.constant dense<0.000000e+00> : vector<16x16xf32>
    %131 = tpu.matmul %128, %129, %cst_45 {dimension_numbers = #tpu.dot_dimension_numbers<[1], [1], [0], [0], [0, 0, 1, 0], [], []>} : vector<16x32xbf16>, vector<16x32xbf16>, vector<16x16xf32> -> vector<16x16xf32>
    "tpu.trace_stop"() : () -> ()
    %132 = arith.addf %131, %10 : vector<16x16xf32>
    %cst_46 = arith.constant dense<0xFF800000> : vector<16xf32>
    %133 = vector.multi_reduction <maximumf>, %132, %cst_46 [1] : vector<16x16xf32> to vector<16xf32>
    %134 = vector.shape_cast %133 : vector<16xf32> to vector<16x1xf32>
    %135 = vector.broadcast %134 : vector<16x1xf32> to vector<16x16xf32>
    %136 = arith.subf %132, %135 : vector<16x16xf32>
    %137 = math.exp %136 : vector<16x16xf32>
    %cst_47 = arith.constant dense<0.000000e+00> : vector<16xf32>
    %138 = vector.multi_reduction <add>, %137, %cst_47 [1] : vector<16x16xf32> to vector<16xf32>
    %139 = vector.shape_cast %138 : vector<16xf32> to vector<16x1xf32>
    %140 = tpu.reciprocal %139 {approx = true} : vector<16x1xf32> -> vector<16x1xf32>
    %141 = vector.broadcast %140 : vector<16x1xf32> to vector<16x16xf32>
    %142 = arith.mulf %137, %141 : vector<16x16xf32>
    %143 = arith.truncf %142 : vector<16x16xf32> to vector<16x16xbf16>
    %cst_48 = arith.constant dense<0.000000e+00> : vector<16x32xf32>
    %144 = tpu.matmul %143, %130, %cst_48 {dimension_numbers = #tpu.dot_dimension_numbers<[1], [0], [0], [1], [0, 0, 1, 1], [], []>} : vector<16x16xbf16>, vector<16x32xbf16>, vector<16x32xf32> -> vector<16x32xf32>
    %145 = vector.extract_strided_slice %23 {offsets = [16, 96], sizes = [16, 32], strides = [1, 1]} : vector<32x128xbf16> to vector<16x32xbf16>
    %146 = vector.extract_strided_slice %24 {offsets = [16, 96], sizes = [16, 32], strides = [1, 1]} : vector<32x256xbf16> to vector<16x32xbf16>
    %147 = vector.extract_strided_slice %24 {offsets = [16, 224], sizes = [16, 32], strides = [1, 1]} : vector<32x256xbf16> to vector<16x32xbf16>
    "tpu.trace_start"() <{level = 10 : i32, message = "qd,kd->qk"}> : () -> ()
    %cst_49 = arith.constant dense<0.000000e+00> : vector<16x16xf32>
    %148 = tpu.matmul %145, %146, %cst_49 {dimension_numbers = #tpu.dot_dimension_numbers<[1], [1], [0], [0], [0, 0, 1, 0], [], []>} : vector<16x32xbf16>, vector<16x32xbf16>, vector<16x16xf32> -> vector<16x16xf32>
    "tpu.trace_stop"() : () -> ()
    %149 = arith.addf %148, %10 : vector<16x16xf32>
    %cst_50 = arith.constant dense<0xFF800000> : vector<16xf32>
    %150 = vector.multi_reduction <maximumf>, %149, %cst_50 [1] : vector<16x16xf32> to vector<16xf32>
    %151 = vector.shape_cast %150 : vector<16xf32> to vector<16x1xf32>
    %152 = vector.broadcast %151 : vector<16x1xf32> to vector<16x16xf32>
    %153 = arith.subf %149, %152 : vector<16x16xf32>
    %154 = math.exp %153 : vector<16x16xf32>
    %cst_51 = arith.constant dense<0.000000e+00> : vector<16xf32>
    %155 = vector.multi_reduction <add>, %154, %cst_51 [1] : vector<16x16xf32> to vector<16xf32>
    %156 = vector.shape_cast %155 : vector<16xf32> to vector<16x1xf32>
    %157 = tpu.reciprocal %156 {approx = true} : vector<16x1xf32> -> vector<16x1xf32>
    %158 = vector.broadcast %157 : vector<16x1xf32> to vector<16x16xf32>
    %159 = arith.mulf %154, %158 : vector<16x16xf32>
    %160 = arith.truncf %159 : vector<16x16xf32> to vector<16x16xbf16>
    %cst_52 = arith.constant dense<0.000000e+00> : vector<16x32xf32>
    %161 = tpu.matmul %160, %147, %cst_52 {dimension_numbers = #tpu.dot_dimension_numbers<[1], [0], [0], [1], [0, 0, 1, 1], [], []>} : vector<16x16xbf16>, vector<16x32xbf16>, vector<16x32xf32> -> vector<16x32xf32>
    %162 = tpu.concatenate %110, %127, %144, %161 in 1 : vector<16x32xf32>, vector<16x32xf32>, vector<16x32xf32>, vector<16x32xf32> -> vector<16x128xf32>
    %163 = tpu.concatenate %93, %162 in 0 : vector<16x128xf32>, vector<16x128xf32> -> vector<32x128xf32>
    %164 = arith.truncf %163 : vector<32x128xf32> to vector<32x128xbf16>
    %c0_53 = arith.constant 0 : index
    %c0_54 = arith.constant 0 : index
    %165 = vector.load %arg7[%c0_53, %c0_54] : memref<128x128xbf16, #tpu.memory_space<vmem>>, vector<128x128xbf16>
    %cst_55 = arith.constant dense<0.000000e+00> : vector<32x128xf32>
    %166 = tpu.matmul %164, %165, %cst_55 {dimension_numbers = #tpu.dot_dimension_numbers<[1], [0], [0], [1], [0, 0, 1, 1], [], []>} : vector<32x128xbf16>, vector<128x128xbf16>, vector<32x128xf32> -> vector<32x128xf32>
    %c0_56 = arith.constant 0 : index
    %c0_57 = arith.constant 0 : index
    %167 = vector.load %arg8[%c0_56, %c0_57] : memref<1x128xf32, #tpu.memory_space<vmem>>, vector<1x128xf32>
    %168 = vector.broadcast %167 : vector<1x128xf32> to vector<32x128xf32>
    %169 = arith.addf %166, %168 : vector<32x128xf32>
    %170 = arith.addf %0, %169 : vector<32x128xf32>
    %171 = vector.extract_strided_slice %3 {offsets = [0, 0], sizes = [1, 128], strides = [1, 1]} : vector<3x128xf32> to vector<1x128xf32>
    %172 = vector.extract_strided_slice %4 {offsets = [0, 0], sizes = [1, 128], strides = [1, 1]} : vector<3x128xf32> to vector<1x128xf32>
    %cst_58 = arith.constant dense<0.000000e+00> : vector<32xf32>
    %173 = vector.multi_reduction <add>, %170, %cst_58 [1] : vector<32x128xf32> to vector<32xf32>
    %174 = vector.shape_cast %173 : vector<32xf32> to vector<32x1xf32>
    %cst_59 = arith.constant 1.280000e+02 : f32
    %175 = vector.broadcast %cst_59 : f32 to vector<32x1xf32>
    %176 = arith.divf %174, %175 : vector<32x1xf32>
    %177 = vector.broadcast %176 : vector<32x1xf32> to vector<32x128xf32>
    %178 = arith.subf %170, %177 : vector<32x128xf32>
    %179 = arith.mulf %178, %178 : vector<32x128xf32>
    %cst_60 = arith.constant dense<0.000000e+00> : vector<32xf32>
    %180 = vector.multi_reduction <add>, %179, %cst_60 [1] : vector<32x128xf32> to vector<32xf32>
    %181 = vector.shape_cast %180 : vector<32xf32> to vector<32x1xf32>
    %cst_61 = arith.constant 1.280000e+02 : f32
    %182 = vector.broadcast %cst_61 : f32 to vector<32x1xf32>
    %183 = arith.divf %181, %182 : vector<32x1xf32>
    %184 = vector.broadcast %176 : vector<32x1xf32> to vector<32x128xf32>
    %185 = arith.subf %170, %184 : vector<32x128xf32>
    %cst_62 = arith.constant 9.99999974E-6 : f32
    %186 = vector.broadcast %cst_62 : f32 to vector<32x1xf32>
    %187 = arith.addf %183, %186 : vector<32x1xf32>
    %188 = math.rsqrt %187 : vector<32x1xf32>
    %189 = vector.broadcast %188 : vector<32x1xf32> to vector<32x128xf32>
    %190 = arith.mulf %185, %189 : vector<32x128xf32>
    %191 = vector.broadcast %171 : vector<1x128xf32> to vector<32x128xf32>
    %192 = arith.mulf %190, %191 : vector<32x128xf32>
    %193 = vector.broadcast %172 : vector<1x128xf32> to vector<32x128xf32>
    %194 = arith.addf %192, %193 : vector<32x128xf32>
    %195 = arith.truncf %194 : vector<32x128xf32> to vector<32x128xbf16>
    %c0_63 = arith.constant 0 : index
    %c0_64 = arith.constant 0 : index
    %196 = vector.load %arg9[%c0_63, %c0_64] : memref<128x128xbf16, #tpu.memory_space<vmem>>, vector<128x128xbf16>
    %cst_65 = arith.constant dense<0.000000e+00> : vector<32x128xf32>
    %197 = tpu.matmul %195, %196, %cst_65 {dimension_numbers = #tpu.dot_dimension_numbers<[1], [0], [0], [1], [0, 0, 1, 1], [], []>} : vector<32x128xbf16>, vector<128x128xbf16>, vector<32x128xf32> -> vector<32x128xf32>
    %c0_66 = arith.constant 0 : index
    %c0_67 = arith.constant 0 : index
    %198 = vector.load %arg10[%c0_66, %c0_67] : memref<1x128xf32, #tpu.memory_space<vmem>>, vector<1x128xf32>
    %199 = vector.broadcast %198 : vector<1x128xf32> to vector<32x128xf32>
    %200 = arith.addf %197, %199 : vector<32x128xf32>
    %201 = arith.truncf %1 : vector<32x128xf32> to vector<32x128xbf16>
    %c0_68 = arith.constant 0 : index
    %c0_69 = arith.constant 0 : index
    %202 = vector.load %arg11[%c0_68, %c0_69] : memref<128x256xbf16, #tpu.memory_space<vmem>>, vector<128x256xbf16>
    %cst_70 = arith.constant dense<0.000000e+00> : vector<32x256xf32>
    %203 = tpu.matmul %201, %202, %cst_70 {dimension_numbers = #tpu.dot_dimension_numbers<[1], [0], [0], [1], [0, 0, 1, 1], [], []>} : vector<32x128xbf16>, vector<128x256xbf16>, vector<32x256xf32> -> vector<32x256xf32>
    %c0_71 = arith.constant 0 : index
    %c0_72 = arith.constant 0 : index
    %204 = vector.load %arg12[%c0_71, %c0_72] : memref<1x256xf32, #tpu.memory_space<vmem>>, vector<1x256xf32>
    %205 = vector.broadcast %204 : vector<1x256xf32> to vector<32x256xf32>
    %206 = arith.addf %203, %205 : vector<32x256xf32>
    %207 = arith.truncf %200 : vector<32x128xf32> to vector<32x128xbf16>
    %208 = arith.truncf %206 : vector<32x256xf32> to vector<32x256xbf16>
    %209 = vector.extract_strided_slice %2 {offsets = [0, 0, 0], sizes = [1, 1, 16], strides = [1, 1, 1]} : vector<2x1x16xf32> to vector<1x1x16xf32>
    %210 = vector.shape_cast %209 : vector<1x1x16xf32> to vector<1x16xf32>
    %211 = vector.extract_strided_slice %207 {offsets = [0, 0], sizes = [16, 32], strides = [1, 1]} : vector<32x128xbf16> to vector<16x32xbf16>
    %212 = vector.extract_strided_slice %208 {offsets = [0, 0], sizes = [16, 32], strides = [1, 1]} : vector<32x256xbf16> to vector<16x32xbf16>
    %213 = vector.extract_strided_slice %208 {offsets = [0, 128], sizes = [16, 32], strides = [1, 1]} : vector<32x256xbf16> to vector<16x32xbf16>
    "tpu.trace_start"() <{level = 10 : i32, message = "qd,kd->qk"}> : () -> ()
    %cst_73 = arith.constant dense<0.000000e+00> : vector<16x16xf32>
    %214 = tpu.matmul %211, %212, %cst_73 {dimension_numbers = #tpu.dot_dimension_numbers<[1], [1], [0], [0], [0, 0, 1, 0], [], []>} : vector<16x32xbf16>, vector<16x32xbf16>, vector<16x16xf32> -> vector<16x16xf32>
    "tpu.trace_stop"() : () -> ()
    %215 = vector.broadcast %210 : vector<1x16xf32> to vector<16x16xf32>
    %216 = arith.addf %214, %215 : vector<16x16xf32>
    %cst_74 = arith.constant dense<0xFF800000> : vector<16xf32>
    %217 = vector.multi_reduction <maximumf>, %216, %cst_74 [1] : vector<16x16xf32> to vector<16xf32>
    %218 = vector.shape_cast %217 : vector<16xf32> to vector<16x1xf32>
    %219 = vector.broadcast %218 : vector<16x1xf32> to vector<16x16xf32>
    %220 = arith.subf %216, %219 : vector<16x16xf32>
    %221 = math.exp %220 : vector<16x16xf32>
    %cst_75 = arith.constant dense<0.000000e+00> : vector<16xf32>
    %222 = vector.multi_reduction <add>, %221, %cst_75 [1] : vector<16x16xf32> to vector<16xf32>
    %223 = vector.shape_cast %222 : vector<16xf32> to vector<16x1xf32>
    %224 = tpu.reciprocal %223 {approx = true} : vector<16x1xf32> -> vector<16x1xf32>
    %225 = vector.broadcast %224 : vector<16x1xf32> to vector<16x16xf32>
    %226 = arith.mulf %221, %225 : vector<16x16xf32>
    %227 = arith.truncf %226 : vector<16x16xf32> to vector<16x16xbf16>
    %cst_76 = arith.constant dense<0.000000e+00> : vector<16x32xf32>
    %228 = tpu.matmul %227, %213, %cst_76 {dimension_numbers = #tpu.dot_dimension_numbers<[1], [0], [0], [1], [0, 0, 1, 1], [], []>} : vector<16x16xbf16>, vector<16x32xbf16>, vector<16x32xf32> -> vector<16x32xf32>
    %229 = vector.extract_strided_slice %207 {offsets = [0, 32], sizes = [16, 32], strides = [1, 1]} : vector<32x128xbf16> to vector<16x32xbf16>
    %230 = vector.extract_strided_slice %208 {offsets = [0, 32], sizes = [16, 32], strides = [1, 1]} : vector<32x256xbf16> to vector<16x32xbf16>
    %231 = vector.extract_strided_slice %208 {offsets = [0, 160], sizes = [16, 32], strides = [1, 1]} : vector<32x256xbf16> to vector<16x32xbf16>
    "tpu.trace_start"() <{level = 10 : i32, message = "qd,kd->qk"}> : () -> ()
    %cst_77 = arith.constant dense<0.000000e+00> : vector<16x16xf32>
    %232 = tpu.matmul %229, %230, %cst_77 {dimension_numbers = #tpu.dot_dimension_numbers<[1], [1], [0], [0], [0, 0, 1, 0], [], []>} : vector<16x32xbf16>, vector<16x32xbf16>, vector<16x16xf32> -> vector<16x16xf32>
    "tpu.trace_stop"() : () -> ()
    %233 = vector.broadcast %210 : vector<1x16xf32> to vector<16x16xf32>
    %234 = arith.addf %232, %233 : vector<16x16xf32>
    %cst_78 = arith.constant dense<0xFF800000> : vector<16xf32>
    %235 = vector.multi_reduction <maximumf>, %234, %cst_78 [1] : vector<16x16xf32> to vector<16xf32>
    %236 = vector.shape_cast %235 : vector<16xf32> to vector<16x1xf32>
    %237 = vector.broadcast %236 : vector<16x1xf32> to vector<16x16xf32>
    %238 = arith.subf %234, %237 : vector<16x16xf32>
    %239 = math.exp %238 : vector<16x16xf32>
    %cst_79 = arith.constant dense<0.000000e+00> : vector<16xf32>
    %240 = vector.multi_reduction <add>, %239, %cst_79 [1] : vector<16x16xf32> to vector<16xf32>
    %241 = vector.shape_cast %240 : vector<16xf32> to vector<16x1xf32>
    %242 = tpu.reciprocal %241 {approx = true} : vector<16x1xf32> -> vector<16x1xf32>
    %243 = vector.broadcast %242 : vector<16x1xf32> to vector<16x16xf32>
    %244 = arith.mulf %239, %243 : vector<16x16xf32>
    %245 = arith.truncf %244 : vector<16x16xf32> to vector<16x16xbf16>
    %cst_80 = arith.constant dense<0.000000e+00> : vector<16x32xf32>
    %246 = tpu.matmul %245, %231, %cst_80 {dimension_numbers = #tpu.dot_dimension_numbers<[1], [0], [0], [1], [0, 0, 1, 1], [], []>} : vector<16x16xbf16>, vector<16x32xbf16>, vector<16x32xf32> -> vector<16x32xf32>
    %247 = vector.extract_strided_slice %207 {offsets = [0, 64], sizes = [16, 32], strides = [1, 1]} : vector<32x128xbf16> to vector<16x32xbf16>
    %248 = vector.extract_strided_slice %208 {offsets = [0, 64], sizes = [16, 32], strides = [1, 1]} : vector<32x256xbf16> to vector<16x32xbf16>
    %249 = vector.extract_strided_slice %208 {offsets = [0, 192], sizes = [16, 32], strides = [1, 1]} : vector<32x256xbf16> to vector<16x32xbf16>
    "tpu.trace_start"() <{level = 10 : i32, message = "qd,kd->qk"}> : () -> ()
    %cst_81 = arith.constant dense<0.000000e+00> : vector<16x16xf32>
    %250 = tpu.matmul %247, %248, %cst_81 {dimension_numbers = #tpu.dot_dimension_numbers<[1], [1], [0], [0], [0, 0, 1, 0], [], []>} : vector<16x32xbf16>, vector<16x32xbf16>, vector<16x16xf32> -> vector<16x16xf32>
    "tpu.trace_stop"() : () -> ()
    %251 = vector.broadcast %210 : vector<1x16xf32> to vector<16x16xf32>
    %252 = arith.addf %250, %251 : vector<16x16xf32>
    %cst_82 = arith.constant dense<0xFF800000> : vector<16xf32>
    %253 = vector.multi_reduction <maximumf>, %252, %cst_82 [1] : vector<16x16xf32> to vector<16xf32>
    %254 = vector.shape_cast %253 : vector<16xf32> to vector<16x1xf32>
    %255 = vector.broadcast %254 : vector<16x1xf32> to vector<16x16xf32>
    %256 = arith.subf %252, %255 : vector<16x16xf32>
    %257 = math.exp %256 : vector<16x16xf32>
    %cst_83 = arith.constant dense<0.000000e+00> : vector<16xf32>
    %258 = vector.multi_reduction <add>, %257, %cst_83 [1] : vector<16x16xf32> to vector<16xf32>
    %259 = vector.shape_cast %258 : vector<16xf32> to vector<16x1xf32>
    %260 = tpu.reciprocal %259 {approx = true} : vector<16x1xf32> -> vector<16x1xf32>
    %261 = vector.broadcast %260 : vector<16x1xf32> to vector<16x16xf32>
    %262 = arith.mulf %257, %261 : vector<16x16xf32>
    %263 = arith.truncf %262 : vector<16x16xf32> to vector<16x16xbf16>
    %cst_84 = arith.constant dense<0.000000e+00> : vector<16x32xf32>
    %264 = tpu.matmul %263, %249, %cst_84 {dimension_numbers = #tpu.dot_dimension_numbers<[1], [0], [0], [1], [0, 0, 1, 1], [], []>} : vector<16x16xbf16>, vector<16x32xbf16>, vector<16x32xf32> -> vector<16x32xf32>
    %265 = vector.extract_strided_slice %207 {offsets = [0, 96], sizes = [16, 32], strides = [1, 1]} : vector<32x128xbf16> to vector<16x32xbf16>
    %266 = vector.extract_strided_slice %208 {offsets = [0, 96], sizes = [16, 32], strides = [1, 1]} : vector<32x256xbf16> to vector<16x32xbf16>
    %267 = vector.extract_strided_slice %208 {offsets = [0, 224], sizes = [16, 32], strides = [1, 1]} : vector<32x256xbf16> to vector<16x32xbf16>
    "tpu.trace_start"() <{level = 10 : i32, message = "qd,kd->qk"}> : () -> ()
    %cst_85 = arith.constant dense<0.000000e+00> : vector<16x16xf32>
    %268 = tpu.matmul %265, %266, %cst_85 {dimension_numbers = #tpu.dot_dimension_numbers<[1], [1], [0], [0], [0, 0, 1, 0], [], []>} : vector<16x32xbf16>, vector<16x32xbf16>, vector<16x16xf32> -> vector<16x16xf32>
    "tpu.trace_stop"() : () -> ()
    %269 = vector.broadcast %210 : vector<1x16xf32> to vector<16x16xf32>
    %270 = arith.addf %268, %269 : vector<16x16xf32>
    %cst_86 = arith.constant dense<0xFF800000> : vector<16xf32>
    %271 = vector.multi_reduction <maximumf>, %270, %cst_86 [1] : vector<16x16xf32> to vector<16xf32>
    %272 = vector.shape_cast %271 : vector<16xf32> to vector<16x1xf32>
    %273 = vector.broadcast %272 : vector<16x1xf32> to vector<16x16xf32>
    %274 = arith.subf %270, %273 : vector<16x16xf32>
    %275 = math.exp %274 : vector<16x16xf32>
    %cst_87 = arith.constant dense<0.000000e+00> : vector<16xf32>
    %276 = vector.multi_reduction <add>, %275, %cst_87 [1] : vector<16x16xf32> to vector<16xf32>
    %277 = vector.shape_cast %276 : vector<16xf32> to vector<16x1xf32>
    %278 = tpu.reciprocal %277 {approx = true} : vector<16x1xf32> -> vector<16x1xf32>
    %279 = vector.broadcast %278 : vector<16x1xf32> to vector<16x16xf32>
    %280 = arith.mulf %275, %279 : vector<16x16xf32>
    %281 = arith.truncf %280 : vector<16x16xf32> to vector<16x16xbf16>
    %cst_88 = arith.constant dense<0.000000e+00> : vector<16x32xf32>
    %282 = tpu.matmul %281, %267, %cst_88 {dimension_numbers = #tpu.dot_dimension_numbers<[1], [0], [0], [1], [0, 0, 1, 1], [], []>} : vector<16x16xbf16>, vector<16x32xbf16>, vector<16x32xf32> -> vector<16x32xf32>
    %283 = tpu.concatenate %228, %246, %264, %282 in 1 : vector<16x32xf32>, vector<16x32xf32>, vector<16x32xf32>, vector<16x32xf32> -> vector<16x128xf32>
    %284 = vector.extract_strided_slice %2 {offsets = [1, 0, 0], sizes = [1, 1, 16], strides = [1, 1, 1]} : vector<2x1x16xf32> to vector<1x1x16xf32>
    %285 = vector.shape_cast %284 : vector<1x1x16xf32> to vector<1x16xf32>
    %286 = vector.extract_strided_slice %207 {offsets = [16, 0], sizes = [16, 32], strides = [1, 1]} : vector<32x128xbf16> to vector<16x32xbf16>
    %287 = vector.extract_strided_slice %208 {offsets = [16, 0], sizes = [16, 32], strides = [1, 1]} : vector<32x256xbf16> to vector<16x32xbf16>
    %288 = vector.extract_strided_slice %208 {offsets = [16, 128], sizes = [16, 32], strides = [1, 1]} : vector<32x256xbf16> to vector<16x32xbf16>
    "tpu.trace_start"() <{level = 10 : i32, message = "qd,kd->qk"}> : () -> ()
    %cst_89 = arith.constant dense<0.000000e+00> : vector<16x16xf32>
    %289 = tpu.matmul %286, %287, %cst_89 {dimension_numbers = #tpu.dot_dimension_numbers<[1], [1], [0], [0], [0, 0, 1, 0], [], []>} : vector<16x32xbf16>, vector<16x32xbf16>, vector<16x16xf32> -> vector<16x16xf32>
    "tpu.trace_stop"() : () -> ()
    %290 = vector.broadcast %285 : vector<1x16xf32> to vector<16x16xf32>
    %291 = arith.addf %289, %290 : vector<16x16xf32>
    %cst_90 = arith.constant dense<0xFF800000> : vector<16xf32>
    %292 = vector.multi_reduction <maximumf>, %291, %cst_90 [1] : vector<16x16xf32> to vector<16xf32>
    %293 = vector.shape_cast %292 : vector<16xf32> to vector<16x1xf32>
    %294 = vector.broadcast %293 : vector<16x1xf32> to vector<16x16xf32>
    %295 = arith.subf %291, %294 : vector<16x16xf32>
    %296 = math.exp %295 : vector<16x16xf32>
    %cst_91 = arith.constant dense<0.000000e+00> : vector<16xf32>
    %297 = vector.multi_reduction <add>, %296, %cst_91 [1] : vector<16x16xf32> to vector<16xf32>
    %298 = vector.shape_cast %297 : vector<16xf32> to vector<16x1xf32>
    %299 = tpu.reciprocal %298 {approx = true} : vector<16x1xf32> -> vector<16x1xf32>
    %300 = vector.broadcast %299 : vector<16x1xf32> to vector<16x16xf32>
    %301 = arith.mulf %296, %300 : vector<16x16xf32>
    %302 = arith.truncf %301 : vector<16x16xf32> to vector<16x16xbf16>
    %cst_92 = arith.constant dense<0.000000e+00> : vector<16x32xf32>
    %303 = tpu.matmul %302, %288, %cst_92 {dimension_numbers = #tpu.dot_dimension_numbers<[1], [0], [0], [1], [0, 0, 1, 1], [], []>} : vector<16x16xbf16>, vector<16x32xbf16>, vector<16x32xf32> -> vector<16x32xf32>
    %304 = vector.extract_strided_slice %207 {offsets = [16, 32], sizes = [16, 32], strides = [1, 1]} : vector<32x128xbf16> to vector<16x32xbf16>
    %305 = vector.extract_strided_slice %208 {offsets = [16, 32], sizes = [16, 32], strides = [1, 1]} : vector<32x256xbf16> to vector<16x32xbf16>
    %306 = vector.extract_strided_slice %208 {offsets = [16, 160], sizes = [16, 32], strides = [1, 1]} : vector<32x256xbf16> to vector<16x32xbf16>
    "tpu.trace_start"() <{level = 10 : i32, message = "qd,kd->qk"}> : () -> ()
    %cst_93 = arith.constant dense<0.000000e+00> : vector<16x16xf32>
    %307 = tpu.matmul %304, %305, %cst_93 {dimension_numbers = #tpu.dot_dimension_numbers<[1], [1], [0], [0], [0, 0, 1, 0], [], []>} : vector<16x32xbf16>, vector<16x32xbf16>, vector<16x16xf32> -> vector<16x16xf32>
    "tpu.trace_stop"() : () -> ()
    %308 = vector.broadcast %285 : vector<1x16xf32> to vector<16x16xf32>
    %309 = arith.addf %307, %308 : vector<16x16xf32>
    %cst_94 = arith.constant dense<0xFF800000> : vector<16xf32>
    %310 = vector.multi_reduction <maximumf>, %309, %cst_94 [1] : vector<16x16xf32> to vector<16xf32>
    %311 = vector.shape_cast %310 : vector<16xf32> to vector<16x1xf32>
    %312 = vector.broadcast %311 : vector<16x1xf32> to vector<16x16xf32>
    %313 = arith.subf %309, %312 : vector<16x16xf32>
    %314 = math.exp %313 : vector<16x16xf32>
    %cst_95 = arith.constant dense<0.000000e+00> : vector<16xf32>
    %315 = vector.multi_reduction <add>, %314, %cst_95 [1] : vector<16x16xf32> to vector<16xf32>
    %316 = vector.shape_cast %315 : vector<16xf32> to vector<16x1xf32>
    %317 = tpu.reciprocal %316 {approx = true} : vector<16x1xf32> -> vector<16x1xf32>
    %318 = vector.broadcast %317 : vector<16x1xf32> to vector<16x16xf32>
    %319 = arith.mulf %314, %318 : vector<16x16xf32>
    %320 = arith.truncf %319 : vector<16x16xf32> to vector<16x16xbf16>
    %cst_96 = arith.constant dense<0.000000e+00> : vector<16x32xf32>
    %321 = tpu.matmul %320, %306, %cst_96 {dimension_numbers = #tpu.dot_dimension_numbers<[1], [0], [0], [1], [0, 0, 1, 1], [], []>} : vector<16x16xbf16>, vector<16x32xbf16>, vector<16x32xf32> -> vector<16x32xf32>
    %322 = vector.extract_strided_slice %207 {offsets = [16, 64], sizes = [16, 32], strides = [1, 1]} : vector<32x128xbf16> to vector<16x32xbf16>
    %323 = vector.extract_strided_slice %208 {offsets = [16, 64], sizes = [16, 32], strides = [1, 1]} : vector<32x256xbf16> to vector<16x32xbf16>
    %324 = vector.extract_strided_slice %208 {offsets = [16, 192], sizes = [16, 32], strides = [1, 1]} : vector<32x256xbf16> to vector<16x32xbf16>
    "tpu.trace_start"() <{level = 10 : i32, message = "qd,kd->qk"}> : () -> ()
    %cst_97 = arith.constant dense<0.000000e+00> : vector<16x16xf32>
    %325 = tpu.matmul %322, %323, %cst_97 {dimension_numbers = #tpu.dot_dimension_numbers<[1], [1], [0], [0], [0, 0, 1, 0], [], []>} : vector<16x32xbf16>, vector<16x32xbf16>, vector<16x16xf32> -> vector<16x16xf32>
    "tpu.trace_stop"() : () -> ()
    %326 = vector.broadcast %285 : vector<1x16xf32> to vector<16x16xf32>
    %327 = arith.addf %325, %326 : vector<16x16xf32>
    %cst_98 = arith.constant dense<0xFF800000> : vector<16xf32>
    %328 = vector.multi_reduction <maximumf>, %327, %cst_98 [1] : vector<16x16xf32> to vector<16xf32>
    %329 = vector.shape_cast %328 : vector<16xf32> to vector<16x1xf32>
    %330 = vector.broadcast %329 : vector<16x1xf32> to vector<16x16xf32>
    %331 = arith.subf %327, %330 : vector<16x16xf32>
    %332 = math.exp %331 : vector<16x16xf32>
    %cst_99 = arith.constant dense<0.000000e+00> : vector<16xf32>
    %333 = vector.multi_reduction <add>, %332, %cst_99 [1] : vector<16x16xf32> to vector<16xf32>
    %334 = vector.shape_cast %333 : vector<16xf32> to vector<16x1xf32>
    %335 = tpu.reciprocal %334 {approx = true} : vector<16x1xf32> -> vector<16x1xf32>
    %336 = vector.broadcast %335 : vector<16x1xf32> to vector<16x16xf32>
    %337 = arith.mulf %332, %336 : vector<16x16xf32>
    %338 = arith.truncf %337 : vector<16x16xf32> to vector<16x16xbf16>
    %cst_100 = arith.constant dense<0.000000e+00> : vector<16x32xf32>
    %339 = tpu.matmul %338, %324, %cst_100 {dimension_numbers = #tpu.dot_dimension_numbers<[1], [0], [0], [1], [0, 0, 1, 1], [], []>} : vector<16x16xbf16>, vector<16x32xbf16>, vector<16x32xf32> -> vector<16x32xf32>
    %340 = vector.extract_strided_slice %207 {offsets = [16, 96], sizes = [16, 32], strides = [1, 1]} : vector<32x128xbf16> to vector<16x32xbf16>
    %341 = vector.extract_strided_slice %208 {offsets = [16, 96], sizes = [16, 32], strides = [1, 1]} : vector<32x256xbf16> to vector<16x32xbf16>
    %342 = vector.extract_strided_slice %208 {offsets = [16, 224], sizes = [16, 32], strides = [1, 1]} : vector<32x256xbf16> to vector<16x32xbf16>
    "tpu.trace_start"() <{level = 10 : i32, message = "qd,kd->qk"}> : () -> ()
    %cst_101 = arith.constant dense<0.000000e+00> : vector<16x16xf32>
    %343 = tpu.matmul %340, %341, %cst_101 {dimension_numbers = #tpu.dot_dimension_numbers<[1], [1], [0], [0], [0, 0, 1, 0], [], []>} : vector<16x32xbf16>, vector<16x32xbf16>, vector<16x16xf32> -> vector<16x16xf32>
    "tpu.trace_stop"() : () -> ()
    %344 = vector.broadcast %285 : vector<1x16xf32> to vector<16x16xf32>
    %345 = arith.addf %343, %344 : vector<16x16xf32>
    %cst_102 = arith.constant dense<0xFF800000> : vector<16xf32>
    %346 = vector.multi_reduction <maximumf>, %345, %cst_102 [1] : vector<16x16xf32> to vector<16xf32>
    %347 = vector.shape_cast %346 : vector<16xf32> to vector<16x1xf32>
    %348 = vector.broadcast %347 : vector<16x1xf32> to vector<16x16xf32>
    %349 = arith.subf %345, %348 : vector<16x16xf32>
    %350 = math.exp %349 : vector<16x16xf32>
    %cst_103 = arith.constant dense<0.000000e+00> : vector<16xf32>
    %351 = vector.multi_reduction <add>, %350, %cst_103 [1] : vector<16x16xf32> to vector<16xf32>
    %352 = vector.shape_cast %351 : vector<16xf32> to vector<16x1xf32>
    %353 = tpu.reciprocal %352 {approx = true} : vector<16x1xf32> -> vector<16x1xf32>
    %354 = vector.broadcast %353 : vector<16x1xf32> to vector<16x16xf32>
    %355 = arith.mulf %350, %354 : vector<16x16xf32>
    %356 = arith.truncf %355 : vector<16x16xf32> to vector<16x16xbf16>
    %cst_104 = arith.constant dense<0.000000e+00> : vector<16x32xf32>
    %357 = tpu.matmul %356, %342, %cst_104 {dimension_numbers = #tpu.dot_dimension_numbers<[1], [0], [0], [1], [0, 0, 1, 1], [], []>} : vector<16x16xbf16>, vector<16x32xbf16>, vector<16x32xf32> -> vector<16x32xf32>
    %358 = tpu.concatenate %303, %321, %339, %357 in 1 : vector<16x32xf32>, vector<16x32xf32>, vector<16x32xf32>, vector<16x32xf32> -> vector<16x128xf32>
    %359 = tpu.concatenate %283, %358 in 0 : vector<16x128xf32>, vector<16x128xf32> -> vector<32x128xf32>
    %360 = arith.truncf %359 : vector<32x128xf32> to vector<32x128xbf16>
    %c0_105 = arith.constant 0 : index
    %c0_106 = arith.constant 0 : index
    %361 = vector.load %arg13[%c0_105, %c0_106] : memref<128x128xbf16, #tpu.memory_space<vmem>>, vector<128x128xbf16>
    %cst_107 = arith.constant dense<0.000000e+00> : vector<32x128xf32>
    %362 = tpu.matmul %360, %361, %cst_107 {dimension_numbers = #tpu.dot_dimension_numbers<[1], [0], [0], [1], [0, 0, 1, 1], [], []>} : vector<32x128xbf16>, vector<128x128xbf16>, vector<32x128xf32> -> vector<32x128xf32>
    %c0_108 = arith.constant 0 : index
    %c0_109 = arith.constant 0 : index
    %363 = vector.load %arg14[%c0_108, %c0_109] : memref<1x128xf32, #tpu.memory_space<vmem>>, vector<1x128xf32>
    %364 = vector.broadcast %363 : vector<1x128xf32> to vector<32x128xf32>
    %365 = arith.addf %362, %364 : vector<32x128xf32>
    %366 = arith.addf %194, %365 : vector<32x128xf32>
    %367 = vector.extract_strided_slice %3 {offsets = [1, 0], sizes = [1, 128], strides = [1, 1]} : vector<3x128xf32> to vector<1x128xf32>
    %368 = vector.extract_strided_slice %4 {offsets = [1, 0], sizes = [1, 128], strides = [1, 1]} : vector<3x128xf32> to vector<1x128xf32>
    %cst_110 = arith.constant dense<0.000000e+00> : vector<32xf32>
    %369 = vector.multi_reduction <add>, %366, %cst_110 [1] : vector<32x128xf32> to vector<32xf32>
    %370 = vector.shape_cast %369 : vector<32xf32> to vector<32x1xf32>
    %cst_111 = arith.constant 1.280000e+02 : f32
    %371 = vector.broadcast %cst_111 : f32 to vector<32x1xf32>
    %372 = arith.divf %370, %371 : vector<32x1xf32>
    %373 = vector.broadcast %372 : vector<32x1xf32> to vector<32x128xf32>
    %374 = arith.subf %366, %373 : vector<32x128xf32>
    %375 = arith.mulf %374, %374 : vector<32x128xf32>
    %cst_112 = arith.constant dense<0.000000e+00> : vector<32xf32>
    %376 = vector.multi_reduction <add>, %375, %cst_112 [1] : vector<32x128xf32> to vector<32xf32>
    %377 = vector.shape_cast %376 : vector<32xf32> to vector<32x1xf32>
    %cst_113 = arith.constant 1.280000e+02 : f32
    %378 = vector.broadcast %cst_113 : f32 to vector<32x1xf32>
    %379 = arith.divf %377, %378 : vector<32x1xf32>
    %380 = vector.broadcast %372 : vector<32x1xf32> to vector<32x128xf32>
    %381 = arith.subf %366, %380 : vector<32x128xf32>
    %cst_114 = arith.constant 9.99999974E-6 : f32
    %382 = vector.broadcast %cst_114 : f32 to vector<32x1xf32>
    %383 = arith.addf %379, %382 : vector<32x1xf32>
    %384 = math.rsqrt %383 : vector<32x1xf32>
    %385 = vector.broadcast %384 : vector<32x1xf32> to vector<32x128xf32>
    %386 = arith.mulf %381, %385 : vector<32x128xf32>
    %387 = vector.broadcast %367 : vector<1x128xf32> to vector<32x128xf32>
    %388 = arith.mulf %386, %387 : vector<32x128xf32>
    %389 = vector.broadcast %368 : vector<1x128xf32> to vector<32x128xf32>
    %390 = arith.addf %388, %389 : vector<32x128xf32>
    %391 = arith.truncf %390 : vector<32x128xf32> to vector<32x128xbf16>
    %c0_115 = arith.constant 0 : index
    %c0_116 = arith.constant 0 : index
    %392 = vector.load %arg15[%c0_115, %c0_116] : memref<128x256xbf16, #tpu.memory_space<vmem>>, vector<128x256xbf16>
    %cst_117 = arith.constant dense<0.000000e+00> : vector<32x256xf32>
    %393 = tpu.matmul %391, %392, %cst_117 {dimension_numbers = #tpu.dot_dimension_numbers<[1], [0], [0], [1], [0, 0, 1, 1], [], []>} : vector<32x128xbf16>, vector<128x256xbf16>, vector<32x256xf32> -> vector<32x256xf32>
    %c0_118 = arith.constant 0 : index
    %c0_119 = arith.constant 0 : index
    %394 = vector.load %arg16[%c0_118, %c0_119] : memref<1x256xf32, #tpu.memory_space<vmem>>, vector<1x256xf32>
    %395 = vector.broadcast %394 : vector<1x256xf32> to vector<32x256xf32>
    %396 = arith.addf %393, %395 : vector<32x256xf32>
    %cst_120 = arith.constant 0.000000e+00 : f32
    %397 = vector.broadcast %cst_120 : f32 to vector<32x256xf32>
    %398 = arith.maximumf %396, %397 : vector<32x256xf32>
    %399 = arith.truncf %398 : vector<32x256xf32> to vector<32x256xbf16>
    %c0_121 = arith.constant 0 : index
    %c0_122 = arith.constant 0 : index
    %400 = vector.load %arg17[%c0_121, %c0_122] : memref<256x128xbf16, #tpu.memory_space<vmem>>, vector<256x128xbf16>
    %cst_123 = arith.constant dense<0.000000e+00> : vector<32x128xf32>
    %401 = tpu.matmul %399, %400, %cst_123 {dimension_numbers = #tpu.dot_dimension_numbers<[1], [0], [0], [1], [0, 0, 1, 1], [], []>} : vector<32x256xbf16>, vector<256x128xbf16>, vector<32x128xf32> -> vector<32x128xf32>
    %c0_124 = arith.constant 0 : index
    %c0_125 = arith.constant 0 : index
    %402 = vector.load %arg18[%c0_124, %c0_125] : memref<1x128xf32, #tpu.memory_space<vmem>>, vector<1x128xf32>
    %403 = vector.broadcast %402 : vector<1x128xf32> to vector<32x128xf32>
    %404 = arith.addf %401, %403 : vector<32x128xf32>
    %405 = arith.addf %390, %404 : vector<32x128xf32>
    %406 = vector.extract_strided_slice %3 {offsets = [2, 0], sizes = [1, 128], strides = [1, 1]} : vector<3x128xf32> to vector<1x128xf32>
    %407 = vector.extract_strided_slice %4 {offsets = [2, 0], sizes = [1, 128], strides = [1, 1]} : vector<3x128xf32> to vector<1x128xf32>
    %cst_126 = arith.constant dense<0.000000e+00> : vector<32xf32>
    %408 = vector.multi_reduction <add>, %405, %cst_126 [1] : vector<32x128xf32> to vector<32xf32>
    %409 = vector.shape_cast %408 : vector<32xf32> to vector<32x1xf32>
    %cst_127 = arith.constant 1.280000e+02 : f32
    %410 = vector.broadcast %cst_127 : f32 to vector<32x1xf32>
    %411 = arith.divf %409, %410 : vector<32x1xf32>
    %412 = vector.broadcast %411 : vector<32x1xf32> to vector<32x128xf32>
    %413 = arith.subf %405, %412 : vector<32x128xf32>
    %414 = arith.mulf %413, %413 : vector<32x128xf32>
    %cst_128 = arith.constant dense<0.000000e+00> : vector<32xf32>
    %415 = vector.multi_reduction <add>, %414, %cst_128 [1] : vector<32x128xf32> to vector<32xf32>
    %416 = vector.shape_cast %415 : vector<32xf32> to vector<32x1xf32>
    %cst_129 = arith.constant 1.280000e+02 : f32
    %417 = vector.broadcast %cst_129 : f32 to vector<32x1xf32>
    %418 = arith.divf %416, %417 : vector<32x1xf32>
    %419 = vector.broadcast %411 : vector<32x1xf32> to vector<32x128xf32>
    %420 = arith.subf %405, %419 : vector<32x128xf32>
    %cst_130 = arith.constant 9.99999974E-6 : f32
    %421 = vector.broadcast %cst_130 : f32 to vector<32x1xf32>
    %422 = arith.addf %418, %421 : vector<32x1xf32>
    %423 = math.rsqrt %422 : vector<32x1xf32>
    %424 = vector.broadcast %423 : vector<32x1xf32> to vector<32x128xf32>
    %425 = arith.mulf %420, %424 : vector<32x128xf32>
    %426 = vector.broadcast %406 : vector<1x128xf32> to vector<32x128xf32>
    %427 = arith.mulf %425, %426 : vector<32x128xf32>
    %428 = vector.broadcast %407 : vector<1x128xf32> to vector<32x128xf32>
    %429 = arith.addf %427, %428 : vector<32x128xf32>
    %c0_131 = arith.constant 0 : index
    %c0_132 = arith.constant 0 : index
    %430 = vector.load %arg21[%c0_131, %c0_132] : memref<32x128xf32, #tpu.memory_space<vmem>>, vector<32x128xf32>
    tpu.vector_store %arg21[%c0_131, %c0_132], %429 {strides = array<i32>} : memref<32x128xf32, #tpu.memory_space<vmem>>, vector<32x128xf32>,
    return
  }
}

</mosaic_0001>

<llo_original>
// kernel: tpu_custom_call.1
$region0: #{tpu_custom_call.1}
  #allocation0 [shape = 'u32[]', space=smem, size = 0x4, offset = 0x4, fixed_abs, tag = 'smem constant byte address 0x4 - core index']
  #allocation1 [shape = 'u32[72,128]{1,0:T(1,128)}', space=vmem, size = 0x9000, scoped, tag = 'internal scratch']
  %s0 = inlined_call_operand.hbm [shape: f32[32,128], index: 0, kind: input, shape index: {}]
  %s1 = inlined_call_operand.hbm [shape: f32[32,128], index: 1, kind: input, shape index: {}]
  %s2 = inlined_call_operand.hbm [shape: f32[2,1,16], index: 2, kind: input, shape index: {}]
  %s3 = inlined_call_operand.hbm [shape: bf16[128,128], index: 3, kind: input, shape index: {}]
  %s4 = inlined_call_operand.hbm [shape: f32[1,128], index: 4, kind: input, shape index: {}]
  %s5 = inlined_call_operand.hbm [shape: bf16[128,256], index: 5, kind: input, shape index: {}]
  %s6 = inlined_call_operand.hbm [shape: f32[1,256], index: 6, kind: input, shape index: {}]
  %s7 = inlined_call_operand.hbm [shape: bf16[128,128], index: 7, kind: input, shape index: {}]
  %s8 = inlined_call_operand.hbm [shape: f32[1,128], index: 8, kind: input, shape index: {}]
  %s9 = inlined_call_operand.hbm [shape: bf16[128,128], index: 9, kind: input, shape index: {}]
  %s10 = inlined_call_operand.hbm [shape: f32[1,128], index: 10, kind: input, shape index: {}]
  %s11 = inlined_call_operand.hbm [shape: bf16[128,256], index: 11, kind: input, shape index: {}]
  %s12 = inlined_call_operand.vmem [shape: f32[1,256], index: 12, kind: input, shape index: {}]
  %s13 = inlined_call_operand.hbm [shape: bf16[128,128], index: 13, kind: input, shape index: {}]
  %s14 = inlined_call_operand.vmem [shape: f32[1,128], index: 14, kind: input, shape index: {}]
  %s15 = inlined_call_operand.hbm [shape: bf16[128,256], index: 15, kind: input, shape index: {}]
  %s16 = inlined_call_operand.vmem [shape: f32[1,256], index: 16, kind: input, shape index: {}]
  %s17 = inlined_call_operand.hbm [shape: bf16[256,128], index: 17, kind: input, shape index: {}]
  %s18 = inlined_call_operand.vmem [shape: f32[1,128], index: 18, kind: input, shape index: {}]
  %s19 = inlined_call_operand.vmem [shape: f32[3,128], index: 19, kind: input, shape index: {}]
  %s20 = inlined_call_operand.vmem [shape: f32[3,128], index: 20, kind: input, shape index: {}]
  %s21 = inlined_call_operand.hbm [shape: f32[32,128], index: 21, kind: output, shape index: {}]
  %s22 = sld [smem:[#allocation0]]
  $region154: #{tpu_custom_call.1} parent=0
    _
  %s24 = ssub.s32 1, %s22
  %s25 = scalar_select 0, %s24, %s22
  $region1: #{tpu_custom_call.1} parent=0
    #allocation2 [shape = 'u8[16384]{0}', space=vmem, size = 0x4000, scoped, tag = 'input window, operand 0, single buffered']
    #allocation3 [shape = 's32[1]{0}', space=sflag, size = 0x4, scoped, tag = 'scoped memory for tpu_custom_call.1']
    #allocation4 [shape = 's32[1]{0}', space=sflag, size = 0x4, scoped, tag = 'scoped memory for tpu_custom_call.1']
    #allocation5 [shape = 'u8[16384]{0}', space=vmem, size = 0x4000, scoped, tag = 'input window, operand 1, single buffered']
    #allocation6 [shape = 's32[1]{0}', space=sflag, size = 0x4, scoped, tag = 'scoped memory for tpu_custom_call.1']
    #allocation7 [shape = 'u8[1024]{0}', space=vmem, size = 0x400, scoped, tag = 'input window, operand 2, single buffered']
    #allocation8 [shape = 'u8[32768]{0}', space=vmem, size = 0x8000, scoped, tag = 'input window, operand 3, single buffered']
    #allocation9 [shape = 's32[1]{0}', space=sflag, size = 0x4, scoped, tag = 'scoped memory for tpu_custom_call.1']
    #allocation10 [shape = 'u8[512]{0}', space=vmem, size = 0x400, scoped, tag = 'input window, operand 4, single buffered']
    #allocation11 [shape = 'u8[65536]{0}', space=vmem, size = 0x10000, scoped, tag = 'input window, operand 5, single buffered']
    #allocation12 [shape = 's32[1]{0}', space=sflag, size = 0x4, scoped, tag = 'scoped memory for tpu_custom_call.1']
    #allocation13 [shape = 'u8[1024]{0}', space=vmem, size = 0x400, scoped, tag = 'input window, operand 6, single buffered']
    #allocation14 [shape = 'u8[32768]{0}', space=vmem, size = 0x8000, scoped, tag = 'input window, operand 7, single buffered']
    #allocation15 [shape = 's32[1]{0}', space=sflag, size = 0x4, scoped, tag = 'scoped memory for tpu_custom_call.1']
    #allocation16 [shape = 'u8[512]{0}', space=vmem, size = 0x400, scoped, tag = 'input window, operand 8, single buffered']
    #allocation17 [shape = 'u8[32768]{0}', space=vmem, size = 0x8000, scoped, tag = 'input window, operand 9, single buffered']
    #allocation18 [shape = 's32[1]{0}', space=sflag, size = 0x4, scoped, tag = 'scoped memory for tpu_custom_call.1']
    #allocation19 [shape = 'u8[512]{0}', space=vmem, size = 0x400, scoped, tag = 'input window, operand 10, single buffered']
    #allocation20 [shape = 'u8[65536]{0}', space=vmem, size = 0x10000, scoped, tag = 'input window, operand 11, single buffered']
    #allocation21 [shape = 's32[1]{0}', space=sflag, size = 0x4, scoped, tag = 'scoped memory for tpu_custom_call.1']
    #allocation22 [shape = 'u8[32768]{0}', space=vmem, size = 0x8000, scoped, tag = 'input window, operand 13, single buffered']
    #allocation23 [shape = 'u8[65536]{0}', space=vmem, size = 0x10000, scoped, tag = 'input window, operand 15, single buffered']
    #allocation24 [shape = 's32[1]{0}', space=sflag, size = 0x4, scoped, tag = 'scoped memory for tpu_custom_call.1']
    #allocation25 [shape = 'u8[65536]{0}', space=vmem, size = 0x10000, scoped, tag = 'input window, operand 17, single buffered']
    #allocation26 [shape = 'u8[16384]{0}', space=vmem, size = 0x4000, scoped, tag = 'output window, operand 0, single buffered']
    %26 = vsyncpa [#allocation3], 0
    %27 = vsyncpa [#allocation6], 0
    %28 = vsyncpa [#allocation9], 0
    %29 = vsyncpa [#allocation12], 0
    %30 = vsyncpa [#allocation15], 0
    %31 = vsyncpa [#allocation18], 0
    %32 = vsyncpa [#allocation21], 0
    %33 = vsyncpa [#allocation24], 0
    %34 = vsyncpa [#allocation4], 0
    // Predicated region
    $region2: #{tpu_custom_call.1} parent=1 // pred_check
      _
    $region3: #{tpu_custom_call.1} parent=1 // pred_check_branch
      %36 = sbr.rel (0) target = $region5
    $region4: #{tpu_custom_call.1} parent=1 // pred_region
      %38 = vsyncadd [#allocation3], 0
      %s39 = sshll.u32 %s0, 4
      %s40 = int_to_ptr.hbm [resolvable:$true] %s39
      %s41 = sshll.u32 [#allocation2], 4
      %s42 = int_to_ptr.vmem [resolvable:$true] %s41
      %47 = dma.hbm_to_vmem [thread:$0]  %s40, 512, %s42, [#allocation3], 128, 128, 8
    $region5: #{tpu_custom_call.1} parent=1 // pred_fallthru
      _
    // Predicated region
    $region6: #{tpu_custom_call.1} parent=1 // pred_check
      _
    $region7: #{tpu_custom_call.1} parent=1 // pred_check_branch
      %49 = sbr.rel (0) target = $region9
    $region8: #{tpu_custom_call.1} parent=1 // pred_region
      %51 = vsyncadd [#allocation6], 0
      %s52 = sshll.u32 %s1, 4
      %s53 = int_to_ptr.hbm [resolvable:$true] %s52
      %s54 = sshll.u32 [#allocation5], 4
      %s55 = int_to_ptr.vmem [resolvable:$true] %s54
      %60 = dma.hbm_to_vmem [thread:$0]  %s53, 512, %s55, [#allocation6], 128, 128, 8
    $region9: #{tpu_custom_call.1} parent=1 // pred_fallthru
      _
    // Predicated region
    $region10: #{tpu_custom_call.1} parent=1 // pred_check
      _
    $region11: #{tpu_custom_call.1} parent=1 // pred_check_branch
      %62 = sbr.rel (0) target = $region13
    $region12: #{tpu_custom_call.1} parent=1 // pred_region
      %64 = vsyncadd [#allocation6], 0
      %s65 = sshll.u32 %s2, 4
      %s66 = int_to_ptr.hbm [resolvable:$true] %s65
      %s67 = sshll.u32 [#allocation7], 4
      %s68 = int_to_ptr.vmem [resolvable:$true] %s67
      %73 = dma.hbm_to_vmem [thread:$0]  %s66, 32, %s68, [#allocation6], 16, 16, 1
    $region13: #{tpu_custom_call.1} parent=1 // pred_fallthru
      _
    // Predicated region
    $region14: #{tpu_custom_call.1} parent=1 // pred_check
      _
    $region15: #{tpu_custom_call.1} parent=1 // pred_check_branch
      %75 = sbr.rel (0) target = $region17
    $region16: #{tpu_custom_call.1} parent=1 // pred_region
      %77 = vsyncadd [#allocation9], 0
      %s78 = sshll.u32 %s3, 4
      %s79 = int_to_ptr.hbm [resolvable:$true] %s78
      %s80 = sshll.u32 [#allocation8], 4
      %s81 = int_to_ptr.vmem [resolvable:$true] %s80
      %86 = dma.hbm_to_vmem [thread:$0]  %s79, 1024, %s81, [#allocation9], 64, 64, 4
    $region17: #{tpu_custom_call.1} parent=1 // pred_fallthru
      _
    // Predicated region
    $region18: #{tpu_custom_call.1} parent=1 // pred_check
      _
    $region19: #{tpu_custom_call.1} parent=1 // pred_check_branch
      %88 = sbr.rel (0) target = $region21
    $region20: #{tpu_custom_call.1} parent=1 // pred_region
      %90 = vsyncadd [#allocation9], 0
      %s92 = sshll.u32 %s4, 4
      %s93 = int_to_ptr.hbm [resolvable:$true] %s92
      %s94 = sshll.u32 [#allocation10], 4
      %s95 = int_to_ptr.vmem [resolvable:$true] %s94
      %97 = dma.hbm_to_vmem [thread:$0]  %s93, 16, %s95, [#allocation9]
    $region21: #{tpu_custom_call.1} parent=1 // pred_fallthru
      _
    // Predicated region
    $region22: #{tpu_custom_call.1} parent=1 // pred_check
      _
    $region23: #{tpu_custom_call.1} parent=1 // pred_check_branch
      %99 = sbr.rel (0) target = $region25
    $region24: #{tpu_custom_call.1} parent=1 // pred_region
      %101 = vsyncadd [#allocation12], 0
      %s102 = sshll.u32 %s5, 4
      %s103 = int_to_ptr.hbm [resolvable:$true] %s102
      %s104 = sshll.u32 [#allocation11], 4
      %s105 = int_to_ptr.vmem [resolvable:$true] %s104
      %110 = dma.hbm_to_vmem [thread:$0]  %s103, 2048, %s105, [#allocation12], 128, 128, 8
    $region25: #{tpu_custom_call.1} parent=1 // pred_fallthru
      _
    // Predicated region
    $region26: #{tpu_custom_call.1} parent=1 // pred_check
      _
    $region27: #{tpu_custom_call.1} parent=1 // pred_check_branch
      %112 = sbr.rel (0) target = $region29
    $region28: #{tpu_custom_call.1} parent=1 // pred_region
      %114 = vsyncadd [#allocation12], 0
      %s116 = sshll.u32 %s6, 4
      %s117 = int_to_ptr.hbm [resolvable:$true] %s116
      %s118 = sshll.u32 [#allocation13], 4
      %s119 = int_to_ptr.vmem [resolvable:$true] %s118
      %121 = dma.hbm_to_vmem [thread:$0]  %s117, 32, %s119, [#allocation12]
    $region29: #{tpu_custom_call.1} parent=1 // pred_fallthru
      _
    // Predicated region
    $region30: #{tpu_custom_call.1} parent=1 // pred_check
      _
    $region31: #{tpu_custom_call.1} parent=1 // pred_check_branch
      %123 = sbr.rel (0) target = $region33
    $region32: #{tpu_custom_call.1} parent=1 // pred_region
      %125 = vsyncadd [#allocation15], 0
      %s126 = sshll.u32 %s7, 4
      %s127 = int_to_ptr.hbm [resolvable:$true] %s126
      %s128 = sshll.u32 [#allocation14], 4
      %s129 = int_to_ptr.vmem [resolvable:$true] %s128
      %134 = dma.hbm_to_vmem [thread:$0]  %s127, 1024, %s129, [#allocation15], 64, 64, 4
    $region33: #{tpu_custom_call.1} parent=1 // pred_fallthru
      _
    // Predicated region
    $region34: #{tpu_custom_call.1} parent=1 // pred_check
      _
    $region35: #{tpu_custom_call.1} parent=1 // pred_check_branch
      %136 = sbr.rel (0) target = $region37
    $region36: #{tpu_custom_call.1} parent=1 // pred_region
      %138 = vsyncadd [#allocation15], 0
      %s140 = sshll.u32 %s8, 4
      %s141 = int_to_ptr.hbm [resolvable:$true] %s140
      %s142 = sshll.u32 [#allocation16], 4
      %s143 = int_to_ptr.vmem [resolvable:$true] %s142
      %145 = dma.hbm_to_vmem [thread:$0]  %s141, 16, %s143, [#allocation15]
    $region37: #{tpu_custom_call.1} parent=1 // pred_fallthru
      _
    // Predicated region
    $region38: #{tpu_custom_call.1} parent=1 // pred_check
      _
    $region39: #{tpu_custom_call.1} parent=1 // pred_check_branch
      %147 = sbr.rel (0) target = $region41
    $region40: #{tpu_custom_call.1} parent=1 // pred_region
      %149 = vsyncadd [#allocation18], 0
      %s150 = sshll.u32 %s9, 4
      %s151 = int_to_ptr.hbm [resolvable:$true] %s150
      %s152 = sshll.u32 [#allocation17], 4
      %s153 = int_to_ptr.vmem [resolvable:$true] %s152
      %158 = dma.hbm_to_vmem [thread:$0]  %s151, 1024, %s153, [#allocation18], 64, 64, 4
    $region41: #{tpu_custom_call.1} parent=1 // pred_fallthru
      _
    // Predicated region
    $region42: #{tpu_custom_call.1} parent=1 // pred_check
      _
    $region43: #{tpu_custom_call.1} parent=1 // pred_check_branch
      %160 = sbr.rel (0) target = $region45
    $region44: #{tpu_custom_call.1} parent=1 // pred_region
      %162 = vsyncadd [#allocation18], 0
      %s164 = sshll.u32 %s10, 4
      %s165 = int_to_ptr.hbm [resolvable:$true] %s164
      %s166 = sshll.u32 [#allocation19], 4
      %s167 = int_to_ptr.vmem [resolvable:$true] %s166
      %169 = dma.hbm_to_vmem [thread:$0]  %s165, 16, %s167, [#allocation18]
    $region45: #{tpu_custom_call.1} parent=1 // pred_fallthru
      _
    // Predicated region
    $region46: #{tpu_custom_call.1} parent=1 // pred_check
      _
    $region47: #{tpu_custom_call.1} parent=1 // pred_check_branch
      %171 = sbr.rel (0) target = $region49
    $region48: #{tpu_custom_call.1} parent=1 // pred_region
      %173 = vsyncadd [#allocation21], 0
      %s174 = sshll.u32 %s11, 4
      %s175 = int_to_ptr.hbm [resolvable:$true] %s174
      %s176 = sshll.u32 [#allocation20], 4
      %s177 = int_to_ptr.vmem [resolvable:$true] %s176
      %182 = dma.hbm_to_vmem [thread:$0]  %s175, 2048, %s177, [#allocation21], 128, 128, 8
    $region49: #{tpu_custom_call.1} parent=1 // pred_fallthru
      _
    // Predicated region
    $region50: #{tpu_custom_call.1} parent=1 // pred_check
      _
    $region51: #{tpu_custom_call.1} parent=1 // pred_check_branch
      %184 = sbr.rel (0) target = $region53
    $region52: #{tpu_custom_call.1} parent=1 // pred_region
      _
    $region53: #{tpu_custom_call.1} parent=1 // pred_fallthru
      _
    // Predicated region
    $region54: #{tpu_custom_call.1} parent=1 // pred_check
      _
    $region55: #{tpu_custom_call.1} parent=1 // pred_check_branch
      %186 = sbr.rel (0) target = $region57
    $region56: #{tpu_custom_call.1} parent=1 // pred_region
      %188 = vsyncadd [#allocation21], 0
      %s189 = sshll.u32 %s13, 4
      %s190 = int_to_ptr.hbm [resolvable:$true] %s189
      %s191 = sshll.u32 [#allocation22], 4
      %s192 = int_to_ptr.vmem [resolvable:$true] %s191
      %197 = dma.hbm_to_vmem [thread:$0]  %s190, 1024, %s192, [#allocation21], 64, 64, 4
    $region57: #{tpu_custom_call.1} parent=1 // pred_fallthru
      _
    // Predicated region
    $region58: #{tpu_custom_call.1} parent=1 // pred_check
      _
    $region59: #{tpu_custom_call.1} parent=1 // pred_check_branch
      %199 = sbr.rel (0) target = $region61
    $region60: #{tpu_custom_call.1} parent=1 // pred_region
      _
    $region61: #{tpu_custom_call.1} parent=1 // pred_fallthru
      _
    // Predicated region
    $region62: #{tpu_custom_call.1} parent=1 // pred_check
      _
    $region63: #{tpu_custom_call.1} parent=1 // pred_check_branch
      %201 = sbr.rel (0) target = $region65
    $region64: #{tpu_custom_call.1} parent=1 // pred_region
      %203 = vsyncadd [#allocation24], 0
      %s204 = sshll.u32 %s15, 4
      %s205 = int_to_ptr.hbm [resolvable:$true] %s204
      %s206 = sshll.u32 [#allocation23], 4
      %s207 = int_to_ptr.vmem [resolvable:$true] %s206
      %212 = dma.hbm_to_vmem [thread:$0]  %s205, 2048, %s207, [#allocation24], 128, 128, 8
    $region65: #{tpu_custom_call.1} parent=1 // pred_fallthru
      _
    // Predicated region
    $region66: #{tpu_custom_call.1} parent=1 // pred_check
      _
    $region67: #{tpu_custom_call.1} parent=1 // pred_check_branch
      %214 = sbr.rel (0) target = $region69
    $region68: #{tpu_custom_call.1} parent=1 // pred_region
      _
    $region69: #{tpu_custom_call.1} parent=1 // pred_fallthru
      _
    // Predicated region
    $region70: #{tpu_custom_call.1} parent=1 // pred_check
      _
    $region71: #{tpu_custom_call.1} parent=1 // pred_check_branch
      %216 = sbr.rel (0) target = $region73
    $region72: #{tpu_custom_call.1} parent=1 // pred_region
      %218 = vsyncadd [#allocation24], 0
      %s219 = sshll.u32 %s17, 4
      %s220 = int_to_ptr.hbm [resolvable:$true] %s219
      %s221 = sshll.u32 [#allocation25], 4
      %s222 = int_to_ptr.vmem [resolvable:$true] %s221
      %227 = dma.hbm_to_vmem [thread:$0]  %s220, 2048, %s222, [#allocation24], 64, 64, 4
    $region73: #{tpu_custom_call.1} parent=1 // pred_fallthru
      _
    // Predicated region
    $region74: #{tpu_custom_call.1} parent=1 // pred_check
      _
    $region75: #{tpu_custom_call.1} parent=1 // pred_check_branch
      %229 = sbr.rel (0) target = $region77
    $region76: #{tpu_custom_call.1} parent=1 // pred_region
      _
    $region77: #{tpu_custom_call.1} parent=1 // pred_fallthru
      _
    // Predicated region
    $region78: #{tpu_custom_call.1} parent=1 // pred_check
      _
    $region79: #{tpu_custom_call.1} parent=1 // pred_check_branch
      %231 = sbr.rel (0) target = $region81
    $region80: #{tpu_custom_call.1} parent=1 // pred_region
      _
    $region81: #{tpu_custom_call.1} parent=1 // pred_fallthru
      _
    // Predicated region
    $region82: #{tpu_custom_call.1} parent=1 // pred_check
      _
    $region83: #{tpu_custom_call.1} parent=1 // pred_check_branch
      %233 = sbr.rel (0) target = $region85
    $region84: #{tpu_custom_call.1} parent=1 // pred_region
      _
    $region85: #{tpu_custom_call.1} parent=1 // pred_fallthru
      _
    // Predicated region
    $region86: #{tpu_custom_call.1} parent=1 // pred_check
      _
    $region87: #{tpu_custom_call.1} parent=1 // pred_check_branch
      %235 = sbr.rel (0) target = $region89
    $region88: #{tpu_custom_call.1} parent=1 // pred_region
      %237 = dma.done [#allocation3], 512
    $region89: #{tpu_custom_call.1} parent=1 // pred_fallthru
      _
    // Predicated region
    $region90: #{tpu_custom_call.1} parent=1 // pred_check
      _
    $region91: #{tpu_custom_call.1} parent=1 // pred_check_branch
      %239 = sbr.rel (0) target = $region93
    $region92: #{tpu_custom_call.1} parent=1 // pred_region
      %241 = dma.done [#allocation6], 512
    $region93: #{tpu_custom_call.1} parent=1 // pred_fallthru
      _
    // Predicated region
    $region94: #{tpu_custom_call.1} parent=1 // pred_check
      _
    $region95: #{tpu_custom_call.1} parent=1 // pred_check_branch
      %243 = sbr.rel (0) target = $region97
    $region96: #{tpu_custom_call.1} parent=1 // pred_region
      %245 = dma.done [#allocation6], 32
    $region97: #{tpu_custom_call.1} parent=1 // pred_fallthru
      _
    // Predicated region
    $region98: #{tpu_custom_call.1} parent=1 // pred_check
      _
    $region99: #{tpu_custom_call.1} parent=1 // pred_check_branch
      %247 = sbr.rel (0) target = $region101
    $region100: #{tpu_custom_call.1} parent=1 // pred_region
      %249 = dma.done [#allocation9], 1024
    $region101: #{tpu_custom_call.1} parent=1 // pred_fallthru
      _
    // Predicated region
    $region102: #{tpu_custom_call.1} parent=1 // pred_check
      _
    $region103: #{tpu_custom_call.1} parent=1 // pred_check_branch
      %251 = sbr.rel (0) target = $region105
    $region104: #{tpu_custom_call.1} parent=1 // pred_region
      %253 = dma.done [#allocation9], 16
    $region105: #{tpu_custom_call.1} parent=1 // pred_fallthru
      _
    // Predicated region
    $region106: #{tpu_custom_call.1} parent=1 // pred_check
      _
    $region107: #{tpu_custom_call.1} parent=1 // pred_check_branch
      %255 = sbr.rel (0) target = $region109
    $region108: #{tpu_custom_call.1} parent=1 // pred_region
      %257 = dma.done [#allocation12], 2048
    $region109: #{tpu_custom_call.1} parent=1 // pred_fallthru
      _
    // Predicated region
    $region110: #{tpu_custom_call.1} parent=1 // pred_check
      _
    $region111: #{tpu_custom_call.1} parent=1 // pred_check_branch
      %259 = sbr.rel (0) target = $region113
    $region112: #{tpu_custom_call.1} parent=1 // pred_region
      %261 = dma.done [#allocation12], 32
    $region113: #{tpu_custom_call.1} parent=1 // pred_fallthru
      _
    // Predicated region
    $region114: #{tpu_custom_call.1} parent=1 // pred_check
      _
    $region115: #{tpu_custom_call.1} parent=1 // pred_check_branch
      %263 = sbr.rel (0) target = $region117
    $region116: #{tpu_custom_call.1} parent=1 // pred_region
      %265 = dma.done [#allocation15], 1024
    $region117: #{tpu_custom_call.1} parent=1 // pred_fallthru
      _
    // Predicated region
    $region118: #{tpu_custom_call.1} parent=1 // pred_check
      _
    $region119: #{tpu_custom_call.1} parent=1 // pred_check_branch
      %267 = sbr.rel (0) target = $region121
    $region120: #{tpu_custom_call.1} parent=1 // pred_region
      %269 = dma.done [#allocation15], 16
    $region121: #{tpu_custom_call.1} parent=1 // pred_fallthru
      _
    // Predicated region
    $region122: #{tpu_custom_call.1} parent=1 // pred_check
      _
    $region123: #{tpu_custom_call.1} parent=1 // pred_check_branch
      %271 = sbr.rel (0) target = $region125
    $region124: #{tpu_custom_call.1} parent=1 // pred_region
      %273 = dma.done [#allocation18], 1024
    $region125: #{tpu_custom_call.1} parent=1 // pred_fallthru
      _
    // Predicated region
    $region126: #{tpu_custom_call.1} parent=1 // pred_check
      _
    $region127: #{tpu_custom_call.1} parent=1 // pred_check_branch
      %275 = sbr.rel (0) target = $region129
    $region128: #{tpu_custom_call.1} parent=1 // pred_region
      %277 = dma.done [#allocation18], 16
    $region129: #{tpu_custom_call.1} parent=1 // pred_fallthru
      _
    // Predicated region
    $region130: #{tpu_custom_call.1} parent=1 // pred_check
      _
    $region131: #{tpu_custom_call.1} parent=1 // pred_check_branch
      %279 = sbr.rel (0) target = $region133
    $region132: #{tpu_custom_call.1} parent=1 // pred_region
      %281 = dma.done [#allocation21], 2048
    $region133: #{tpu_custom_call.1} parent=1 // pred_fallthru
      _
    // Predicated region
    $region134: #{tpu_custom_call.1} parent=1 // pred_check
      _
    $region135: #{tpu_custom_call.1} parent=1 // pred_check_branch
      %283 = sbr.rel (0) target = $region137
    $region136: #{tpu_custom_call.1} parent=1 // pred_region
      %285 = dma.done [#allocation21], 1024
    $region137: #{tpu_custom_call.1} parent=1 // pred_fallthru
      _
    // Predicated region
    $region138: #{tpu_custom_call.1} parent=1 // pred_check
      _
    $region139: #{tpu_custom_call.1} parent=1 // pred_check_branch
      %287 = sbr.rel (0) target = $region141
    $region140: #{tpu_custom_call.1} parent=1 // pred_region
      %289 = dma.done [#allocation24], 2048
    $region141: #{tpu_custom_call.1} parent=1 // pred_fallthru
      _
    // Predicated region
    $region142: #{tpu_custom_call.1} parent=1 // pred_check
      _
    $region143: #{tpu_custom_call.1} parent=1 // pred_check_branch
      %291 = sbr.rel (0) target = $region145
    $region144: #{tpu_custom_call.1} parent=1 // pred_region
      %293 = dma.done [#allocation24], 2048
    $region145: #{tpu_custom_call.1} parent=1 // pred_fallthru
      _
    %v295 = vld [vmem:[#allocation2] sm:$0xff]
    %v296 = vld [vmem:[#allocation2 + $0x8] sm:$0xff]
    %v297 = vld [vmem:[#allocation2 + $0x10] sm:$0xff]
    %v298 = vld [vmem:[#allocation2 + $0x18] sm:$0xff]
    %v299 = vld [vmem:[#allocation5] sm:$0xff]
    %v300 = vld [vmem:[#allocation5 + $0x8] sm:$0xff]
    %v301 = vld [vmem:[#allocation5 + $0x10] sm:$0xff]
    %v302 = vld [vmem:[#allocation5 + $0x18] sm:$0xff]
    %v303 = vld [vmem:[#allocation7] sm:$0x1]
    %v304 = vld [vmem:[#allocation7 + $0x1] sm:$0x1]
    %v305 = vld [vmem:[%s19] sm:$0x7]
    %v306 = vld [vmem:[%s20] sm:$0x7]
    %v307 = vlaneseq
    %v308 = vshrl.u32 %v307, 7
    %v309 = vadd.s32 %v308, 8
    %v310 = vlaneseq
    %v311 = vand.u32 %v310, 127
    %vm312 = vcmp.ge.s32.totalorder %v308, %v311
    %vm313 = vcmp.ge.s32.totalorder %v309, %v311
    %v314 = vsel %vm312, 0.0, -1e+09
    %v315 = vsel %vm313, 0.0, -1e+09
    %v316 = vpack.c.bf16 %v296, %v295
    %v317 = vpack.c.bf16 %v298, %v297
    %v318 = vld [vmem:[#allocation8] sm:$0xf]
    %v319 = vld [vmem:[#allocation8 + $0x4] sm:$0xf]
    %v320 = vld [vmem:[#allocation8 + $0x8] sm:$0xf]
    %v321 = vld [vmem:[#allocation8 + $0xc] sm:$0xf]
    %v322 = vld [vmem:[#allocation8 + $0x10] sm:$0xf]
    %v323 = vld [vmem:[#allocation8 + $0x14] sm:$0xf]
    %v324 = vld [vmem:[#allocation8 + $0x18] sm:$0xf]
    %v325 = vld [vmem:[#allocation8 + $0x1c] sm:$0xf]
    %v326 = vld [vmem:[#allocation8 + $0x20] sm:$0xf]
    %v327 = vld [vmem:[#allocation8 + $0x24] sm:$0xf]
    %v328 = vld [vmem:[#allocation8 + $0x28] sm:$0xf]
    %v329 = vld [vmem:[#allocation8 + $0x2c] sm:$0xf]
    %v330 = vld [vmem:[#allocation8 + $0x30] sm:$0xf]
    %v331 = vld [vmem:[#allocation8 + $0x34] sm:$0xf]
    %v332 = vld [vmem:[#allocation8 + $0x38] sm:$0xf]
    %v333 = vld [vmem:[#allocation8 + $0x3c] sm:$0xf]
    %v334 = vld [vmem:[#allocation10] sm:$0x1]
    %v336 = vperm.slane %v334, 0
    %v354 = vunpack.c.l.b16 %v318
    %v355 = vunpack.c.l.b16 %v319
    %v356 = vunpack.c.l.b16 %v320
    %v357 = vunpack.c.l.b16 %v321
    %v358 = vunpack.c.l.b16 %v322
    %v359 = vunpack.c.l.b16 %v323
    %v360 = vunpack.c.l.b16 %v324
    %v361 = vunpack.c.l.b16 %v325
    %v362 = vunpack.c.l.b16 %v326
    %v363 = vunpack.c.l.b16 %v327
    %v364 = vunpack.c.l.b16 %v328
    %v365 = vunpack.c.l.b16 %v329
    %v366 = vunpack.c.l.b16 %v330
    %v367 = vunpack.c.l.b16 %v331
    %v368 = vunpack.c.l.b16 %v332
    %v369 = vunpack.c.l.b16 %v333
    %v370 = vpack.c.b16 %v355, %v354
    %v371 = vpack.c.b16 %v357, %v356
    %v372 = vpack.c.b16 %v359, %v358
    %v373 = vpack.c.b16 %v361, %v360
    %v374 = vpack.c.b16 %v363, %v362
    %v375 = vpack.c.b16 %v365, %v364
    %v376 = vpack.c.b16 %v367, %v366
    %v377 = vpack.c.b16 %v369, %v368
    %386 = vmatpush.bf16.msra.mxu0 %v377
    %387 = vmatpush.bf16.msra.mxu0 %v376
    %388 = vmatpush.bf16.msra.mxu0 %v375
    %389 = vmatpush.bf16.msra.mxu0 %v374
    %390 = vmatpush.bf16.msra.mxu0 %v373
    %391 = vmatpush.bf16.msra.mxu0 %v372
    %392 = vmatpush.bf16.msra.mxu0 %v371
    %393 = vmatpush.bf16.msra.mxu0 %v370
    %394 = vmatmul.bf16.gmra.mxu0 %v316
    %v395 = vpop.f32.mrf.mxu0
    %v396 = vadd.f32 %v336, %v395
    %v397 = vpop.f32.mrf.mxu0
    %v398 = vadd.f32 %v336, %v397
    %399 = vmatmul.bf16.gmra.mxu0 %v317
    %v400 = vpop.f32.mrf.mxu0
    %v401 = vadd.f32 %v336, %v400
    %v402 = vpop.f32.mrf.mxu0
    %v403 = vadd.f32 %v336, %v402
    %404 = vdwg.mxu0
    %v405 = vld [vmem:[#allocation11] sm:$0xff]
    %v406 = vld [vmem:[#allocation11 + $0x8] sm:$0xff]
    %v407 = vld [vmem:[#allocation11 + $0x10] sm:$0xff]
    %v408 = vld [vmem:[#allocation11 + $0x18] sm:$0xff]
    %v409 = vld [vmem:[#allocation11 + $0x20] sm:$0xff]
    %v410 = vld [vmem:[#allocation11 + $0x28] sm:$0xff]
    %v411 = vld [vmem:[#allocation11 + $0x30] sm:$0xff]
    %v412 = vld [vmem:[#allocation11 + $0x38] sm:$0xff]
    %v413 = vld [vmem:[#allocation11 + $0x40] sm:$0xff]
    %v414 = vld [vmem:[#allocation11 + $0x48] sm:$0xff]
    %v415 = vld [vmem:[#allocation11 + $0x50] sm:$0xff]
    %v416 = vld [vmem:[#allocation11 + $0x58] sm:$0xff]
    %v417 = vld [vmem:[#allocation11 + $0x60] sm:$0xff]
    %v418 = vld [vmem:[#allocation11 + $0x68] sm:$0xff]
    %v419 = vld [vmem:[#allocation11 + $0x70] sm:$0xff]
    %v420 = vld [vmem:[#allocation11 + $0x78] sm:$0xff]
    %v421 = vld [vmem:[#allocation13] sm:$0x3]
    %v423 = vperm.slane %v421, 0
    %v424 = vperm.slane %v421, 1
    %v443 = vunpack.c.l.b16 %v405
    %v444 = vunpack.c.h.b16 %v405
    %v445 = vunpack.c.l.b16 %v406
    %v446 = vunpack.c.h.b16 %v406
    %v447 = vunpack.c.l.b16 %v407
    %v448 = vunpack.c.h.b16 %v407
    %v449 = vunpack.c.l.b16 %v408
    %v450 = vunpack.c.h.b16 %v408
    %v451 = vunpack.c.l.b16 %v409
    %v452 = vunpack.c.h.b16 %v409
    %v453 = vunpack.c.l.b16 %v410
    %v454 = vunpack.c.h.b16 %v410
    %v455 = vunpack.c.l.b16 %v411
    %v456 = vunpack.c.h.b16 %v411
    %v457 = vunpack.c.l.b16 %v412
    %v458 = vunpack.c.h.b16 %v412
    %v459 = vunpack.c.l.b16 %v413
    %v460 = vunpack.c.h.b16 %v413
    %v461 = vunpack.c.l.b16 %v414
    %v462 = vunpack.c.h.b16 %v414
    %v463 = vunpack.c.l.b16 %v415
    %v464 = vunpack.c.h.b16 %v415
    %v465 = vunpack.c.l.b16 %v416
    %v466 = vunpack.c.h.b16 %v416
    %v467 = vunpack.c.l.b16 %v417
    %v468 = vunpack.c.h.b16 %v417
    %v469 = vunpack.c.l.b16 %v418
    %v470 = vunpack.c.h.b16 %v418
    %v471 = vunpack.c.l.b16 %v419
    %v472 = vunpack.c.h.b16 %v419
    %v473 = vunpack.c.l.b16 %v420
    %v474 = vunpack.c.h.b16 %v420
    %v475 = vpack.c.b16 %v445, %v443
    %v476 = vpack.c.b16 %v446, %v444
    %v477 = vpack.c.b16 %v449, %v447
    %v478 = vpack.c.b16 %v450, %v448
    %v479 = vpack.c.b16 %v453, %v451
    %v480 = vpack.c.b16 %v454, %v452
    %v481 = vpack.c.b16 %v457, %v455
    %v482 = vpack.c.b16 %v458, %v456
    %v483 = vpack.c.b16 %v461, %v459
    %v484 = vpack.c.b16 %v462, %v460
    %v485 = vpack.c.b16 %v465, %v463
    %v486 = vpack.c.b16 %v466, %v464
    %v487 = vpack.c.b16 %v469, %v467
    %v488 = vpack.c.b16 %v470, %v468
    %v489 = vpack.c.b16 %v473, %v471
    %v490 = vpack.c.b16 %v474, %v472
    %507 = vmatpush.bf16.msra.mxu0 %v489
    %508 = vmatpush.bf16.msra.mxu0 %v487
    %509 = vmatpush.bf16.msra.mxu0 %v485
    %510 = vmatpush.bf16.msra.mxu0 %v483
    %511 = vmatpush.bf16.msra.mxu0 %v481
    %512 = vmatpush.bf16.msra.mxu0 %v479
    %513 = vmatpush.bf16.msra.mxu0 %v477
    %514 = vmatpush.bf16.msra.mxu0 %v475
    %515 = vmatmul.bf16.gmra.mxu0 %v316
    %v516 = vpop.f32.mrf.mxu0
    %v517 = vadd.f32 %v423, %v516
    %v518 = vpop.f32.mrf.mxu0
    %v519 = vadd.f32 %v423, %v518
    %520 = vmatmul.bf16.gmra.mxu0 %v317
    %v521 = vpop.f32.mrf.mxu0
    %v522 = vadd.f32 %v423, %v521
    %v523 = vpop.f32.mrf.mxu0
    %v524 = vadd.f32 %v423, %v523
    %525 = vdwg.mxu0
    %526 = vmatpush.bf16.msra.mxu0 %v490
    %527 = vmatpush.bf16.msra.mxu0 %v488
    %528 = vmatpush.bf16.msra.mxu0 %v486
    %529 = vmatpush.bf16.msra.mxu0 %v484
    %530 = vmatpush.bf16.msra.mxu0 %v482
    %531 = vmatpush.bf16.msra.mxu0 %v480
    %532 = vmatpush.bf16.msra.mxu0 %v478
    %533 = vmatpush.bf16.msra.mxu0 %v476
    %534 = vmatmul.bf16.gmra.mxu0 %v316
    %v535 = vpop.f32.mrf.mxu0
    %v536 = vadd.f32 %v424, %v535
    %v537 = vpop.f32.mrf.mxu0
    %v538 = vadd.f32 %v424, %v537
    %539 = vmatmul.bf16.gmra.mxu0 %v317
    %v540 = vpop.f32.mrf.mxu0
    %v541 = vadd.f32 %v424, %v540
    %v542 = vpop.f32.mrf.mxu0
    %v543 = vadd.f32 %v424, %v542
    %544 = vdwg.mxu0
    %v545 = vpack.c.bf16 %v396, %v396
    %v546 = vpack.c.bf16 %v398, %v398
    %v547 = vpack.c.bf16 %v401, %v401
    %v548 = vpack.c.bf16 %v403, %v403
    %v549 = vpack.c.bf16 %v536, %v517
    %v550 = vpack.c.bf16 %v538, %v519
    %v551 = vpack.c.bf16 %v541, %v522
    %v552 = vpack.c.bf16 %v543, %v524
    %v555 = vunpack.c.l.b16 %v545
    %v556 = vunpack.c.l.b16 %v546
    %v557 = vpack.c.b16 %v556, %v555
    %v560 = vunpack.c.l.b16 %v549
    %v561 = vunpack.c.l.b16 %v550
    %v562 = vpack.c.b16 %v561, %v560
    %vm563 = vcmask 261120
    %v565 = vsel %vm563, %v557, 0
    %v568 = vsel %vm563, %v562, 0
    %570 = vmatpush.bf16.xpose.msra.mxu0 0
    %571 = vmatpush.bf16.xpose.msra.mxu0 0
    %572 = vmatpush.bf16.xpose.msra.mxu0 0
    %573 = vmatpush.bf16.xpose.msra.mxu0 0
    %574 = vmatpush.bf16.xpose.msra.mxu0 0
    %575 = vmatpush.bf16.xpose.msra.mxu0 0
    %576 = vmatpush.bf16.xpose.msra.mxu0 0
    %577 = vmatpush.bf16.xpose.msra.mxu0 %v568
    %578 = vmatmul.bf16.gmra.mxu0 %v565
    %v579 = vpop.f32.mrf.mxu0
    %v580 = vadd.f32 %v314, %v579
    %v581 = vpop.f32.mrf.mxu0
    %v582 = vadd.f32 %v315, %v581
    %583 = vdwg.mxu0
    %vm584 = vcmask 130048
    %v585 = vsel %vm584, %v580, -inf
    %586 = vmax.xlane.f32.xlu0 %v585
    %v587 = vpop.xlane.xlu0 %586
    %v588 = vsel %vm584, %v582, -inf
    %589 = vmax.xlane.f32.xlu0 %v588
    %v590 = vpop.xlane.xlu0 %589
    %v591 = vsub.f32 %v580, %v587
    %v592 = vsub.f32 %v582, %v590
    %v593 = vmul.f32 %v591, 1.442695
    %v594 = vpow.pop %v593
    %v595 = vmul.f32 %v592, 1.442695
    %v596 = vpow.pop %v595
    %v597 = vsel %vm584, %v594, 0.0
    %598 = vadd.xlane.f32.xlu0 %v597
    %v599 = vpop.xlane.xlu0 %598
    %v600 = vsel %vm584, %v596, 0.0
    %601 = vadd.xlane.f32.xlu0 %v600
    %v602 = vpop.xlane.xlu0 %601
    %v603 = vrcp.pop %v599
    %v604 = vrcp.pop %v602
    %v605 = vmul.f32 %v594, %v603
    %v606 = vmul.f32 %v596, %v604
    %v607 = vpack.c.bf16 %v606, %v605
    %v608 = vunpack.c.h.b16 %v549
    %v609 = vunpack.c.h.b16 %v550
    %v610 = vpack.c.b16 %v609, %v608
    %v613 = vsel %vm584, %v607, 0
    %615 = vmatpush.bf16.msra.mxu0 0
    %616 = vmatpush.bf16.msra.mxu0 0
    %617 = vmatpush.bf16.msra.mxu0 0
    %618 = vmatpush.bf16.msra.mxu0 0
    %619 = vmatpush.bf16.msra.mxu0 0
    %620 = vmatpush.bf16.msra.mxu0 0
    %621 = vmatpush.bf16.msra.mxu0 0
    %622 = vmatpush.bf16.msra.mxu0 %v610
    %623 = vmatmul.bf16.gmra.mxu0 %v613
    %v624 = vpop.f32.mrf.mxu0
    %v625 = vadd.f32 0.0, %v624
    %v626 = vpop.f32.mrf.mxu0
    %v627 = vadd.f32 0.0, %v626
    %628 = vdwg.mxu0
    %629 = vrot.lane.b32.xlu0 %v557, 96
    %v630 = vpop.permute.xlu0 %629
    %631 = vrot.lane.b32.xlu0 %v562, 96
    %v632 = vpop.permute.xlu0 %631
    %v634 = vsel %vm563, %v630, 0
    %v637 = vsel %vm563, %v632, 0
    %639 = vmatpush.bf16.xpose.msra.mxu0 0
    %640 = vmatpush.bf16.xpose.msra.mxu0 0
    %641 = vmatpush.bf16.xpose.msra.mxu0 0
    %642 = vmatpush.bf16.xpose.msra.mxu0 0
    %643 = vmatpush.bf16.xpose.msra.mxu0 0
    %644 = vmatpush.bf16.xpose.msra.mxu0 0
    %645 = vmatpush.bf16.xpose.msra.mxu0 0
    %646 = vmatpush.bf16.xpose.msra.mxu0 %v637
    %647 = vmatmul.bf16.gmra.mxu0 %v634
    %v648 = vpop.f32.mrf.mxu0
    %v649 = vadd.f32 %v314, %v648
    %v650 = vpop.f32.mrf.mxu0
    %v651 = vadd.f32 %v315, %v650
    %652 = vdwg.mxu0
    %v653 = vsel %vm584, %v649, -inf
    %654 = vmax.xlane.f32.xlu0 %v653
    %v655 = vpop.xlane.xlu0 %654
    %v656 = vsel %vm584, %v651, -inf
    %657 = vmax.xlane.f32.xlu0 %v656
    %v658 = vpop.xlane.xlu0 %657
    %v659 = vsub.f32 %v649, %v655
    %v660 = vsub.f32 %v651, %v658
    %v661 = vmul.f32 %v659, 1.442695
    %v662 = vpow.pop %v661
    %v663 = vmul.f32 %v660, 1.442695
    %v664 = vpow.pop %v663
    %v665 = vsel %vm584, %v662, 0.0
    %666 = vadd.xlane.f32.xlu0 %v665
    %v667 = vpop.xlane.xlu0 %666
    %v668 = vsel %vm584, %v664, 0.0
    %669 = vadd.xlane.f32.xlu0 %v668
    %v670 = vpop.xlane.xlu0 %669
    %v671 = vrcp.pop %v667
    %v672 = vrcp.pop %v670
    %v673 = vmul.f32 %v662, %v671
    %v674 = vmul.f32 %v664, %v672
    %v675 = vpack.c.bf16 %v674, %v673
    %676 = vrot.lane.b32.xlu0 %v610, 96
    %v677 = vpop.permute.xlu0 %676
    %v680 = vsel %vm584, %v675, 0
    %682 = vmatpush.bf16.msra.mxu0 0
    %683 = vmatpush.bf16.msra.mxu0 0
    %684 = vmatpush.bf16.msra.mxu0 0
    %685 = vmatpush.bf16.msra.mxu0 0
    %686 = vmatpush.bf16.msra.mxu0 0
    %687 = vmatpush.bf16.msra.mxu0 0
    %688 = vmatpush.bf16.msra.mxu0 0
    %689 = vmatpush.bf16.msra.mxu0 %v677
    %690 = vmatmul.bf16.gmra.mxu0 %v680
    %v691 = vpop.f32.mrf.mxu0
    %v692 = vadd.f32 0.0, %v691
    %v693 = vpop.f32.mrf.mxu0
    %v694 = vadd.f32 0.0, %v693
    %695 = vdwg.mxu0
    %696 = vrot.lane.b32.xlu0 %v557, 64
    %v697 = vpop.permute.xlu0 %696
    %698 = vrot.lane.b32.xlu0 %v562, 64
    %v699 = vpop.permute.xlu0 %698
    %v701 = vsel %vm563, %v697, 0
    %v704 = vsel %vm563, %v699, 0
    %706 = vmatpush.bf16.xpose.msra.mxu0 0
    %707 = vmatpush.bf16.xpose.msra.mxu0 0
    %708 = vmatpush.bf16.xpose.msra.mxu0 0
    %709 = vmatpush.bf16.xpose.msra.mxu0 0
    %710 = vmatpush.bf16.xpose.msra.mxu0 0
    %711 = vmatpush.bf16.xpose.msra.mxu0 0
    %712 = vmatpush.bf16.xpose.msra.mxu0 0
    %713 = vmatpush.bf16.xpose.msra.mxu0 %v704
    %714 = vmatmul.bf16.gmra.mxu0 %v701
    %v715 = vpop.f32.mrf.mxu0
    %v716 = vadd.f32 %v314, %v715
    %v717 = vpop.f32.mrf.mxu0
    %v718 = vadd.f32 %v315, %v717
    %719 = vdwg.mxu0
    %v720 = vsel %vm584, %v716, -inf
    %721 = vmax.xlane.f32.xlu0 %v720
    %v722 = vpop.xlane.xlu0 %721
    %v723 = vsel %vm584, %v718, -inf
    %724 = vmax.xlane.f32.xlu0 %v723
    %v725 = vpop.xlane.xlu0 %724
    %v726 = vsub.f32 %v716, %v722
    %v727 = vsub.f32 %v718, %v725
    %v728 = vmul.f32 %v726, 1.442695
    %v729 = vpow.pop %v728
    %v730 = vmul.f32 %v727, 1.442695
    %v731 = vpow.pop %v730
    %v732 = vsel %vm584, %v729, 0.0
    %733 = vadd.xlane.f32.xlu0 %v732
    %v734 = vpop.xlane.xlu0 %733
    %v735 = vsel %vm584, %v731, 0.0
    %736 = vadd.xlane.f32.xlu0 %v735
    %v737 = vpop.xlane.xlu0 %736
    %v738 = vrcp.pop %v734
    %v739 = vrcp.pop %v737
    %v740 = vmul.f32 %v729, %v738
    %v741 = vmul.f32 %v731, %v739
    %v742 = vpack.c.bf16 %v741, %v740
    %743 = vrot.lane.b32.xlu0 %v610, 64
    %v744 = vpop.permute.xlu0 %743
    %v747 = vsel %vm584, %v742, 0
    %749 = vmatpush.bf16.msra.mxu0 0
    %750 = vmatpush.bf16.msra.mxu0 0
    %751 = vmatpush.bf16.msra.mxu0 0
    %752 = vmatpush.bf16.msra.mxu0 0
    %753 = vmatpush.bf16.msra.mxu0 0
    %754 = vmatpush.bf16.msra.mxu0 0
    %755 = vmatpush.bf16.msra.mxu0 0
    %756 = vmatpush.bf16.msra.mxu0 %v744
    %757 = vmatmul.bf16.gmra.mxu0 %v747
    %v758 = vpop.f32.mrf.mxu0
    %v759 = vadd.f32 0.0, %v758
    %v760 = vpop.f32.mrf.mxu0
    %v761 = vadd.f32 0.0, %v760
    %762 = vdwg.mxu0
    %763 = vrot.lane.b32.xlu0 %v557, 32
    %v764 = vpop.permute.xlu0 %763
    %765 = vrot.lane.b32.xlu0 %v562, 32
    %v766 = vpop.permute.xlu0 %765
    %v768 = vsel %vm563, %v764, 0
    %v771 = vsel %vm563, %v766, 0
    %773 = vmatpush.bf16.xpose.msra.mxu0 0
    %774 = vmatpush.bf16.xpose.msra.mxu0 0
    %775 = vmatpush.bf16.xpose.msra.mxu0 0
    %776 = vmatpush.bf16.xpose.msra.mxu0 0
    %777 = vmatpush.bf16.xpose.msra.mxu0 0
    %778 = vmatpush.bf16.xpose.msra.mxu0 0
    %779 = vmatpush.bf16.xpose.msra.mxu0 0
    %780 = vmatpush.bf16.xpose.msra.mxu0 %v771
    %781 = vmatmul.bf16.gmra.mxu0 %v768
    %v782 = vpop.f32.mrf.mxu0
    %v783 = vadd.f32 %v314, %v782
    %v784 = vpop.f32.mrf.mxu0
    %v785 = vadd.f32 %v315, %v784
    %786 = vdwg.mxu0
    %v787 = vsel %vm584, %v783, -inf
    %788 = vmax.xlane.f32.xlu0 %v787
    %v789 = vpop.xlane.xlu0 %788
    %v790 = vsel %vm584, %v785, -inf
    %791 = vmax.xlane.f32.xlu0 %v790
    %v792 = vpop.xlane.xlu0 %791
    %v793 = vsub.f32 %v783, %v789
    %v794 = vsub.f32 %v785, %v792
    %v795 = vmul.f32 %v793, 1.442695
    %v796 = vpow.pop %v795
    %v797 = vmul.f32 %v794, 1.442695
    %v798 = vpow.pop %v797
    %v799 = vsel %vm584, %v796, 0.0
    %800 = vadd.xlane.f32.xlu0 %v799
    %v801 = vpop.xlane.xlu0 %800
    %v802 = vsel %vm584, %v798, 0.0
    %803 = vadd.xlane.f32.xlu0 %v802
    %v804 = vpop.xlane.xlu0 %803
    %v805 = vrcp.pop %v801
    %v806 = vrcp.pop %v804
    %v807 = vmul.f32 %v796, %v805
    %v808 = vmul.f32 %v798, %v806
    %v809 = vpack.c.bf16 %v808, %v807
    %810 = vrot.lane.b32.xlu0 %v610, 32
    %v811 = vpop.permute.xlu0 %810
    %v814 = vsel %vm584, %v809, 0
    %816 = vmatpush.bf16.msra.mxu0 0
    %817 = vmatpush.bf16.msra.mxu0 0
    %818 = vmatpush.bf16.msra.mxu0 0
    %819 = vmatpush.bf16.msra.mxu0 0
    %820 = vmatpush.bf16.msra.mxu0 0
    %821 = vmatpush.bf16.msra.mxu0 0
    %822 = vmatpush.bf16.msra.mxu0 0
    %823 = vmatpush.bf16.msra.mxu0 %v811
    %824 = vmatmul.bf16.gmra.mxu0 %v814
    %v825 = vpop.f32.mrf.mxu0
    %v826 = vadd.f32 0.0, %v825
    %v827 = vpop.f32.mrf.mxu0
    %v828 = vadd.f32 0.0, %v827
    %829 = vdwg.mxu0
    %832 = vrot.lane.b32.xlu0 %v692, 32
    %v833 = vpop.permute.xlu0 %832
    %834 = vrot.lane.b32.xlu0 %v694, 32
    %v835 = vpop.permute.xlu0 %834
    %840 = vrot.lane.b32.xlu0 %v759, 64
    %v841 = vpop.permute.xlu0 %840
    %842 = vrot.lane.b32.xlu0 %v761, 64
    %v843 = vpop.permute.xlu0 %842
    %848 = vrot.lane.b32.xlu0 %v826, 96
    %v849 = vpop.permute.xlu0 %848
    %850 = vrot.lane.b32.xlu0 %v828, 96
    %v851 = vpop.permute.xlu0 %850
    %v854 = vsel %vm563, %v625, %v833
    %v855 = vsel %vm563, %v627, %v835
    %vm856 = vcmask 523264
    %v857 = vsel %vm856, %v854, %v841
    %v858 = vsel %vm856, %v855, %v843
    %vm859 = vcmask 785408
    %v860 = vsel %vm859, %v857, %v849
    %v861 = vsel %vm859, %v858, %v851
    %v864 = vunpack.c.l.b16 %v547
    %v865 = vunpack.c.l.b16 %v548
    %v866 = vpack.c.b16 %v865, %v864
    %v869 = vunpack.c.l.b16 %v551
    %v870 = vunpack.c.l.b16 %v552
    %v871 = vpack.c.b16 %v870, %v869
    %v873 = vsel %vm563, %v866, 0
    %v876 = vsel %vm563, %v871, 0
    %878 = vmatpush.bf16.xpose.msra.mxu0 0
    %879 = vmatpush.bf16.xpose.msra.mxu0 0
    %880 = vmatpush.bf16.xpose.msra.mxu0 0
    %881 = vmatpush.bf16.xpose.msra.mxu0 0
    %882 = vmatpush.bf16.xpose.msra.mxu0 0
    %883 = vmatpush.bf16.xpose.msra.mxu0 0
    %884 = vmatpush.bf16.xpose.msra.mxu0 0
    %885 = vmatpush.bf16.xpose.msra.mxu0 %v876
    %886 = vmatmul.bf16.gmra.mxu0 %v873
    %v887 = vpop.f32.mrf.mxu0
    %v888 = vadd.f32 %v314, %v887
    %v889 = vpop.f32.mrf.mxu0
    %v890 = vadd.f32 %v315, %v889
    %891 = vdwg.mxu0
    %v892 = vsel %vm584, %v888, -inf
    %893 = vmax.xlane.f32.xlu0 %v892
    %v894 = vpop.xlane.xlu0 %893
    %v895 = vsel %vm584, %v890, -inf
    %896 = vmax.xlane.f32.xlu0 %v895
    %v897 = vpop.xlane.xlu0 %896
    %v898 = vsub.f32 %v888, %v894
    %v899 = vsub.f32 %v890, %v897
    %v900 = vmul.f32 %v898, 1.442695
    %v901 = vpow.pop %v900
    %v902 = vmul.f32 %v899, 1.442695
    %v903 = vpow.pop %v902
    %v904 = vsel %vm584, %v901, 0.0
    %905 = vadd.xlane.f32.xlu0 %v904
    %v906 = vpop.xlane.xlu0 %905
    %v907 = vsel %vm584, %v903, 0.0
    %908 = vadd.xlane.f32.xlu0 %v907
    %v909 = vpop.xlane.xlu0 %908
    %v910 = vrcp.pop %v906
    %v911 = vrcp.pop %v909
    %v912 = vmul.f32 %v901, %v910
    %v913 = vmul.f32 %v903, %v911
    %v914 = vpack.c.bf16 %v913, %v912
    %v915 = vunpack.c.h.b16 %v551
    %v916 = vunpack.c.h.b16 %v552
    %v917 = vpack.c.b16 %v916, %v915
    %v920 = vsel %vm584, %v914, 0
    %922 = vmatpush.bf16.msra.mxu0 0
    %923 = vmatpush.bf16.msra.mxu0 0
    %924 = vmatpush.bf16.msra.mxu0 0
    %925 = vmatpush.bf16.msra.mxu0 0
    %926 = vmatpush.bf16.msra.mxu0 0
    %927 = vmatpush.bf16.msra.mxu0 0
    %928 = vmatpush.bf16.msra.mxu0 0
    %929 = vmatpush.bf16.msra.mxu0 %v917
    %930 = vmatmul.bf16.gmra.mxu0 %v920
    %v931 = vpop.f32.mrf.mxu0
    %v932 = vadd.f32 0.0, %v931
    %v933 = vpop.f32.mrf.mxu0
    %v934 = vadd.f32 0.0, %v933
    %935 = vdwg.mxu0
    %936 = vrot.lane.b32.xlu0 %v866, 96
    %v937 = vpop.permute.xlu0 %936
    %938 = vrot.lane.b32.xlu0 %v871, 96
    %v939 = vpop.permute.xlu0 %938
    %v941 = vsel %vm563, %v937, 0
    %v944 = vsel %vm563, %v939, 0
    %946 = vmatpush.bf16.xpose.msra.mxu0 0
    %947 = vmatpush.bf16.xpose.msra.mxu0 0
    %948 = vmatpush.bf16.xpose.msra.mxu0 0
    %949 = vmatpush.bf16.xpose.msra.mxu0 0
    %950 = vmatpush.bf16.xpose.msra.mxu0 0
    %951 = vmatpush.bf16.xpose.msra.mxu0 0
    %952 = vmatpush.bf16.xpose.msra.mxu0 0
    %953 = vmatpush.bf16.xpose.msra.mxu0 %v944
    %954 = vmatmul.bf16.gmra.mxu0 %v941
    %v955 = vpop.f32.mrf.mxu0
    %v956 = vadd.f32 %v314, %v955
    %v957 = vpop.f32.mrf.mxu0
    %v958 = vadd.f32 %v315, %v957
    %959 = vdwg.mxu0
    %v960 = vsel %vm584, %v956, -inf
    %961 = vmax.xlane.f32.xlu0 %v960
    %v962 = vpop.xlane.xlu0 %961
    %v963 = vsel %vm584, %v958, -inf
    %964 = vmax.xlane.f32.xlu0 %v963
    %v965 = vpop.xlane.xlu0 %964
    %v966 = vsub.f32 %v956, %v962
    %v967 = vsub.f32 %v958, %v965
    %v968 = vmul.f32 %v966, 1.442695
    %v969 = vpow.pop %v968
    %v970 = vmul.f32 %v967, 1.442695
    %v971 = vpow.pop %v970
    %v972 = vsel %vm584, %v969, 0.0
    %973 = vadd.xlane.f32.xlu0 %v972
    %v974 = vpop.xlane.xlu0 %973
    %v975 = vsel %vm584, %v971, 0.0
    %976 = vadd.xlane.f32.xlu0 %v975
    %v977 = vpop.xlane.xlu0 %976
    %v978 = vrcp.pop %v974
    %v979 = vrcp.pop %v977
    %v980 = vmul.f32 %v969, %v978
    %v981 = vmul.f32 %v971, %v979
    %v982 = vpack.c.bf16 %v981, %v980
    %983 = vrot.lane.b32.xlu0 %v917, 96
    %v984 = vpop.permute.xlu0 %983
    %v987 = vsel %vm584, %v982, 0
    %989 = vmatpush.bf16.msra.mxu0 0
    %990 = vmatpush.bf16.msra.mxu0 0
    %991 = vmatpush.bf16.msra.mxu0 0
    %992 = vmatpush.bf16.msra.mxu0 0
    %993 = vmatpush.bf16.msra.mxu0 0
    %994 = vmatpush.bf16.msra.mxu0 0
    %995 = vmatpush.bf16.msra.mxu0 0
    %996 = vmatpush.bf16.msra.mxu0 %v984
    %997 = vmatmul.bf16.gmra.mxu0 %v987
    %v998 = vpop.f32.mrf.mxu0
    %v999 = vadd.f32 0.0, %v998
    %v1000 = vpop.f32.mrf.mxu0
    %v1001 = vadd.f32 0.0, %v1000
    %1002 = vdwg.mxu0
    %1003 = vrot.lane.b32.xlu0 %v866, 64
    %v1004 = vpop.permute.xlu0 %1003
    %1005 = vrot.lane.b32.xlu0 %v871, 64
    %v1006 = vpop.permute.xlu0 %1005
    %v1008 = vsel %vm563, %v1004, 0
    %v1011 = vsel %vm563, %v1006, 0
    %1013 = vmatpush.bf16.xpose.msra.mxu0 0
    %1014 = vmatpush.bf16.xpose.msra.mxu0 0
    %1015 = vmatpush.bf16.xpose.msra.mxu0 0
    %1016 = vmatpush.bf16.xpose.msra.mxu0 0
    %1017 = vmatpush.bf16.xpose.msra.mxu0 0
    %1018 = vmatpush.bf16.xpose.msra.mxu0 0
    %1019 = vmatpush.bf16.xpose.msra.mxu0 0
    %1020 = vmatpush.bf16.xpose.msra.mxu0 %v1011
    %1021 = vmatmul.bf16.gmra.mxu0 %v1008
    %v1022 = vpop.f32.mrf.mxu0
    %v1023 = vadd.f32 %v314, %v1022
    %v1024 = vpop.f32.mrf.mxu0
    %v1025 = vadd.f32 %v315, %v1024
    %1026 = vdwg.mxu0
    %v1027 = vsel %vm584, %v1023, -inf
    %1028 = vmax.xlane.f32.xlu0 %v1027
    %v1029 = vpop.xlane.xlu0 %1028
    %v1030 = vsel %vm584, %v1025, -inf
    %1031 = vmax.xlane.f32.xlu0 %v1030
    %v1032 = vpop.xlane.xlu0 %1031
    %v1033 = vsub.f32 %v1023, %v1029
    %v1034 = vsub.f32 %v1025, %v1032
    %v1035 = vmul.f32 %v1033, 1.442695
    %v1036 = vpow.pop %v1035
    %v1037 = vmul.f32 %v1034, 1.442695
    %v1038 = vpow.pop %v1037
    %v1039 = vsel %vm584, %v1036, 0.0
    %1040 = vadd.xlane.f32.xlu0 %v1039
    %v1041 = vpop.xlane.xlu0 %1040
    %v1042 = vsel %vm584, %v1038, 0.0
    %1043 = vadd.xlane.f32.xlu0 %v1042
    %v1044 = vpop.xlane.xlu0 %1043
    %v1045 = vrcp.pop %v1041
    %v1046 = vrcp.pop %v1044
    %v1047 = vmul.f32 %v1036, %v1045
    %v1048 = vmul.f32 %v1038, %v1046
    %v1049 = vpack.c.bf16 %v1048, %v1047
    %1050 = vrot.lane.b32.xlu0 %v917, 64
    %v1051 = vpop.permute.xlu0 %1050
    %v1054 = vsel %vm584, %v1049, 0
    %1056 = vmatpush.bf16.msra.mxu0 0
    %1057 = vmatpush.bf16.msra.mxu0 0
    %1058 = vmatpush.bf16.msra.mxu0 0
    %1059 = vmatpush.bf16.msra.mxu0 0
    %1060 = vmatpush.bf16.msra.mxu0 0
    %1061 = vmatpush.bf16.msra.mxu0 0
    %1062 = vmatpush.bf16.msra.mxu0 0
    %1063 = vmatpush.bf16.msra.mxu0 %v1051
    %1064 = vmatmul.bf16.gmra.mxu0 %v1054
    %v1065 = vpop.f32.mrf.mxu0
    %v1066 = vadd.f32 0.0, %v1065
    %v1067 = vpop.f32.mrf.mxu0
    %v1068 = vadd.f32 0.0, %v1067
    %1069 = vdwg.mxu0
    %1070 = vrot.lane.b32.xlu0 %v866, 32
    %v1071 = vpop.permute.xlu0 %1070
    %1072 = vrot.lane.b32.xlu0 %v871, 32
    %v1073 = vpop.permute.xlu0 %1072
    %v1075 = vsel %vm563, %v1071, 0
    %v1078 = vsel %vm563, %v1073, 0
    %1080 = vmatpush.bf16.xpose.msra.mxu0 0
    %1081 = vmatpush.bf16.xpose.msra.mxu0 0
    %1082 = vmatpush.bf16.xpose.msra.mxu0 0
    %1083 = vmatpush.bf16.xpose.msra.mxu0 0
    %1084 = vmatpush.bf16.xpose.msra.mxu0 0
    %1085 = vmatpush.bf16.xpose.msra.mxu0 0
    %1086 = vmatpush.bf16.xpose.msra.mxu0 0
    %1087 = vmatpush.bf16.xpose.msra.mxu0 %v1078
    %1088 = vmatmul.bf16.gmra.mxu0 %v1075
    %v1089 = vpop.f32.mrf.mxu0
    %v1090 = vadd.f32 %v314, %v1089
    %v1091 = vpop.f32.mrf.mxu0
    %v1092 = vadd.f32 %v315, %v1091
    %1093 = vdwg.mxu0
    %v1094 = vsel %vm584, %v1090, -inf
    %1095 = vmax.xlane.f32.xlu0 %v1094
    %v1096 = vpop.xlane.xlu0 %1095
    %v1097 = vsel %vm584, %v1092, -inf
    %1098 = vmax.xlane.f32.xlu0 %v1097
    %v1099 = vpop.xlane.xlu0 %1098
    %v1100 = vsub.f32 %v1090, %v1096
    %v1101 = vsub.f32 %v1092, %v1099
    %v1102 = vmul.f32 %v1100, 1.442695
    %v1103 = vpow.pop %v1102
    %v1104 = vmul.f32 %v1101, 1.442695
    %v1105 = vpow.pop %v1104
    %v1106 = vsel %vm584, %v1103, 0.0
    %1107 = vadd.xlane.f32.xlu0 %v1106
    %v1108 = vpop.xlane.xlu0 %1107
    %v1109 = vsel %vm584, %v1105, 0.0
    %1110 = vadd.xlane.f32.xlu0 %v1109
    %v1111 = vpop.xlane.xlu0 %1110
    %v1112 = vrcp.pop %v1108
    %v1113 = vrcp.pop %v1111
    %v1114 = vmul.f32 %v1103, %v1112
    %v1115 = vmul.f32 %v1105, %v1113
    %v1116 = vpack.c.bf16 %v1115, %v1114
    %1117 = vrot.lane.b32.xlu0 %v917, 32
    %v1118 = vpop.permute.xlu0 %1117
    %v1121 = vsel %vm584, %v1116, 0
    %1123 = vmatpush.bf16.msra.mxu0 0
    %1124 = vmatpush.bf16.msra.mxu0 0
    %1125 = vmatpush.bf16.msra.mxu0 0
    %1126 = vmatpush.bf16.msra.mxu0 0
    %1127 = vmatpush.bf16.msra.mxu0 0
    %1128 = vmatpush.bf16.msra.mxu0 0
    %1129 = vmatpush.bf16.msra.mxu0 0
    %1130 = vmatpush.bf16.msra.mxu0 %v1118
    %1131 = vmatmul.bf16.gmra.mxu0 %v1121
    %v1132 = vpop.f32.mrf.mxu0
    %v1133 = vadd.f32 0.0, %v1132
    %v1134 = vpop.f32.mrf.mxu0
    %v1135 = vadd.f32 0.0, %v1134
    %1136 = vdwg.mxu0
    %1139 = vrot.lane.b32.xlu0 %v999, 32
    %v1140 = vpop.permute.xlu0 %1139
    %1141 = vrot.lane.b32.xlu0 %v1001, 32
    %v1142 = vpop.permute.xlu0 %1141
    %1147 = vrot.lane.b32.xlu0 %v1066, 64
    %v1148 = vpop.permute.xlu0 %1147
    %1149 = vrot.lane.b32.xlu0 %v1068, 64
    %v1150 = vpop.permute.xlu0 %1149
    %1155 = vrot.lane.b32.xlu0 %v1133, 96
    %v1156 = vpop.permute.xlu0 %1155
    %1157 = vrot.lane.b32.xlu0 %v1135, 96
    %v1158 = vpop.permute.xlu0 %1157
    %v1161 = vsel %vm563, %v932, %v1140
    %v1162 = vsel %vm563, %v934, %v1142
    %v1163 = vsel %vm856, %v1161, %v1148
    %v1164 = vsel %vm856, %v1162, %v1150
    %v1165 = vsel %vm859, %v1163, %v1156
    %v1166 = vsel %vm859, %v1164, %v1158
    %v1167 = vpack.c.bf16 %v861, %v860
    %v1168 = vpack.c.bf16 %v1166, %v1165
    %v1169 = vld [vmem:[#allocation14] sm:$0xf]
    %v1170 = vld [vmem:[#allocation14 + $0x4] sm:$0xf]
    %v1171 = vld [vmem:[#allocation14 + $0x8] sm:$0xf]
    %v1172 = vld [vmem:[#allocation14 + $0xc] sm:$0xf]
    %v1173 = vld [vmem:[#allocation14 + $0x10] sm:$0xf]
    %v1174 = vld [vmem:[#allocation14 + $0x14] sm:$0xf]
    %v1175 = vld [vmem:[#allocation14 + $0x18] sm:$0xf]
    %v1176 = vld [vmem:[#allocation14 + $0x1c] sm:$0xf]
    %v1177 = vld [vmem:[#allocation14 + $0x20] sm:$0xf]
    %v1178 = vld [vmem:[#allocation14 + $0x24] sm:$0xf]
    %v1179 = vld [vmem:[#allocation14 + $0x28] sm:$0xf]
    %v1180 = vld [vmem:[#allocation14 + $0x2c] sm:$0xf]
    %v1181 = vld [vmem:[#allocation14 + $0x30] sm:$0xf]
    %v1182 = vld [vmem:[#allocation14 + $0x34] sm:$0xf]
    %v1183 = vld [vmem:[#allocation14 + $0x38] sm:$0xf]
    %v1184 = vld [vmem:[#allocation14 + $0x3c] sm:$0xf]
    %v1185 = vld [vmem:[#allocation16] sm:$0x1]
    %v1187 = vperm.slane %v1185, 0
    %v1205 = vunpack.c.l.b16 %v1169
    %v1206 = vunpack.c.l.b16 %v1170
    %v1207 = vunpack.c.l.b16 %v1171
    %v1208 = vunpack.c.l.b16 %v1172
    %v1209 = vunpack.c.l.b16 %v1173
    %v1210 = vunpack.c.l.b16 %v1174
    %v1211 = vunpack.c.l.b16 %v1175
    %v1212 = vunpack.c.l.b16 %v1176
    %v1213 = vunpack.c.l.b16 %v1177
    %v1214 = vunpack.c.l.b16 %v1178
    %v1215 = vunpack.c.l.b16 %v1179
    %v1216 = vunpack.c.l.b16 %v1180
    %v1217 = vunpack.c.l.b16 %v1181
    %v1218 = vunpack.c.l.b16 %v1182
    %v1219 = vunpack.c.l.b16 %v1183
    %v1220 = vunpack.c.l.b16 %v1184
    %v1221 = vpack.c.b16 %v1206, %v1205
    %v1222 = vpack.c.b16 %v1208, %v1207
    %v1223 = vpack.c.b16 %v1210, %v1209
    %v1224 = vpack.c.b16 %v1212, %v1211
    %v1225 = vpack.c.b16 %v1214, %v1213
    %v1226 = vpack.c.b16 %v1216, %v1215
    %v1227 = vpack.c.b16 %v1218, %v1217
    %v1228 = vpack.c.b16 %v1220, %v1219
    %1237 = vmatpush.bf16.msra.mxu0 %v1228
    %1238 = vmatpush.bf16.msra.mxu0 %v1227
    %1239 = vmatpush.bf16.msra.mxu0 %v1226
    %1240 = vmatpush.bf16.msra.mxu0 %v1225
    %1241 = vmatpush.bf16.msra.mxu0 %v1224
    %1242 = vmatpush.bf16.msra.mxu0 %v1223
    %1243 = vmatpush.bf16.msra.mxu0 %v1222
    %1244 = vmatpush.bf16.msra.mxu0 %v1221
    %1245 = vmatmul.bf16.gmra.mxu0 %v1167
    %v1246 = vpop.f32.mrf.mxu0
    %v1247 = vadd.f32 %v1187, %v1246
    %v1248 = vpop.f32.mrf.mxu0
    %v1249 = vadd.f32 %v1187, %v1248
    %1250 = vmatmul.bf16.gmra.mxu0 %v1168
    %v1251 = vpop.f32.mrf.mxu0
    %v1252 = vadd.f32 %v1187, %v1251
    %v1253 = vpop.f32.mrf.mxu0
    %v1254 = vadd.f32 %v1187, %v1253
    %1255 = vdwg.mxu0
    %v1256 = vadd.f32 %v295, %v1247
    %v1257 = vadd.f32 %v296, %v1249
    %v1258 = vadd.f32 %v297, %v1252
    %v1259 = vadd.f32 %v298, %v1254
    %1260 = vadd.xlane.f32.xlu0 %v1256
    %v1261 = vpop.xlane.xlu0 %1260
    %1262 = vadd.xlane.f32.xlu0 %v1257
    %v1263 = vpop.xlane.xlu0 %1262
    %1264 = vadd.xlane.f32.xlu0 %v1258
    %v1265 = vpop.xlane.xlu0 %1264
    %1266 = vadd.xlane.f32.xlu0 %v1259
    %v1267 = vpop.xlane.xlu0 %1266
    %v1268 = vrcp.pop 128.0
    %v1269 = vmul.f32 128.0, %v1268
    %v1270 = vsub.f32 1.0, %v1269
    %v1271 = vmul.f32 %v1268, %v1270
    %v1272 = vadd.f32 %v1268, %v1271
    %vm1273 = vweird.f32 %v1268
    %v1274 = vsel %vm1273, %v1268, %v1272
    %v1275 = vmul.f32 %v1261, %v1274
    %v1276 = vmul.f32 %v1263, %v1274
    %v1277 = vmul.f32 %v1265, %v1274
    %v1278 = vmul.f32 %v1267, %v1274
    %v1279 = vsub.f32 %v1256, %v1275
    %v1280 = vsub.f32 %v1257, %v1276
    %v1281 = vsub.f32 %v1258, %v1277
    %v1282 = vsub.f32 %v1259, %v1278
    %v1283 = vmul.f32 %v1279, %v1279
    %v1284 = vmul.f32 %v1280, %v1280
    %v1285 = vmul.f32 %v1281, %v1281
    %v1286 = vmul.f32 %v1282, %v1282
    %1287 = vadd.xlane.f32.xlu0 %v1283
    %v1288 = vpop.xlane.xlu0 %1287
    %1289 = vadd.xlane.f32.xlu0 %v1284
    %v1290 = vpop.xlane.xlu0 %1289
    %1291 = vadd.xlane.f32.xlu0 %v1285
    %v1292 = vpop.xlane.xlu0 %1291
    %1293 = vadd.xlane.f32.xlu0 %v1286
    %v1294 = vpop.xlane.xlu0 %1293
    %v1295 = vmul.f32 %v1288, %v1274
    %v1296 = vmul.f32 %v1290, %v1274
    %v1297 = vmul.f32 %v1292, %v1274
    %v1298 = vmul.f32 %v1294, %v1274
    %v1299 = vadd.f32 %v1295, 1e-05
    %v1300 = vadd.f32 %v1296, 1e-05
    %v1301 = vadd.f32 %v1297, 1e-05
    %v1302 = vadd.f32 %v1298, 1e-05
    %v1303 = vrsqrt.pop %v1299
    %v1304 = vmul.f32 %v1303, %v1299
    %v1305 = vmul.f32 %v1304, %v1303
    %v1306 = vmul.f32 0.5, %v1305
    %v1307 = vsub.f32 1.5, %v1306
    %v1308 = vmul.f32 %v1303, %v1307
    %vm1309 = vweird.f32 %v1299
    %vm1310 = vweird.f32 %v1303
    %vm1311 = vmor %vm1309, %vm1310
    %v1312 = vsel %vm1311, %v1303, %v1308
    %v1313 = vrsqrt.pop %v1300
    %v1314 = vmul.f32 %v1313, %v1300
    %v1315 = vmul.f32 %v1314, %v1313
    %v1316 = vmul.f32 0.5, %v1315
    %v1317 = vsub.f32 1.5, %v1316
    %v1318 = vmul.f32 %v1313, %v1317
    %vm1319 = vweird.f32 %v1300
    %vm1320 = vweird.f32 %v1313
    %vm1321 = vmor %vm1319, %vm1320
    %v1322 = vsel %vm1321, %v1313, %v1318
    %v1323 = vrsqrt.pop %v1301
    %v1324 = vmul.f32 %v1323, %v1301
    %v1325 = vmul.f32 %v1324, %v1323
    %v1326 = vmul.f32 0.5, %v1325
    %v1327 = vsub.f32 1.5, %v1326
    %v1328 = vmul.f32 %v1323, %v1327
    %vm1329 = vweird.f32 %v1301
    %vm1330 = vweird.f32 %v1323
    %vm1331 = vmor %vm1329, %vm1330
    %v1332 = vsel %vm1331, %v1323, %v1328
    %v1333 = vrsqrt.pop %v1302
    %v1334 = vmul.f32 %v1333, %v1302
    %v1335 = vmul.f32 %v1334, %v1333
    %v1336 = vmul.f32 0.5, %v1335
    %v1337 = vsub.f32 1.5, %v1336
    %v1338 = vmul.f32 %v1333, %v1337
    %vm1339 = vweird.f32 %v1302
    %vm1340 = vweird.f32 %v1333
    %vm1341 = vmor %vm1339, %vm1340
    %v1342 = vsel %vm1341, %v1333, %v1338
    %v1343 = vmul.f32 %v1279, %v1312
    %v1344 = vmul.f32 %v1280, %v1322
    %v1345 = vmul.f32 %v1281, %v1332
    %v1346 = vmul.f32 %v1282, %v1342
    %v1347 = vperm.slane %v305, 0
    %v1348 = vmul.f32 %v1343, %v1347
    %v1349 = vmul.f32 %v1344, %v1347
    %v1350 = vmul.f32 %v1345, %v1347
    %v1351 = vmul.f32 %v1346, %v1347
    %v1352 = vperm.slane %v306, 0
    %v1353 = vadd.f32 %v1348, %v1352
    %v1354 = vadd.f32 %v1349, %v1352
    %v1355 = vadd.f32 %v1350, %v1352
    %v1356 = vadd.f32 %v1351, %v1352
    %v1357 = vpack.c.bf16 %v1354, %v1353
    %v1358 = vpack.c.bf16 %v1356, %v1355
    %v1359 = vld [vmem:[#allocation17] sm:$0xf]
    %v1360 = vld [vmem:[#allocation17 + $0x4] sm:$0xf]
    %v1361 = vld [vmem:[#allocation17 + $0x8] sm:$0xf]
    %v1362 = vld [vmem:[#allocation17 + $0xc] sm:$0xf]
    %v1363 = vld [vmem:[#allocation17 + $0x10] sm:$0xf]
    %v1364 = vld [vmem:[#allocation17 + $0x14] sm:$0xf]
    %v1365 = vld [vmem:[#allocation17 + $0x18] sm:$0xf]
    %v1366 = vld [vmem:[#allocation17 + $0x1c] sm:$0xf]
    %v1367 = vld [vmem:[#allocation17 + $0x20] sm:$0xf]
    %v1368 = vld [vmem:[#allocation17 + $0x24] sm:$0xf]
    %v1369 = vld [vmem:[#allocation17 + $0x28] sm:$0xf]
    %v1370 = vld [vmem:[#allocation17 + $0x2c] sm:$0xf]
    %v1371 = vld [vmem:[#allocation17 + $0x30] sm:$0xf]
    %v1372 = vld [vmem:[#allocation17 + $0x34] sm:$0xf]
    %v1373 = vld [vmem:[#allocation17 + $0x38] sm:$0xf]
    %v1374 = vld [vmem:[#allocation17 + $0x3c] sm:$0xf]
    %v1375 = vld [vmem:[#allocation19] sm:$0x1]
    %v1377 = vperm.slane %v1375, 0
    %v1395 = vunpack.c.l.b16 %v1359
    %v1396 = vunpack.c.l.b16 %v1360
    %v1397 = vunpack.c.l.b16 %v1361
    %v1398 = vunpack.c.l.b16 %v1362
    %v1399 = vunpack.c.l.b16 %v1363
    %v1400 = vunpack.c.l.b16 %v1364
    %v1401 = vunpack.c.l.b16 %v1365
    %v1402 = vunpack.c.l.b16 %v1366
    %v1403 = vunpack.c.l.b16 %v1367
    %v1404 = vunpack.c.l.b16 %v1368
    %v1405 = vunpack.c.l.b16 %v1369
    %v1406 = vunpack.c.l.b16 %v1370
    %v1407 = vunpack.c.l.b16 %v1371
    %v1408 = vunpack.c.l.b16 %v1372
    %v1409 = vunpack.c.l.b16 %v1373
    %v1410 = vunpack.c.l.b16 %v1374
    %v1411 = vpack.c.b16 %v1396, %v1395
    %v1412 = vpack.c.b16 %v1398, %v1397
    %v1413 = vpack.c.b16 %v1400, %v1399
    %v1414 = vpack.c.b16 %v1402, %v1401
    %v1415 = vpack.c.b16 %v1404, %v1403
    %v1416 = vpack.c.b16 %v1406, %v1405
    %v1417 = vpack.c.b16 %v1408, %v1407
    %v1418 = vpack.c.b16 %v1410, %v1409
    %1427 = vmatpush.bf16.msra.mxu0 %v1418
    %1428 = vmatpush.bf16.msra.mxu0 %v1417
    %1429 = vmatpush.bf16.msra.mxu0 %v1416
    %1430 = vmatpush.bf16.msra.mxu0 %v1415
    %1431 = vmatpush.bf16.msra.mxu0 %v1414
    %1432 = vmatpush.bf16.msra.mxu0 %v1413
    %1433 = vmatpush.bf16.msra.mxu0 %v1412
    %1434 = vmatpush.bf16.msra.mxu0 %v1411
    %1435 = vmatmul.bf16.gmra.mxu0 %v1357
    %v1436 = vpop.f32.mrf.mxu0
    %v1437 = vadd.f32 %v1377, %v1436
    %v1438 = vpop.f32.mrf.mxu0
    %v1439 = vadd.f32 %v1377, %v1438
    %1440 = vmatmul.bf16.gmra.mxu0 %v1358
    %v1441 = vpop.f32.mrf.mxu0
    %v1442 = vadd.f32 %v1377, %v1441
    %v1443 = vpop.f32.mrf.mxu0
    %v1444 = vadd.f32 %v1377, %v1443
    %1445 = vdwg.mxu0
    %v1446 = vpack.c.bf16 %v300, %v299
    %v1447 = vpack.c.bf16 %v302, %v301
    %v1448 = vld [vmem:[#allocation20] sm:$0xff]
    %v1449 = vld [vmem:[#allocation20 + $0x8] sm:$0xff]
    %v1450 = vld [vmem:[#allocation20 + $0x10] sm:$0xff]
    %v1451 = vld [vmem:[#allocation20 + $0x18] sm:$0xff]
    %v1452 = vld [vmem:[#allocation20 + $0x20] sm:$0xff]
    %v1453 = vld [vmem:[#allocation20 + $0x28] sm:$0xff]
    %v1454 = vld [vmem:[#allocation20 + $0x30] sm:$0xff]
    %v1455 = vld [vmem:[#allocation20 + $0x38] sm:$0xff]
    %v1456 = vld [vmem:[#allocation20 + $0x40] sm:$0xff]
    %v1457 = vld [vmem:[#allocation20 + $0x48] sm:$0xff]
    %v1458 = vld [vmem:[#allocation20 + $0x50] sm:$0xff]
    %v1459 = vld [vmem:[#allocation20 + $0x58] sm:$0xff]
    %v1460 = vld [vmem:[#allocation20 + $0x60] sm:$0xff]
    %v1461 = vld [vmem:[#allocation20 + $0x68] sm:$0xff]
    %v1462 = vld [vmem:[#allocation20 + $0x70] sm:$0xff]
    %v1463 = vld [vmem:[#allocation20 + $0x78] sm:$0xff]
    %v1464 = vld [vmem:[%s12] sm:$0x3]
    %v1466 = vperm.slane %v1464, 0
    %v1467 = vperm.slane %v1464, 1
    %v1486 = vunpack.c.l.b16 %v1448
    %v1487 = vunpack.c.h.b16 %v1448
    %v1488 = vunpack.c.l.b16 %v1449
    %v1489 = vunpack.c.h.b16 %v1449
    %v1490 = vunpack.c.l.b16 %v1450
    %v1491 = vunpack.c.h.b16 %v1450
    %v1492 = vunpack.c.l.b16 %v1451
    %v1493 = vunpack.c.h.b16 %v1451
    %v1494 = vunpack.c.l.b16 %v1452
    %v1495 = vunpack.c.h.b16 %v1452
    %v1496 = vunpack.c.l.b16 %v1453
    %v1497 = vunpack.c.h.b16 %v1453
    %v1498 = vunpack.c.l.b16 %v1454
    %v1499 = vunpack.c.h.b16 %v1454
    %v1500 = vunpack.c.l.b16 %v1455
    %v1501 = vunpack.c.h.b16 %v1455
    %v1502 = vunpack.c.l.b16 %v1456
    %v1503 = vunpack.c.h.b16 %v1456
    %v1504 = vunpack.c.l.b16 %v1457
    %v1505 = vunpack.c.h.b16 %v1457
    %v1506 = vunpack.c.l.b16 %v1458
    %v1507 = vunpack.c.h.b16 %v1458
    %v1508 = vunpack.c.l.b16 %v1459
    %v1509 = vunpack.c.h.b16 %v1459
    %v1510 = vunpack.c.l.b16 %v1460
    %v1511 = vunpack.c.h.b16 %v1460
    %v1512 = vunpack.c.l.b16 %v1461
    %v1513 = vunpack.c.h.b16 %v1461
    %v1514 = vunpack.c.l.b16 %v1462
    %v1515 = vunpack.c.h.b16 %v1462
    %v1516 = vunpack.c.l.b16 %v1463
    %v1517 = vunpack.c.h.b16 %v1463
    %v1518 = vpack.c.b16 %v1488, %v1486
    %v1519 = vpack.c.b16 %v1489, %v1487
    %v1520 = vpack.c.b16 %v1492, %v1490
    %v1521 = vpack.c.b16 %v1493, %v1491
    %v1522 = vpack.c.b16 %v1496, %v1494
    %v1523 = vpack.c.b16 %v1497, %v1495
    %v1524 = vpack.c.b16 %v1500, %v1498
    %v1525 = vpack.c.b16 %v1501, %v1499
    %v1526 = vpack.c.b16 %v1504, %v1502
    %v1527 = vpack.c.b16 %v1505, %v1503
    %v1528 = vpack.c.b16 %v1508, %v1506
    %v1529 = vpack.c.b16 %v1509, %v1507
    %v1530 = vpack.c.b16 %v1512, %v1510
    %v1531 = vpack.c.b16 %v1513, %v1511
    %v1532 = vpack.c.b16 %v1516, %v1514
    %v1533 = vpack.c.b16 %v1517, %v1515
    %1550 = vmatpush.bf16.msra.mxu0 %v1532
    %1551 = vmatpush.bf16.msra.mxu0 %v1530
    %1552 = vmatpush.bf16.msra.mxu0 %v1528
    %1553 = vmatpush.bf16.msra.mxu0 %v1526
    %1554 = vmatpush.bf16.msra.mxu0 %v1524
    %1555 = vmatpush.bf16.msra.mxu0 %v1522
    %1556 = vmatpush.bf16.msra.mxu0 %v1520
    %1557 = vmatpush.bf16.msra.mxu0 %v1518
    %1558 = vmatmul.bf16.gmra.mxu0 %v1446
    %v1559 = vpop.f32.mrf.mxu0
    %v1560 = vadd.f32 %v1466, %v1559
    %v1561 = vpop.f32.mrf.mxu0
    %v1562 = vadd.f32 %v1466, %v1561
    %1563 = vmatmul.bf16.gmra.mxu0 %v1447
    %v1564 = vpop.f32.mrf.mxu0
    %v1565 = vadd.f32 %v1466, %v1564
    %v1566 = vpop.f32.mrf.mxu0
    %v1567 = vadd.f32 %v1466, %v1566
    %1568 = vdwg.mxu0
    %1569 = vmatpush.bf16.msra.mxu0 %v1533
    %1570 = vmatpush.bf16.msra.mxu0 %v1531
    %1571 = vmatpush.bf16.msra.mxu0 %v1529
    %1572 = vmatpush.bf16.msra.mxu0 %v1527
    %1573 = vmatpush.bf16.msra.mxu0 %v1525
    %1574 = vmatpush.bf16.msra.mxu0 %v1523
    %1575 = vmatpush.bf16.msra.mxu0 %v1521
    %1576 = vmatpush.bf16.msra.mxu0 %v1519
    %1577 = vmatmul.bf16.gmra.mxu0 %v1446
    %v1578 = vpop.f32.mrf.mxu0
    %v1579 = vadd.f32 %v1467, %v1578
    %v1580 = vpop.f32.mrf.mxu0
    %v1581 = vadd.f32 %v1467, %v1580
    %1582 = vmatmul.bf16.gmra.mxu0 %v1447
    %v1583 = vpop.f32.mrf.mxu0
    %v1584 = vadd.f32 %v1467, %v1583
    %v1585 = vpop.f32.mrf.mxu0
    %v1586 = vadd.f32 %v1467, %v1585
    %1587 = vdwg.mxu0
    %v1588 = vpack.c.bf16 %v1437, %v1437
    %v1589 = vpack.c.bf16 %v1439, %v1439
    %v1590 = vpack.c.bf16 %v1442, %v1442
    %v1591 = vpack.c.bf16 %v1444, %v1444
    %v1592 = vpack.c.bf16 %v1579, %v1560
    %v1593 = vpack.c.bf16 %v1581, %v1562
    %v1594 = vpack.c.bf16 %v1584, %v1565
    %v1595 = vpack.c.bf16 %v1586, %v1567
    %v1597 = vperm.slane %v303, 0
    %v1601 = vunpack.c.l.b16 %v1588
    %v1602 = vunpack.c.l.b16 %v1589
    %v1603 = vpack.c.b16 %v1602, %v1601
    %v1606 = vunpack.c.l.b16 %v1592
    %v1607 = vunpack.c.l.b16 %v1593
    %v1608 = vpack.c.b16 %v1607, %v1606
    %v1610 = vsel %vm563, %v1603, 0
    %v1613 = vsel %vm563, %v1608, 0
    %1615 = vmatpush.bf16.xpose.msra.mxu0 0
    %1616 = vmatpush.bf16.xpose.msra.mxu0 0
    %1617 = vmatpush.bf16.xpose.msra.mxu0 0
    %1618 = vmatpush.bf16.xpose.msra.mxu0 0
    %1619 = vmatpush.bf16.xpose.msra.mxu0 0
    %1620 = vmatpush.bf16.xpose.msra.mxu0 0
    %1621 = vmatpush.bf16.xpose.msra.mxu0 0
    %1622 = vmatpush.bf16.xpose.msra.mxu0 %v1613
    %1623 = vmatmul.bf16.gmra.mxu0 %v1610
    %v1624 = vpop.f32.mrf.mxu0
    %v1625 = vadd.f32 %v1597, %v1624
    %v1626 = vpop.f32.mrf.mxu0
    %v1627 = vadd.f32 %v1597, %v1626
    %1628 = vdwg.mxu0
    %v1629 = vsel %vm584, %v1625, -inf
    %1630 = vmax.xlane.f32.xlu0 %v1629
    %v1631 = vpop.xlane.xlu0 %1630
    %v1632 = vsel %vm584, %v1627, -inf
    %1633 = vmax.xlane.f32.xlu0 %v1632
    %v1634 = vpop.xlane.xlu0 %1633
    %v1635 = vsub.f32 %v1625, %v1631
    %v1636 = vsub.f32 %v1627, %v1634
    %v1637 = vmul.f32 %v1635, 1.442695
    %v1638 = vpow.pop %v1637
    %v1639 = vmul.f32 %v1636, 1.442695
    %v1640 = vpow.pop %v1639
    %v1641 = vsel %vm584, %v1638, 0.0
    %1642 = vadd.xlane.f32.xlu0 %v1641
    %v1643 = vpop.xlane.xlu0 %1642
    %v1644 = vsel %vm584, %v1640, 0.0
    %1645 = vadd.xlane.f32.xlu0 %v1644
    %v1646 = vpop.xlane.xlu0 %1645
    %v1647 = vrcp.pop %v1643
    %v1648 = vrcp.pop %v1646
    %v1649 = vmul.f32 %v1638, %v1647
    %v1650 = vmul.f32 %v1640, %v1648
    %v1651 = vpack.c.bf16 %v1650, %v1649
    %v1652 = vunpack.c.h.b16 %v1592
    %v1653 = vunpack.c.h.b16 %v1593
    %v1654 = vpack.c.b16 %v1653, %v1652
    %v1657 = vsel %vm584, %v1651, 0
    %1659 = vmatpush.bf16.msra.mxu0 0
    %1660 = vmatpush.bf16.msra.mxu0 0
    %1661 = vmatpush.bf16.msra.mxu0 0
    %1662 = vmatpush.bf16.msra.mxu0 0
    %1663 = vmatpush.bf16.msra.mxu0 0
    %1664 = vmatpush.bf16.msra.mxu0 0
    %1665 = vmatpush.bf16.msra.mxu0 0
    %1666 = vmatpush.bf16.msra.mxu0 %v1654
    %1667 = vmatmul.bf16.gmra.mxu0 %v1657
    %v1668 = vpop.f32.mrf.mxu0
    %v1669 = vadd.f32 0.0, %v1668
    %v1670 = vpop.f32.mrf.mxu0
    %v1671 = vadd.f32 0.0, %v1670
    %1672 = vdwg.mxu0
    %1673 = vrot.lane.b32.xlu0 %v1603, 96
    %v1674 = vpop.permute.xlu0 %1673
    %1675 = vrot.lane.b32.xlu0 %v1608, 96
    %v1676 = vpop.permute.xlu0 %1675
    %v1678 = vsel %vm563, %v1674, 0
    %v1681 = vsel %vm563, %v1676, 0
    %1683 = vmatpush.bf16.xpose.msra.mxu0 0
    %1684 = vmatpush.bf16.xpose.msra.mxu0 0
    %1685 = vmatpush.bf16.xpose.msra.mxu0 0
    %1686 = vmatpush.bf16.xpose.msra.mxu0 0
    %1687 = vmatpush.bf16.xpose.msra.mxu0 0
    %1688 = vmatpush.bf16.xpose.msra.mxu0 0
    %1689 = vmatpush.bf16.xpose.msra.mxu0 0
    %1690 = vmatpush.bf16.xpose.msra.mxu0 %v1681
    %1691 = vmatmul.bf16.gmra.mxu0 %v1678
    %v1692 = vpop.f32.mrf.mxu0
    %v1693 = vadd.f32 %v1597, %v1692
    %v1694 = vpop.f32.mrf.mxu0
    %v1695 = vadd.f32 %v1597, %v1694
    %1696 = vdwg.mxu0
    %v1697 = vsel %vm584, %v1693, -inf
    %1698 = vmax.xlane.f32.xlu0 %v1697
    %v1699 = vpop.xlane.xlu0 %1698
    %v1700 = vsel %vm584, %v1695, -inf
    %1701 = vmax.xlane.f32.xlu0 %v1700
    %v1702 = vpop.xlane.xlu0 %1701
    %v1703 = vsub.f32 %v1693, %v1699
    %v1704 = vsub.f32 %v1695, %v1702
    %v1705 = vmul.f32 %v1703, 1.442695
    %v1706 = vpow.pop %v1705
    %v1707 = vmul.f32 %v1704, 1.442695
    %v1708 = vpow.pop %v1707
    %v1709 = vsel %vm584, %v1706, 0.0
    %1710 = vadd.xlane.f32.xlu0 %v1709
    %v1711 = vpop.xlane.xlu0 %1710
    %v1712 = vsel %vm584, %v1708, 0.0
    %1713 = vadd.xlane.f32.xlu0 %v1712
    %v1714 = vpop.xlane.xlu0 %1713
    %v1715 = vrcp.pop %v1711
    %v1716 = vrcp.pop %v1714
    %v1717 = vmul.f32 %v1706, %v1715
    %v1718 = vmul.f32 %v1708, %v1716
    %v1719 = vpack.c.bf16 %v1718, %v1717
    %1720 = vrot.lane.b32.xlu0 %v1654, 96
    %v1721 = vpop.permute.xlu0 %1720
    %v1724 = vsel %vm584, %v1719, 0
    %1726 = vmatpush.bf16.msra.mxu0 0
    %1727 = vmatpush.bf16.msra.mxu0 0
    %1728 = vmatpush.bf16.msra.mxu0 0
    %1729 = vmatpush.bf16.msra.mxu0 0
    %1730 = vmatpush.bf16.msra.mxu0 0
    %1731 = vmatpush.bf16.msra.mxu0 0
    %1732 = vmatpush.bf16.msra.mxu0 0
    %1733 = vmatpush.bf16.msra.mxu0 %v1721
    %1734 = vmatmul.bf16.gmra.mxu0 %v1724
    %v1735 = vpop.f32.mrf.mxu0
    %v1736 = vadd.f32 0.0, %v1735
    %v1737 = vpop.f32.mrf.mxu0
    %v1738 = vadd.f32 0.0, %v1737
    %1739 = vdwg.mxu0
    %1740 = vrot.lane.b32.xlu0 %v1603, 64
    %v1741 = vpop.permute.xlu0 %1740
    %1742 = vrot.lane.b32.xlu0 %v1608, 64
    %v1743 = vpop.permute.xlu0 %1742
    %v1745 = vsel %vm563, %v1741, 0
    %v1748 = vsel %vm563, %v1743, 0
    %1750 = vmatpush.bf16.xpose.msra.mxu0 0
    %1751 = vmatpush.bf16.xpose.msra.mxu0 0
    %1752 = vmatpush.bf16.xpose.msra.mxu0 0
    %1753 = vmatpush.bf16.xpose.msra.mxu0 0
    %1754 = vmatpush.bf16.xpose.msra.mxu0 0
    %1755 = vmatpush.bf16.xpose.msra.mxu0 0
    %1756 = vmatpush.bf16.xpose.msra.mxu0 0
    %1757 = vmatpush.bf16.xpose.msra.mxu0 %v1748
    %1758 = vmatmul.bf16.gmra.mxu0 %v1745
    %v1759 = vpop.f32.mrf.mxu0
    %v1760 = vadd.f32 %v1597, %v1759
    %v1761 = vpop.f32.mrf.mxu0
    %v1762 = vadd.f32 %v1597, %v1761
    %1763 = vdwg.mxu0
    %v1764 = vsel %vm584, %v1760, -inf
    %1765 = vmax.xlane.f32.xlu0 %v1764
    %v1766 = vpop.xlane.xlu0 %1765
    %v1767 = vsel %vm584, %v1762, -inf
    %1768 = vmax.xlane.f32.xlu0 %v1767
    %v1769 = vpop.xlane.xlu0 %1768
    %v1770 = vsub.f32 %v1760, %v1766
    %v1771 = vsub.f32 %v1762, %v1769
    %v1772 = vmul.f32 %v1770, 1.442695
    %v1773 = vpow.pop %v1772
    %v1774 = vmul.f32 %v1771, 1.442695
    %v1775 = vpow.pop %v1774
    %v1776 = vsel %vm584, %v1773, 0.0
    %1777 = vadd.xlane.f32.xlu0 %v1776
    %v1778 = vpop.xlane.xlu0 %1777
    %v1779 = vsel %vm584, %v1775, 0.0
    %1780 = vadd.xlane.f32.xlu0 %v1779
    %v1781 = vpop.xlane.xlu0 %1780
    %v1782 = vrcp.pop %v1778
    %v1783 = vrcp.pop %v1781
    %v1784 = vmul.f32 %v1773, %v1782
    %v1785 = vmul.f32 %v1775, %v1783
    %v1786 = vpack.c.bf16 %v1785, %v1784
    %1787 = vrot.lane.b32.xlu0 %v1654, 64
    %v1788 = vpop.permute.xlu0 %1787
    %v1791 = vsel %vm584, %v1786, 0
    %1793 = vmatpush.bf16.msra.mxu0 0
    %1794 = vmatpush.bf16.msra.mxu0 0
    %1795 = vmatpush.bf16.msra.mxu0 0
    %1796 = vmatpush.bf16.msra.mxu0 0
    %1797 = vmatpush.bf16.msra.mxu0 0
    %1798 = vmatpush.bf16.msra.mxu0 0
    %1799 = vmatpush.bf16.msra.mxu0 0
    %1800 = vmatpush.bf16.msra.mxu0 %v1788
    %1801 = vmatmul.bf16.gmra.mxu0 %v1791
    %v1802 = vpop.f32.mrf.mxu0
    %v1803 = vadd.f32 0.0, %v1802
    %v1804 = vpop.f32.mrf.mxu0
    %v1805 = vadd.f32 0.0, %v1804
    %1806 = vdwg.mxu0
    %1807 = vrot.lane.b32.xlu0 %v1603, 32
    %v1808 = vpop.permute.xlu0 %1807
    %1809 = vrot.lane.b32.xlu0 %v1608, 32
    %v1810 = vpop.permute.xlu0 %1809
    %v1812 = vsel %vm563, %v1808, 0
    %v1815 = vsel %vm563, %v1810, 0
    %1817 = vmatpush.bf16.xpose.msra.mxu0 0
    %1818 = vmatpush.bf16.xpose.msra.mxu0 0
    %1819 = vmatpush.bf16.xpose.msra.mxu0 0
    %1820 = vmatpush.bf16.xpose.msra.mxu0 0
    %1821 = vmatpush.bf16.xpose.msra.mxu0 0
    %1822 = vmatpush.bf16.xpose.msra.mxu0 0
    %1823 = vmatpush.bf16.xpose.msra.mxu0 0
    %1824 = vmatpush.bf16.xpose.msra.mxu0 %v1815
    %1825 = vmatmul.bf16.gmra.mxu0 %v1812
    %v1826 = vpop.f32.mrf.mxu0
    %v1827 = vadd.f32 %v1597, %v1826
    %v1828 = vpop.f32.mrf.mxu0
    %v1829 = vadd.f32 %v1597, %v1828
    %1830 = vdwg.mxu0
    %v1831 = vsel %vm584, %v1827, -inf
    %1832 = vmax.xlane.f32.xlu0 %v1831
    %v1833 = vpop.xlane.xlu0 %1832
    %v1834 = vsel %vm584, %v1829, -inf
    %1835 = vmax.xlane.f32.xlu0 %v1834
    %v1836 = vpop.xlane.xlu0 %1835
    %v1837 = vsub.f32 %v1827, %v1833
    %v1838 = vsub.f32 %v1829, %v1836
    %v1839 = vmul.f32 %v1837, 1.442695
    %v1840 = vpow.pop %v1839
    %v1841 = vmul.f32 %v1838, 1.442695
    %v1842 = vpow.pop %v1841
    %v1843 = vsel %vm584, %v1840, 0.0
    %1844 = vadd.xlane.f32.xlu0 %v1843
    %v1845 = vpop.xlane.xlu0 %1844
    %v1846 = vsel %vm584, %v1842, 0.0
    %1847 = vadd.xlane.f32.xlu0 %v1846
    %v1848 = vpop.xlane.xlu0 %1847
    %v1849 = vrcp.pop %v1845
    %v1850 = vrcp.pop %v1848
    %v1851 = vmul.f32 %v1840, %v1849
    %v1852 = vmul.f32 %v1842, %v1850
    %v1853 = vpack.c.bf16 %v1852, %v1851
    %1854 = vrot.lane.b32.xlu0 %v1654, 32
    %v1855 = vpop.permute.xlu0 %1854
    %v1858 = vsel %vm584, %v1853, 0
    %1860 = vmatpush.bf16.msra.mxu0 0
    %1861 = vmatpush.bf16.msra.mxu0 0
    %1862 = vmatpush.bf16.msra.mxu0 0
    %1863 = vmatpush.bf16.msra.mxu0 0
    %1864 = vmatpush.bf16.msra.mxu0 0
    %1865 = vmatpush.bf16.msra.mxu0 0
    %1866 = vmatpush.bf16.msra.mxu0 0
    %1867 = vmatpush.bf16.msra.mxu0 %v1855
    %1868 = vmatmul.bf16.gmra.mxu0 %v1858
    %v1869 = vpop.f32.mrf.mxu0
    %v1870 = vadd.f32 0.0, %v1869
    %v1871 = vpop.f32.mrf.mxu0
    %v1872 = vadd.f32 0.0, %v1871
    %1873 = vdwg.mxu0
    %1876 = vrot.lane.b32.xlu0 %v1736, 32
    %v1877 = vpop.permute.xlu0 %1876
    %1878 = vrot.lane.b32.xlu0 %v1738, 32
    %v1879 = vpop.permute.xlu0 %1878
    %1884 = vrot.lane.b32.xlu0 %v1803, 64
    %v1885 = vpop.permute.xlu0 %1884
    %1886 = vrot.lane.b32.xlu0 %v1805, 64
    %v1887 = vpop.permute.xlu0 %1886
    %1892 = vrot.lane.b32.xlu0 %v1870, 96
    %v1893 = vpop.permute.xlu0 %1892
    %1894 = vrot.lane.b32.xlu0 %v1872, 96
    %v1895 = vpop.permute.xlu0 %1894
    %v1898 = vsel %vm563, %v1669, %v1877
    %v1899 = vsel %vm563, %v1671, %v1879
    %v1900 = vsel %vm856, %v1898, %v1885
    %v1901 = vsel %vm856, %v1899, %v1887
    %v1902 = vsel %vm859, %v1900, %v1893
    %v1903 = vsel %vm859, %v1901, %v1895
    %v1905 = vperm.slane %v304, 0
    %v1909 = vunpack.c.l.b16 %v1590
    %v1910 = vunpack.c.l.b16 %v1591
    %v1911 = vpack.c.b16 %v1910, %v1909
    %v1914 = vunpack.c.l.b16 %v1594
    %v1915 = vunpack.c.l.b16 %v1595
    %v1916 = vpack.c.b16 %v1915, %v1914
    %v1918 = vsel %vm563, %v1911, 0
    %v1921 = vsel %vm563, %v1916, 0
    %1923 = vmatpush.bf16.xpose.msra.mxu0 0
    %1924 = vmatpush.bf16.xpose.msra.mxu0 0
    %1925 = vmatpush.bf16.xpose.msra.mxu0 0
    %1926 = vmatpush.bf16.xpose.msra.mxu0 0
    %1927 = vmatpush.bf16.xpose.msra.mxu0 0
    %1928 = vmatpush.bf16.xpose.msra.mxu0 0
    %1929 = vmatpush.bf16.xpose.msra.mxu0 0
    %1930 = vmatpush.bf16.xpose.msra.mxu0 %v1921
    %1931 = vmatmul.bf16.gmra.mxu0 %v1918
    %v1932 = vpop.f32.mrf.mxu0
    %v1933 = vadd.f32 %v1905, %v1932
    %v1934 = vpop.f32.mrf.mxu0
    %v1935 = vadd.f32 %v1905, %v1934
    %1936 = vdwg.mxu0
    %v1937 = vsel %vm584, %v1933, -inf
    %1938 = vmax.xlane.f32.xlu0 %v1937
    %v1939 = vpop.xlane.xlu0 %1938
    %v1940 = vsel %vm584, %v1935, -inf
    %1941 = vmax.xlane.f32.xlu0 %v1940
    %v1942 = vpop.xlane.xlu0 %1941
    %v1943 = vsub.f32 %v1933, %v1939
    %v1944 = vsub.f32 %v1935, %v1942
    %v1945 = vmul.f32 %v1943, 1.442695
    %v1946 = vpow.pop %v1945
    %v1947 = vmul.f32 %v1944, 1.442695
    %v1948 = vpow.pop %v1947
    %v1949 = vsel %vm584, %v1946, 0.0
    %1950 = vadd.xlane.f32.xlu0 %v1949
    %v1951 = vpop.xlane.xlu0 %1950
    %v1952 = vsel %vm584, %v1948, 0.0
    %1953 = vadd.xlane.f32.xlu0 %v1952
    %v1954 = vpop.xlane.xlu0 %1953
    %v1955 = vrcp.pop %v1951
    %v1956 = vrcp.pop %v1954
    %v1957 = vmul.f32 %v1946, %v1955
    %v1958 = vmul.f32 %v1948, %v1956
    %v1959 = vpack.c.bf16 %v1958, %v1957
    %v1960 = vunpack.c.h.b16 %v1594
    %v1961 = vunpack.c.h.b16 %v1595
    %v1962 = vpack.c.b16 %v1961, %v1960
    %v1965 = vsel %vm584, %v1959, 0
    %1967 = vmatpush.bf16.msra.mxu0 0
    %1968 = vmatpush.bf16.msra.mxu0 0
    %1969 = vmatpush.bf16.msra.mxu0 0
    %1970 = vmatpush.bf16.msra.mxu0 0
    %1971 = vmatpush.bf16.msra.mxu0 0
    %1972 = vmatpush.bf16.msra.mxu0 0
    %1973 = vmatpush.bf16.msra.mxu0 0
    %1974 = vmatpush.bf16.msra.mxu0 %v1962
    %1975 = vmatmul.bf16.gmra.mxu0 %v1965
    %v1976 = vpop.f32.mrf.mxu0
    %v1977 = vadd.f32 0.0, %v1976
    %v1978 = vpop.f32.mrf.mxu0
    %v1979 = vadd.f32 0.0, %v1978
    %1980 = vdwg.mxu0
    %1981 = vrot.lane.b32.xlu0 %v1911, 96
    %v1982 = vpop.permute.xlu0 %1981
    %1983 = vrot.lane.b32.xlu0 %v1916, 96
    %v1984 = vpop.permute.xlu0 %1983
    %v1986 = vsel %vm563, %v1982, 0
    %v1989 = vsel %vm563, %v1984, 0
    %1991 = vmatpush.bf16.xpose.msra.mxu0 0
    %1992 = vmatpush.bf16.xpose.msra.mxu0 0
    %1993 = vmatpush.bf16.xpose.msra.mxu0 0
    %1994 = vmatpush.bf16.xpose.msra.mxu0 0
    %1995 = vmatpush.bf16.xpose.msra.mxu0 0
    %1996 = vmatpush.bf16.xpose.msra.mxu0 0
    %1997 = vmatpush.bf16.xpose.msra.mxu0 0
    %1998 = vmatpush.bf16.xpose.msra.mxu0 %v1989
    %1999 = vmatmul.bf16.gmra.mxu0 %v1986
    %v2000 = vpop.f32.mrf.mxu0
    %v2001 = vadd.f32 %v1905, %v2000
    %v2002 = vpop.f32.mrf.mxu0
    %v2003 = vadd.f32 %v1905, %v2002
    %2004 = vdwg.mxu0
    %v2005 = vsel %vm584, %v2001, -inf
    %2006 = vmax.xlane.f32.xlu0 %v2005
    %v2007 = vpop.xlane.xlu0 %2006
    %v2008 = vsel %vm584, %v2003, -inf
    %2009 = vmax.xlane.f32.xlu0 %v2008
    %v2010 = vpop.xlane.xlu0 %2009
    %v2011 = vsub.f32 %v2001, %v2007
    %v2012 = vsub.f32 %v2003, %v2010
    %v2013 = vmul.f32 %v2011, 1.442695
    %v2014 = vpow.pop %v2013
    %v2015 = vmul.f32 %v2012, 1.442695
    %v2016 = vpow.pop %v2015
    %v2017 = vsel %vm584, %v2014, 0.0
    %2018 = vadd.xlane.f32.xlu0 %v2017
    %v2019 = vpop.xlane.xlu0 %2018
    %v2020 = vsel %vm584, %v2016, 0.0
    %2021 = vadd.xlane.f32.xlu0 %v2020
    %v2022 = vpop.xlane.xlu0 %2021
    %v2023 = vrcp.pop %v2019
    %v2024 = vrcp.pop %v2022
    %v2025 = vmul.f32 %v2014, %v2023
    %v2026 = vmul.f32 %v2016, %v2024
    %v2027 = vpack.c.bf16 %v2026, %v2025
    %2028 = vrot.lane.b32.xlu0 %v1962, 96
    %v2029 = vpop.permute.xlu0 %2028
    %v2032 = vsel %vm584, %v2027, 0
    %2034 = vmatpush.bf16.msra.mxu0 0
    %2035 = vmatpush.bf16.msra.mxu0 0
    %2036 = vmatpush.bf16.msra.mxu0 0
    %2037 = vmatpush.bf16.msra.mxu0 0
    %2038 = vmatpush.bf16.msra.mxu0 0
    %2039 = vmatpush.bf16.msra.mxu0 0
    %2040 = vmatpush.bf16.msra.mxu0 0
    %2041 = vmatpush.bf16.msra.mxu0 %v2029
    %2042 = vmatmul.bf16.gmra.mxu0 %v2032
    %v2043 = vpop.f32.mrf.mxu0
    %v2044 = vadd.f32 0.0, %v2043
    %v2045 = vpop.f32.mrf.mxu0
    %v2046 = vadd.f32 0.0, %v2045
    %2047 = vdwg.mxu0
    %2048 = vrot.lane.b32.xlu0 %v1911, 64
    %v2049 = vpop.permute.xlu0 %2048
    %2050 = vrot.lane.b32.xlu0 %v1916, 64
    %v2051 = vpop.permute.xlu0 %2050
    %v2053 = vsel %vm563, %v2049, 0
    %v2056 = vsel %vm563, %v2051, 0
    %2058 = vmatpush.bf16.xpose.msra.mxu0 0
    %2059 = vmatpush.bf16.xpose.msra.mxu0 0
    %2060 = vmatpush.bf16.xpose.msra.mxu0 0
    %2061 = vmatpush.bf16.xpose.msra.mxu0 0
    %2062 = vmatpush.bf16.xpose.msra.mxu0 0
    %2063 = vmatpush.bf16.xpose.msra.mxu0 0
    %2064 = vmatpush.bf16.xpose.msra.mxu0 0
    %2065 = vmatpush.bf16.xpose.msra.mxu0 %v2056
    %2066 = vmatmul.bf16.gmra.mxu0 %v2053
    %v2067 = vpop.f32.mrf.mxu0
    %v2068 = vadd.f32 %v1905, %v2067
    %v2069 = vpop.f32.mrf.mxu0
    %v2070 = vadd.f32 %v1905, %v2069
    %2071 = vdwg.mxu0
    %v2072 = vsel %vm584, %v2068, -inf
    %2073 = vmax.xlane.f32.xlu0 %v2072
    %v2074 = vpop.xlane.xlu0 %2073
    %v2075 = vsel %vm584, %v2070, -inf
    %2076 = vmax.xlane.f32.xlu0 %v2075
    %v2077 = vpop.xlane.xlu0 %2076
    %v2078 = vsub.f32 %v2068, %v2074
    %v2079 = vsub.f32 %v2070, %v2077
    %v2080 = vmul.f32 %v2078, 1.442695
    %v2081 = vpow.pop %v2080
    %v2082 = vmul.f32 %v2079, 1.442695
    %v2083 = vpow.pop %v2082
    %v2084 = vsel %vm584, %v2081, 0.0
    %2085 = vadd.xlane.f32.xlu0 %v2084
    %v2086 = vpop.xlane.xlu0 %2085
    %v2087 = vsel %vm584, %v2083, 0.0
    %2088 = vadd.xlane.f32.xlu0 %v2087
    %v2089 = vpop.xlane.xlu0 %2088
    %v2090 = vrcp.pop %v2086
    %v2091 = vrcp.pop %v2089
    %v2092 = vmul.f32 %v2081, %v2090
    %v2093 = vmul.f32 %v2083, %v2091
    %v2094 = vpack.c.bf16 %v2093, %v2092
    %2095 = vrot.lane.b32.xlu0 %v1962, 64
    %v2096 = vpop.permute.xlu0 %2095
    %v2099 = vsel %vm584, %v2094, 0
    %2101 = vmatpush.bf16.msra.mxu0 0
    %2102 = vmatpush.bf16.msra.mxu0 0
    %2103 = vmatpush.bf16.msra.mxu0 0
    %2104 = vmatpush.bf16.msra.mxu0 0
    %2105 = vmatpush.bf16.msra.mxu0 0
    %2106 = vmatpush.bf16.msra.mxu0 0
    %2107 = vmatpush.bf16.msra.mxu0 0
    %2108 = vmatpush.bf16.msra.mxu0 %v2096
    %2109 = vmatmul.bf16.gmra.mxu0 %v2099
    %v2110 = vpop.f32.mrf.mxu0
    %v2111 = vadd.f32 0.0, %v2110
    %v2112 = vpop.f32.mrf.mxu0
    %v2113 = vadd.f32 0.0, %v2112
    %2114 = vdwg.mxu0
    %2115 = vrot.lane.b32.xlu0 %v1911, 32
    %v2116 = vpop.permute.xlu0 %2115
    %2117 = vrot.lane.b32.xlu0 %v1916, 32
    %v2118 = vpop.permute.xlu0 %2117
    %v2120 = vsel %vm563, %v2116, 0
    %v2123 = vsel %vm563, %v2118, 0
    %2125 = vmatpush.bf16.xpose.msra.mxu0 0
    %2126 = vmatpush.bf16.xpose.msra.mxu0 0
    %2127 = vmatpush.bf16.xpose.msra.mxu0 0
    %2128 = vmatpush.bf16.xpose.msra.mxu0 0
    %2129 = vmatpush.bf16.xpose.msra.mxu0 0
    %2130 = vmatpush.bf16.xpose.msra.mxu0 0
    %2131 = vmatpush.bf16.xpose.msra.mxu0 0
    %2132 = vmatpush.bf16.xpose.msra.mxu0 %v2123
    %2133 = vmatmul.bf16.gmra.mxu0 %v2120
    %v2134 = vpop.f32.mrf.mxu0
    %v2135 = vadd.f32 %v1905, %v2134
    %v2136 = vpop.f32.mrf.mxu0
    %v2137 = vadd.f32 %v1905, %v2136
    %2138 = vdwg.mxu0
    %v2139 = vsel %vm584, %v2135, -inf
    %2140 = vmax.xlane.f32.xlu0 %v2139
    %v2141 = vpop.xlane.xlu0 %2140
    %v2142 = vsel %vm584, %v2137, -inf
    %2143 = vmax.xlane.f32.xlu0 %v2142
    %v2144 = vpop.xlane.xlu0 %2143
    %v2145 = vsub.f32 %v2135, %v2141
    %v2146 = vsub.f32 %v2137, %v2144
    %v2147 = vmul.f32 %v2145, 1.442695
    %v2148 = vpow.pop %v2147
    %v2149 = vmul.f32 %v2146, 1.442695
    %v2150 = vpow.pop %v2149
    %v2151 = vsel %vm584, %v2148, 0.0
    %2152 = vadd.xlane.f32.xlu0 %v2151
    %v2153 = vpop.xlane.xlu0 %2152
    %v2154 = vsel %vm584, %v2150, 0.0
    %2155 = vadd.xlane.f32.xlu0 %v2154
    %v2156 = vpop.xlane.xlu0 %2155
    %v2157 = vrcp.pop %v2153
    %v2158 = vrcp.pop %v2156
    %v2159 = vmul.f32 %v2148, %v2157
    %v2160 = vmul.f32 %v2150, %v2158
    %v2161 = vpack.c.bf16 %v2160, %v2159
    %2162 = vrot.lane.b32.xlu0 %v1962, 32
    %v2163 = vpop.permute.xlu0 %2162
    %v2166 = vsel %vm584, %v2161, 0
    %2168 = vmatpush.bf16.msra.mxu0 0
    %2169 = vmatpush.bf16.msra.mxu0 0
    %2170 = vmatpush.bf16.msra.mxu0 0
    %2171 = vmatpush.bf16.msra.mxu0 0
    %2172 = vmatpush.bf16.msra.mxu0 0
    %2173 = vmatpush.bf16.msra.mxu0 0
    %2174 = vmatpush.bf16.msra.mxu0 0
    %2175 = vmatpush.bf16.msra.mxu0 %v2163
    %2176 = vmatmul.bf16.gmra.mxu0 %v2166
    %v2177 = vpop.f32.mrf.mxu0
    %v2178 = vadd.f32 0.0, %v2177
    %v2179 = vpop.f32.mrf.mxu0
    %v2180 = vadd.f32 0.0, %v2179
    %2181 = vdwg.mxu0
    %2184 = vrot.lane.b32.xlu0 %v2044, 32
    %v2185 = vpop.permute.xlu0 %2184
    %2186 = vrot.lane.b32.xlu0 %v2046, 32
    %v2187 = vpop.permute.xlu0 %2186
    %2192 = vrot.lane.b32.xlu0 %v2111, 64
    %v2193 = vpop.permute.xlu0 %2192
    %2194 = vrot.lane.b32.xlu0 %v2113, 64
    %v2195 = vpop.permute.xlu0 %2194
    %2200 = vrot.lane.b32.xlu0 %v2178, 96
    %v2201 = vpop.permute.xlu0 %2200
    %2202 = vrot.lane.b32.xlu0 %v2180, 96
    %v2203 = vpop.permute.xlu0 %2202
    %v2206 = vsel %vm563, %v1977, %v2185
    %v2207 = vsel %vm563, %v1979, %v2187
    %v2208 = vsel %vm856, %v2206, %v2193
    %v2209 = vsel %vm856, %v2207, %v2195
    %v2210 = vsel %vm859, %v2208, %v2201
    %v2211 = vsel %vm859, %v2209, %v2203
    %v2212 = vpack.c.bf16 %v1903, %v1902
    %v2213 = vpack.c.bf16 %v2211, %v2210
    %v2214 = vld [vmem:[#allocation22] sm:$0xf]
    %v2215 = vld [vmem:[#allocation22 + $0x4] sm:$0xf]
    %v2216 = vld [vmem:[#allocation22 + $0x8] sm:$0xf]
    %v2217 = vld [vmem:[#allocation22 + $0xc] sm:$0xf]
    %v2218 = vld [vmem:[#allocation22 + $0x10] sm:$0xf]
    %v2219 = vld [vmem:[#allocation22 + $0x14] sm:$0xf]
    %v2220 = vld [vmem:[#allocation22 + $0x18] sm:$0xf]
    %v2221 = vld [vmem:[#allocation22 + $0x1c] sm:$0xf]
    %v2222 = vld [vmem:[#allocation22 + $0x20] sm:$0xf]
    %v2223 = vld [vmem:[#allocation22 + $0x24] sm:$0xf]
    %v2224 = vld [vmem:[#allocation22 + $0x28] sm:$0xf]
    %v2225 = vld [vmem:[#allocation22 + $0x2c] sm:$0xf]
    %v2226 = vld [vmem:[#allocation22 + $0x30] sm:$0xf]
    %v2227 = vld [vmem:[#allocation22 + $0x34] sm:$0xf]
    %v2228 = vld [vmem:[#allocation22 + $0x38] sm:$0xf]
    %v2229 = vld [vmem:[#allocation22 + $0x3c] sm:$0xf]
    %v2230 = vld [vmem:[%s14] sm:$0x1]
    %v2232 = vperm.slane %v2230, 0
    %v2250 = vunpack.c.l.b16 %v2214
    %v2251 = vunpack.c.l.b16 %v2215
    %v2252 = vunpack.c.l.b16 %v2216
    %v2253 = vunpack.c.l.b16 %v2217
    %v2254 = vunpack.c.l.b16 %v2218
    %v2255 = vunpack.c.l.b16 %v2219
    %v2256 = vunpack.c.l.b16 %v2220
    %v2257 = vunpack.c.l.b16 %v2221
    %v2258 = vunpack.c.l.b16 %v2222
    %v2259 = vunpack.c.l.b16 %v2223
    %v2260 = vunpack.c.l.b16 %v2224
    %v2261 = vunpack.c.l.b16 %v2225
    %v2262 = vunpack.c.l.b16 %v2226
    %v2263 = vunpack.c.l.b16 %v2227
    %v2264 = vunpack.c.l.b16 %v2228
    %v2265 = vunpack.c.l.b16 %v2229
    %v2266 = vpack.c.b16 %v2251, %v2250
    %v2267 = vpack.c.b16 %v2253, %v2252
    %v2268 = vpack.c.b16 %v2255, %v2254
    %v2269 = vpack.c.b16 %v2257, %v2256
    %v2270 = vpack.c.b16 %v2259, %v2258
    %v2271 = vpack.c.b16 %v2261, %v2260
    %v2272 = vpack.c.b16 %v2263, %v2262
    %v2273 = vpack.c.b16 %v2265, %v2264
    %2282 = vmatpush.bf16.msra.mxu0 %v2273
    %2283 = vmatpush.bf16.msra.mxu0 %v2272
    %2284 = vmatpush.bf16.msra.mxu0 %v2271
    %2285 = vmatpush.bf16.msra.mxu0 %v2270
    %2286 = vmatpush.bf16.msra.mxu0 %v2269
    %2287 = vmatpush.bf16.msra.mxu0 %v2268
    %2288 = vmatpush.bf16.msra.mxu0 %v2267
    %2289 = vmatpush.bf16.msra.mxu0 %v2266
    %2290 = vmatmul.bf16.gmra.mxu0 %v2212
    %v2291 = vpop.f32.mrf.mxu0
    %v2292 = vadd.f32 %v2232, %v2291
    %v2293 = vpop.f32.mrf.mxu0
    %v2294 = vadd.f32 %v2232, %v2293
    %2295 = vmatmul.bf16.gmra.mxu0 %v2213
    %v2296 = vpop.f32.mrf.mxu0
    %v2297 = vadd.f32 %v2232, %v2296
    %v2298 = vpop.f32.mrf.mxu0
    %v2299 = vadd.f32 %v2232, %v2298
    %2300 = vdwg.mxu0
    %v2301 = vadd.f32 %v1353, %v2292
    %v2302 = vadd.f32 %v1354, %v2294
    %v2303 = vadd.f32 %v1355, %v2297
    %v2304 = vadd.f32 %v1356, %v2299
    %2305 = vadd.xlane.f32.xlu0 %v2301
    %v2306 = vpop.xlane.xlu0 %2305
    %2307 = vadd.xlane.f32.xlu0 %v2302
    %v2308 = vpop.xlane.xlu0 %2307
    %2309 = vadd.xlane.f32.xlu0 %v2303
    %v2310 = vpop.xlane.xlu0 %2309
    %2311 = vadd.xlane.f32.xlu0 %v2304
    %v2312 = vpop.xlane.xlu0 %2311
    %v2313 = vmul.f32 %v2306, %v1274
    %v2314 = vmul.f32 %v2308, %v1274
    %v2315 = vmul.f32 %v2310, %v1274
    %v2316 = vmul.f32 %v2312, %v1274
    %v2317 = vsub.f32 %v2301, %v2313
    %v2318 = vsub.f32 %v2302, %v2314
    %v2319 = vsub.f32 %v2303, %v2315
    %v2320 = vsub.f32 %v2304, %v2316
    %v2321 = vmul.f32 %v2317, %v2317
    %v2322 = vmul.f32 %v2318, %v2318
    %v2323 = vmul.f32 %v2319, %v2319
    %v2324 = vmul.f32 %v2320, %v2320
    %2325 = vadd.xlane.f32.xlu0 %v2321
    %v2326 = vpop.xlane.xlu0 %2325
    %2327 = vadd.xlane.f32.xlu0 %v2322
    %v2328 = vpop.xlane.xlu0 %2327
    %2329 = vadd.xlane.f32.xlu0 %v2323
    %v2330 = vpop.xlane.xlu0 %2329
    %2331 = vadd.xlane.f32.xlu0 %v2324
    %v2332 = vpop.xlane.xlu0 %2331
    %v2333 = vmul.f32 %v2326, %v1274
    %v2334 = vmul.f32 %v2328, %v1274
    %v2335 = vmul.f32 %v2330, %v1274
    %v2336 = vmul.f32 %v2332, %v1274
    %v2337 = vadd.f32 %v2333, 1e-05
    %v2338 = vadd.f32 %v2334, 1e-05
    %v2339 = vadd.f32 %v2335, 1e-05
    %v2340 = vadd.f32 %v2336, 1e-05
    %v2341 = vrsqrt.pop %v2337
    %v2342 = vmul.f32 %v2341, %v2337
    %v2343 = vmul.f32 %v2342, %v2341
    %v2344 = vmul.f32 0.5, %v2343
    %v2345 = vsub.f32 1.5, %v2344
    %v2346 = vmul.f32 %v2341, %v2345
    %vm2347 = vweird.f32 %v2337
    %vm2348 = vweird.f32 %v2341
    %vm2349 = vmor %vm2347, %vm2348
    %v2350 = vsel %vm2349, %v2341, %v2346
    %v2351 = vrsqrt.pop %v2338
    %v2352 = vmul.f32 %v2351, %v2338
    %v2353 = vmul.f32 %v2352, %v2351
    %v2354 = vmul.f32 0.5, %v2353
    %v2355 = vsub.f32 1.5, %v2354
    %v2356 = vmul.f32 %v2351, %v2355
    %vm2357 = vweird.f32 %v2338
    %vm2358 = vweird.f32 %v2351
    %vm2359 = vmor %vm2357, %vm2358
    %v2360 = vsel %vm2359, %v2351, %v2356
    %v2361 = vrsqrt.pop %v2339
    %v2362 = vmul.f32 %v2361, %v2339
    %v2363 = vmul.f32 %v2362, %v2361
    %v2364 = vmul.f32 0.5, %v2363
    %v2365 = vsub.f32 1.5, %v2364
    %v2366 = vmul.f32 %v2361, %v2365
    %vm2367 = vweird.f32 %v2339
    %vm2368 = vweird.f32 %v2361
    %vm2369 = vmor %vm2367, %vm2368
    %v2370 = vsel %vm2369, %v2361, %v2366
    %v2371 = vrsqrt.pop %v2340
    %v2372 = vmul.f32 %v2371, %v2340
    %v2373 = vmul.f32 %v2372, %v2371
    %v2374 = vmul.f32 0.5, %v2373
    %v2375 = vsub.f32 1.5, %v2374
    %v2376 = vmul.f32 %v2371, %v2375
    %vm2377 = vweird.f32 %v2340
    %vm2378 = vweird.f32 %v2371
    %vm2379 = vmor %vm2377, %vm2378
    %v2380 = vsel %vm2379, %v2371, %v2376
    %v2381 = vmul.f32 %v2317, %v2350
    %v2382 = vmul.f32 %v2318, %v2360
    %v2383 = vmul.f32 %v2319, %v2370
    %v2384 = vmul.f32 %v2320, %v2380
    %v2385 = vperm.slane %v305, 1
    %v2386 = vmul.f32 %v2381, %v2385
    %v2387 = vmul.f32 %v2382, %v2385
    %v2388 = vmul.f32 %v2383, %v2385
    %v2389 = vmul.f32 %v2384, %v2385
    %v2390 = vperm.slane %v306, 1
    %v2391 = vadd.f32 %v2386, %v2390
    %v2392 = vadd.f32 %v2387, %v2390
    %v2393 = vadd.f32 %v2388, %v2390
    %v2394 = vadd.f32 %v2389, %v2390
    %v2395 = vpack.c.bf16 %v2392, %v2391
    %v2396 = vpack.c.bf16 %v2394, %v2393
    %v2397 = vld [vmem:[#allocation23] sm:$0xff]
    %v2398 = vld [vmem:[#allocation23 + $0x8] sm:$0xff]
    %v2399 = vld [vmem:[#allocation23 + $0x10] sm:$0xff]
    %v2400 = vld [vmem:[#allocation23 + $0x18] sm:$0xff]
    %v2401 = vld [vmem:[#allocation23 + $0x20] sm:$0xff]
    %v2402 = vld [vmem:[#allocation23 + $0x28] sm:$0xff]
    %v2403 = vld [vmem:[#allocation23 + $0x30] sm:$0xff]
    %v2404 = vld [vmem:[#allocation23 + $0x38] sm:$0xff]
    %v2405 = vld [vmem:[#allocation23 + $0x40] sm:$0xff]
    %v2406 = vld [vmem:[#allocation23 + $0x48] sm:$0xff]
    %v2407 = vld [vmem:[#allocation23 + $0x50] sm:$0xff]
    %v2408 = vld [vmem:[#allocation23 + $0x58] sm:$0xff]
    %v2409 = vld [vmem:[#allocation23 + $0x60] sm:$0xff]
    %v2410 = vld [vmem:[#allocation23 + $0x68] sm:$0xff]
    %v2411 = vld [vmem:[#allocation23 + $0x70] sm:$0xff]
    %v2412 = vld [vmem:[#allocation23 + $0x78] sm:$0xff]
    %v2413 = vld [vmem:[%s16] sm:$0x3]
    %v2415 = vperm.slane %v2413, 0
    %v2416 = vperm.slane %v2413, 1
    %v2435 = vunpack.c.l.b16 %v2397
    %v2436 = vunpack.c.h.b16 %v2397
    %v2437 = vunpack.c.l.b16 %v2398
    %v2438 = vunpack.c.h.b16 %v2398
    %v2439 = vunpack.c.l.b16 %v2399
    %v2440 = vunpack.c.h.b16 %v2399
    %v2441 = vunpack.c.l.b16 %v2400
    %v2442 = vunpack.c.h.b16 %v2400
    %v2443 = vunpack.c.l.b16 %v2401
    %v2444 = vunpack.c.h.b16 %v2401
    %v2445 = vunpack.c.l.b16 %v2402
    %v2446 = vunpack.c.h.b16 %v2402
    %v2447 = vunpack.c.l.b16 %v2403
    %v2448 = vunpack.c.h.b16 %v2403
    %v2449 = vunpack.c.l.b16 %v2404
    %v2450 = vunpack.c.h.b16 %v2404
    %v2451 = vunpack.c.l.b16 %v2405
    %v2452 = vunpack.c.h.b16 %v2405
    %v2453 = vunpack.c.l.b16 %v2406
    %v2454 = vunpack.c.h.b16 %v2406
    %v2455 = vunpack.c.l.b16 %v2407
    %v2456 = vunpack.c.h.b16 %v2407
    %v2457 = vunpack.c.l.b16 %v2408
    %v2458 = vunpack.c.h.b16 %v2408
    %v2459 = vunpack.c.l.b16 %v2409
    %v2460 = vunpack.c.h.b16 %v2409
    %v2461 = vunpack.c.l.b16 %v2410
    %v2462 = vunpack.c.h.b16 %v2410
    %v2463 = vunpack.c.l.b16 %v2411
    %v2464 = vunpack.c.h.b16 %v2411
    %v2465 = vunpack.c.l.b16 %v2412
    %v2466 = vunpack.c.h.b16 %v2412
    %v2467 = vpack.c.b16 %v2437, %v2435
    %v2468 = vpack.c.b16 %v2438, %v2436
    %v2469 = vpack.c.b16 %v2441, %v2439
    %v2470 = vpack.c.b16 %v2442, %v2440
    %v2471 = vpack.c.b16 %v2445, %v2443
    %v2472 = vpack.c.b16 %v2446, %v2444
    %v2473 = vpack.c.b16 %v2449, %v2447
    %v2474 = vpack.c.b16 %v2450, %v2448
    %v2475 = vpack.c.b16 %v2453, %v2451
    %v2476 = vpack.c.b16 %v2454, %v2452
    %v2477 = vpack.c.b16 %v2457, %v2455
    %v2478 = vpack.c.b16 %v2458, %v2456
    %v2479 = vpack.c.b16 %v2461, %v2459
    %v2480 = vpack.c.b16 %v2462, %v2460
    %v2481 = vpack.c.b16 %v2465, %v2463
    %v2482 = vpack.c.b16 %v2466, %v2464
    %2499 = vmatpush.bf16.msra.mxu0 %v2481
    %2500 = vmatpush.bf16.msra.mxu0 %v2479
    %2501 = vmatpush.bf16.msra.mxu0 %v2477
    %2502 = vmatpush.bf16.msra.mxu0 %v2475
    %2503 = vmatpush.bf16.msra.mxu0 %v2473
    %2504 = vmatpush.bf16.msra.mxu0 %v2471
    %2505 = vmatpush.bf16.msra.mxu0 %v2469
    %2506 = vmatpush.bf16.msra.mxu0 %v2467
    %2507 = vmatmul.bf16.gmra.mxu0 %v2395
    %v2508 = vpop.f32.mrf.mxu0
    %v2509 = vadd.f32 %v2415, %v2508
    %v2510 = vpop.f32.mrf.mxu0
    %v2511 = vadd.f32 %v2415, %v2510
    %2512 = vmatmul.bf16.gmra.mxu0 %v2396
    %v2513 = vpop.f32.mrf.mxu0
    %v2514 = vadd.f32 %v2415, %v2513
    %v2515 = vpop.f32.mrf.mxu0
    %v2516 = vadd.f32 %v2415, %v2515
    %2517 = vdwg.mxu0
    %2518 = vmatpush.bf16.msra.mxu0 %v2482
    %2519 = vmatpush.bf16.msra.mxu0 %v2480
    %2520 = vmatpush.bf16.msra.mxu0 %v2478
    %2521 = vmatpush.bf16.msra.mxu0 %v2476
    %2522 = vmatpush.bf16.msra.mxu0 %v2474
    %2523 = vmatpush.bf16.msra.mxu0 %v2472
    %2524 = vmatpush.bf16.msra.mxu0 %v2470
    %2525 = vmatpush.bf16.msra.mxu0 %v2468
    %2526 = vmatmul.bf16.gmra.mxu0 %v2395
    %v2527 = vpop.f32.mrf.mxu0
    %v2528 = vadd.f32 %v2416, %v2527
    %v2529 = vpop.f32.mrf.mxu0
    %v2530 = vadd.f32 %v2416, %v2529
    %2531 = vmatmul.bf16.gmra.mxu0 %v2396
    %v2532 = vpop.f32.mrf.mxu0
    %v2533 = vadd.f32 %v2416, %v2532
    %v2534 = vpop.f32.mrf.mxu0
    %v2535 = vadd.f32 %v2416, %v2534
    %2536 = vdwg.mxu0
    %v2537 = vmax.f32 %v2509, 0.0
    %v2538 = vmax.f32 %v2528, 0.0
    %v2539 = vmax.f32 %v2511, 0.0
    %v2540 = vmax.f32 %v2530, 0.0
    %v2541 = vmax.f32 %v2514, 0.0
    %v2542 = vmax.f32 %v2533, 0.0
    %v2543 = vmax.f32 %v2516, 0.0
    %v2544 = vmax.f32 %v2535, 0.0
    %v2545 = vpack.c.bf16 %v2539, %v2537
    %v2546 = vpack.c.bf16 %v2540, %v2538
    %v2547 = vpack.c.bf16 %v2543, %v2541
    %v2548 = vpack.c.bf16 %v2544, %v2542
    %v2549 = vld [vmem:[#allocation25] sm:$0xf]
    %v2550 = vld [vmem:[#allocation25 + $0x4] sm:$0xf]
    %v2551 = vld [vmem:[#allocation25 + $0x8] sm:$0xf]
    %v2552 = vld [vmem:[#allocation25 + $0xc] sm:$0xf]
    %v2553 = vld [vmem:[#allocation25 + $0x10] sm:$0xf]
    %v2554 = vld [vmem:[#allocation25 + $0x14] sm:$0xf]
    %v2555 = vld [vmem:[#allocation25 + $0x18] sm:$0xf]
    %v2556 = vld [vmem:[#allocation25 + $0x1c] sm:$0xf]
    %v2557 = vld [vmem:[#allocation25 + $0x20] sm:$0xf]
    %v2558 = vld [vmem:[#allocation25 + $0x24] sm:$0xf]
    %v2559 = vld [vmem:[#allocation25 + $0x28] sm:$0xf]
    %v2560 = vld [vmem:[#allocation25 + $0x2c] sm:$0xf]
    %v2561 = vld [vmem:[#allocation25 + $0x30] sm:$0xf]
    %v2562 = vld [vmem:[#allocation25 + $0x34] sm:$0xf]
    %v2563 = vld [vmem:[#allocation25 + $0x38] sm:$0xf]
    %v2564 = vld [vmem:[#allocation25 + $0x3c] sm:$0xf]
    %v2565 = vld [vmem:[#allocation25 + $0x40] sm:$0xf]
    %v2566 = vld [vmem:[#allocation25 + $0x44] sm:$0xf]
    %v2567 = vld [vmem:[#allocation25 + $0x48] sm:$0xf]
    %v2568 = vld [vmem:[#allocation25 + $0x4c] sm:$0xf]
    %v2569 = vld [vmem:[#allocation25 + $0x50] sm:$0xf]
    %v2570 = vld [vmem:[#allocation25 + $0x54] sm:$0xf]
    %v2571 = vld [vmem:[#allocation25 + $0x58] sm:$0xf]
    %v2572 = vld [vmem:[#allocation25 + $0x5c] sm:$0xf]
    %v2573 = vld [vmem:[#allocation25 + $0x60] sm:$0xf]
    %v2574 = vld [vmem:[#allocation25 + $0x64] sm:$0xf]
    %v2575 = vld [vmem:[#allocation25 + $0x68] sm:$0xf]
    %v2576 = vld [vmem:[#allocation25 + $0x6c] sm:$0xf]
    %v2577 = vld [vmem:[#allocation25 + $0x70] sm:$0xf]
    %v2578 = vld [vmem:[#allocation25 + $0x74] sm:$0xf]
    %v2579 = vld [vmem:[#allocation25 + $0x78] sm:$0xf]
    %v2580 = vld [vmem:[#allocation25 + $0x7c] sm:$0xf]
    %v2581 = vld [vmem:[%s18] sm:$0x1]
    %v2583 = vperm.slane %v2581, 0
    %v2617 = vunpack.c.l.b16 %v2549
    %v2618 = vunpack.c.l.b16 %v2550
    %v2619 = vunpack.c.l.b16 %v2551
    %v2620 = vunpack.c.l.b16 %v2552
    %v2621 = vunpack.c.l.b16 %v2553
    %v2622 = vunpack.c.l.b16 %v2554
    %v2623 = vunpack.c.l.b16 %v2555
    %v2624 = vunpack.c.l.b16 %v2556
    %v2625 = vunpack.c.l.b16 %v2557
    %v2626 = vunpack.c.l.b16 %v2558
    %v2627 = vunpack.c.l.b16 %v2559
    %v2628 = vunpack.c.l.b16 %v2560
    %v2629 = vunpack.c.l.b16 %v2561
    %v2630 = vunpack.c.l.b16 %v2562
    %v2631 = vunpack.c.l.b16 %v2563
    %v2632 = vunpack.c.l.b16 %v2564
    %v2633 = vunpack.c.l.b16 %v2565
    %v2634 = vunpack.c.l.b16 %v2566
    %v2635 = vunpack.c.l.b16 %v2567
    %v2636 = vunpack.c.l.b16 %v2568
    %v2637 = vunpack.c.l.b16 %v2569
    %v2638 = vunpack.c.l.b16 %v2570
    %v2639 = vunpack.c.l.b16 %v2571
    %v2640 = vunpack.c.l.b16 %v2572
    %v2641 = vunpack.c.l.b16 %v2573
    %v2642 = vunpack.c.l.b16 %v2574
    %v2643 = vunpack.c.l.b16 %v2575
    %v2644 = vunpack.c.l.b16 %v2576
    %v2645 = vunpack.c.l.b16 %v2577
    %v2646 = vunpack.c.l.b16 %v2578
    %v2647 = vunpack.c.l.b16 %v2579
    %v2648 = vunpack.c.l.b16 %v2580
    %v2649 = vpack.c.b16 %v2618, %v2617
    %v2650 = vpack.c.b16 %v2620, %v2619
    %v2651 = vpack.c.b16 %v2622, %v2621
    %v2652 = vpack.c.b16 %v2624, %v2623
    %v2653 = vpack.c.b16 %v2626, %v2625
    %v2654 = vpack.c.b16 %v2628, %v2627
    %v2655 = vpack.c.b16 %v2630, %v2629
    %v2656 = vpack.c.b16 %v2632, %v2631
    %v2657 = vpack.c.b16 %v2634, %v2633
    %v2658 = vpack.c.b16 %v2636, %v2635
    %v2659 = vpack.c.b16 %v2638, %v2637
    %v2660 = vpack.c.b16 %v2640, %v2639
    %v2661 = vpack.c.b16 %v2642, %v2641
    %v2662 = vpack.c.b16 %v2644, %v2643
    %v2663 = vpack.c.b16 %v2646, %v2645
    %v2664 = vpack.c.b16 %v2648, %v2647
    %2681 = vmatpush.bf16.msra.mxu0 %v2656
    %2682 = vmatpush.bf16.msra.mxu0 %v2655
    %2683 = vmatpush.bf16.msra.mxu0 %v2654
    %2684 = vmatpush.bf16.msra.mxu0 %v2653
    %2685 = vmatpush.bf16.msra.mxu0 %v2652
    %2686 = vmatpush.bf16.msra.mxu0 %v2651
    %2687 = vmatpush.bf16.msra.mxu0 %v2650
    %2688 = vmatpush.bf16.msra.mxu0 %v2649
    %2689 = vmatmul.bf16.gmra.mxu0 %v2545
    %v2690 = vpop.f32.mrf.mxu0
    %v2691 = vadd.f32 %v2583, %v2690
    %v2692 = vpop.f32.mrf.mxu0
    %v2693 = vadd.f32 %v2583, %v2692
    %2694 = vmatmul.bf16.gmra.mxu0 %v2547
    %v2695 = vpop.f32.mrf.mxu0
    %v2696 = vadd.f32 %v2583, %v2695
    %v2697 = vpop.f32.mrf.mxu0
    %v2698 = vadd.f32 %v2583, %v2697
    %2699 = vdwg.mxu0
    %2700 = vmatpush.bf16.msra.mxu0 %v2664
    %2701 = vmatpush.bf16.msra.mxu0 %v2663
    %2702 = vmatpush.bf16.msra.mxu0 %v2662
    %2703 = vmatpush.bf16.msra.mxu0 %v2661
    %2704 = vmatpush.bf16.msra.mxu0 %v2660
    %2705 = vmatpush.bf16.msra.mxu0 %v2659
    %2706 = vmatpush.bf16.msra.mxu0 %v2658
    %2707 = vmatpush.bf16.msra.mxu0 %v2657
    %2708 = vmatmul.bf16.gmra.mxu0 %v2546
    %v2709 = vpop.f32.mrf.mxu0
    %v2710 = vadd.f32 %v2691, %v2709
    %v2711 = vpop.f32.mrf.mxu0
    %v2712 = vadd.f32 %v2693, %v2711
    %2713 = vmatmul.bf16.gmra.mxu0 %v2548
    %v2714 = vpop.f32.mrf.mxu0
    %v2715 = vadd.f32 %v2696, %v2714
    %v2716 = vpop.f32.mrf.mxu0
    %v2717 = vadd.f32 %v2698, %v2716
    %2718 = vdwg.mxu0
    %v2719 = vadd.f32 %v2391, %v2710
    %v2720 = vadd.f32 %v2392, %v2712
    %v2721 = vadd.f32 %v2393, %v2715
    %v2722 = vadd.f32 %v2394, %v2717
    %2723 = vadd.xlane.f32.xlu0 %v2719
    %v2724 = vpop.xlane.xlu0 %2723
    %2725 = vadd.xlane.f32.xlu0 %v2720
    %v2726 = vpop.xlane.xlu0 %2725
    %2727 = vadd.xlane.f32.xlu0 %v2721
    %v2728 = vpop.xlane.xlu0 %2727
    %2729 = vadd.xlane.f32.xlu0 %v2722
    %v2730 = vpop.xlane.xlu0 %2729
    %v2731 = vmul.f32 %v2724, %v1274
    %v2732 = vmul.f32 %v2726, %v1274
    %v2733 = vmul.f32 %v2728, %v1274
    %v2734 = vmul.f32 %v2730, %v1274
    %v2735 = vsub.f32 %v2719, %v2731
    %v2736 = vsub.f32 %v2720, %v2732
    %v2737 = vsub.f32 %v2721, %v2733
    %v2738 = vsub.f32 %v2722, %v2734
    %v2739 = vmul.f32 %v2735, %v2735
    %v2740 = vmul.f32 %v2736, %v2736
    %v2741 = vmul.f32 %v2737, %v2737
    %v2742 = vmul.f32 %v2738, %v2738
    %2743 = vadd.xlane.f32.xlu0 %v2739
    %v2744 = vpop.xlane.xlu0 %2743
    %2745 = vadd.xlane.f32.xlu0 %v2740
    %v2746 = vpop.xlane.xlu0 %2745
    %2747 = vadd.xlane.f32.xlu0 %v2741
    %v2748 = vpop.xlane.xlu0 %2747
    %2749 = vadd.xlane.f32.xlu0 %v2742
    %v2750 = vpop.xlane.xlu0 %2749
    %v2751 = vmul.f32 %v2744, %v1274
    %v2752 = vmul.f32 %v2746, %v1274
    %v2753 = vmul.f32 %v2748, %v1274
    %v2754 = vmul.f32 %v2750, %v1274
    %v2755 = vadd.f32 %v2751, 1e-05
    %v2756 = vadd.f32 %v2752, 1e-05
    %v2757 = vadd.f32 %v2753, 1e-05
    %v2758 = vadd.f32 %v2754, 1e-05
    %v2759 = vrsqrt.pop %v2755
    %v2760 = vmul.f32 %v2759, %v2755
    %v2761 = vmul.f32 %v2760, %v2759
    %v2762 = vmul.f32 0.5, %v2761
    %v2763 = vsub.f32 1.5, %v2762
    %v2764 = vmul.f32 %v2759, %v2763
    %vm2765 = vweird.f32 %v2755
    %vm2766 = vweird.f32 %v2759
    %vm2767 = vmor %vm2765, %vm2766
    %v2768 = vsel %vm2767, %v2759, %v2764
    %v2769 = vrsqrt.pop %v2756
    %v2770 = vmul.f32 %v2769, %v2756
    %v2771 = vmul.f32 %v2770, %v2769
    %v2772 = vmul.f32 0.5, %v2771
    %v2773 = vsub.f32 1.5, %v2772
    %v2774 = vmul.f32 %v2769, %v2773
    %vm2775 = vweird.f32 %v2756
    %vm2776 = vweird.f32 %v2769
    %vm2777 = vmor %vm2775, %vm2776
    %v2778 = vsel %vm2777, %v2769, %v2774
    %v2779 = vrsqrt.pop %v2757
    %v2780 = vmul.f32 %v2779, %v2757
    %v2781 = vmul.f32 %v2780, %v2779
    %v2782 = vmul.f32 0.5, %v2781
    %v2783 = vsub.f32 1.5, %v2782
    %v2784 = vmul.f32 %v2779, %v2783
    %vm2785 = vweird.f32 %v2757
    %vm2786 = vweird.f32 %v2779
    %vm2787 = vmor %vm2785, %vm2786
    %v2788 = vsel %vm2787, %v2779, %v2784
    %v2789 = vrsqrt.pop %v2758
    %v2790 = vmul.f32 %v2789, %v2758
    %v2791 = vmul.f32 %v2790, %v2789
    %v2792 = vmul.f32 0.5, %v2791
    %v2793 = vsub.f32 1.5, %v2792
    %v2794 = vmul.f32 %v2789, %v2793
    %vm2795 = vweird.f32 %v2758
    %vm2796 = vweird.f32 %v2789
    %vm2797 = vmor %vm2795, %vm2796
    %v2798 = vsel %vm2797, %v2789, %v2794
    %v2799 = vmul.f32 %v2735, %v2768
    %v2800 = vmul.f32 %v2736, %v2778
    %v2801 = vmul.f32 %v2737, %v2788
    %v2802 = vmul.f32 %v2738, %v2798
    %v2803 = vperm.slane %v305, 2
    %v2804 = vmul.f32 %v2799, %v2803
    %v2805 = vmul.f32 %v2800, %v2803
    %v2806 = vmul.f32 %v2801, %v2803
    %v2807 = vmul.f32 %v2802, %v2803
    %v2808 = vperm.slane %v306, 2
    %v2809 = vadd.f32 %v2804, %v2808
    %v2810 = vadd.f32 %v2805, %v2808
    %v2811 = vadd.f32 %v2806, %v2808
    %v2812 = vadd.f32 %v2807, %v2808
    %2813 = vst [vmem:[#allocation26] sm:$0xff] %v2809
    %2814 = vst [vmem:[#allocation26 + $0x8] sm:$0xff] %v2810
    %2815 = vst [vmem:[#allocation26 + $0x10] sm:$0xff] %v2811
    %2816 = vst [vmem:[#allocation26 + $0x18] sm:$0xff] %v2812
    // Predicated region
    $region146: #{tpu_custom_call.1} parent=1 // pred_check
      _
    $region147: #{tpu_custom_call.1} parent=1 // pred_check_branch
      %2818 = sbr.rel (0) target = $region149
    $region148: #{tpu_custom_call.1} parent=1 // pred_region
      %2820 = vsyncadd [#allocation4], 0
      %s2821 = sshll.u32 [#allocation26], 4
      %s2822 = int_to_ptr.vmem [resolvable:$true] %s2821
      %s2823 = sshll.u32 %s21, 4
      %s2824 = int_to_ptr.hbm [resolvable:$true] %s2823
      %2829 = dma.vmem_to_hbm [thread:$0]  %s2822, 512, %s2824, [#allocation4], 128, 128, 8
    $region149: #{tpu_custom_call.1} parent=1 // pred_fallthru
      _
    // Predicated region
    $region150: #{tpu_custom_call.1} parent=1 // pred_check
      _
    $region151: #{tpu_custom_call.1} parent=1 // pred_check_branch
      %2831 = sbr.rel (0) target = $region153
    $region152: #{tpu_custom_call.1} parent=1 // pred_region
      %2833 = dma.done [#allocation4], 512
    $region153: #{tpu_custom_call.1} parent=1 // pred_fallthru
      _
    %2834 = vsyncpa [#allocation3], 1
    %2835 = vsyncpa [#allocation6], 1
    %2836 = vsyncpa [#allocation9], 1
    %2837 = vsyncpa [#allocation12], 1
    %2838 = vsyncpa [#allocation15], 1
    %2839 = vsyncpa [#allocation18], 1
    %2840 = vsyncpa [#allocation21], 1
    %2841 = vsyncpa [#allocation24], 1
    %2842 = vsyncpa [#allocation4], 1

</llo_original>
